<compile_context>
chip_gen: v7x
topology: tpu7x:2x2x1
jax: 0.10.0
libtpu: 0.0.40
codegen_flags: <defaults>
</compile_context>

<pallas_src>
import numpy as np
import jax
import jax.numpy as jnp
from jax.experimental import pallas as pl
from jax.experimental.pallas import tpu as pltpu

EPS = 1e-5
LANES = 128   # packed lane width: W * C == 128 at every stage of this network


# ----------------------------- in-kernel helpers --------------------------------- #

def _bn_train(acc, gamma, beta, c_out):
    """Training-mode BatchNorm2d on a W*C lane-packed (M, 128) f32 accumulator.
    M = N*H_out rows; lane l = w*c_out + c.  Per-channel stats need a reduction over
    rows (sublane sum) AND over the W lane-groups; the latter is log2(W) cyclic lane
    rolls (exact f32, XLU slot).  Two-pass centered variance (biased, eps=1e-5)."""
    m = acc.shape[0]
    w_out = LANES // c_out
    inv_count = 1.0 / float(m * w_out)

    def reduce_w_groups(row):           # (1,128) -> per-channel sum, broadcast per lane
        shift = c_out
        while shift < LANES:            # static unroll: log2(W) steps
            row = row + pltpu.roll(row, shift=shift, axis=1)
            shift *= 2
        return row

    mean = reduce_w_groups(jnp.sum(acc, axis=0, keepdims=True)) * inv_count
    centered = acc - mean
    var = reduce_w_groups(jnp.sum(centered * centered, axis=0, keepdims=True)) * inv_count
    return centered * (gamma * jax.lax.rsqrt(var + EPS)) + beta


def _conv3x3_bn(src_ref, n, h_in, stride, cw_ref, conv_idx, gamma, beta, c_out):
    """3x3 'same' conv (stride 1 or 2) + BN in the packed layout.
    src_ref: (n, h_in + 2, 128) f32 with a zeroed 1-row halo top & bottom.
    kx taps / W padding / W stride are folded into the banded per-ky 128x128 weight
    matrices, so the conv is just 3 accumulating (M,128)x(128,128) matmuls."""
    h_out = h_in // stride
    m = n * h_out
    acc = None
    for ky in range(3):
        if stride == 1:
            rows = src_ref[:, pl.ds(ky, h_out), :]
        else:
            rows = src_ref[:, pl.ds(ky, h_out, stride=stride), :]
        lhs = rows.reshape(m, LANES).astype(jnp.bfloat16)
        part = jnp.dot(lhs, cw_ref[conv_idx, ky], preferred_element_type=jnp.float32)
        acc = part if acc is None else acc + part
    return _bn_train(acc, gamma, beta, c_out)


def _downsample_bn(src_ref, n, h_in, stride, dmat, gamma, beta, c_out):
    """1x1 strided conv + BN for the shortcut (W stride folded into dmat)."""
    h_out = h_in // stride
    m = n * h_out
    if stride == 1:
        rows = src_ref[:, pl.ds(1, h_out), :]
    else:
        rows = src_ref[:, pl.ds(1, h_out, stride=stride), :]
    acc = jnp.dot(rows.reshape(m, LANES).astype(jnp.bfloat16), dmat,
                  preferred_element_type=jnp.float32)
    return _bn_train(acc, gamma, beta, c_out)


def _read_identity(src_ref, n, h):
    """Identity shortcut: read the interior rows of a halo-padded buffer."""
    return src_ref[:, pl.ds(1, h), :].reshape(n * h, LANES)


def _store(dst_ref, val, n, h):
    """Write an (M, 128) activation into the interior of a halo-padded buffer."""
    dst_ref[:, pl.ds(1, h), :] = val.reshape(n, h, LANES).astype(dst_ref.dtype)


# ----------------------------- fused network kernel ------------------------------- #

def make_resnet_kernel(n, h0, c0, plan):
    """plan: static list of (stride, h_in, c_out, has_downsample) per BasicBlock."""
    n_blocks = len(plan)

    def kernel(x_ref, cw_ref, dw_ref, g_ref, b_ref, fw_ref, fb_ref, o_ref, *scratch):
        # Zero ONLY the 1-row top/bottom halos (interiors are fully overwritten by
        # _store).  One hoisted zero row, reused for every buffer.
        zrow = jnp.zeros((n, 1, LANES), jnp.float32)
        for buf in scratch:
            hh = buf.shape[1]
            buf[:, 0:1, :] = zrow
            buf[:, hh - 1:hh, :] = zrow

        # ---- stem: conv3x3 + BN + ReLU ------------------------------------------ #
        act = _conv3x3_bn(x_ref, n, h0, 1, cw_ref, 0, g_ref[0], b_ref[0], c0)
        _store(scratch[0], jnp.maximum(act, 0.0), n, h0)

        ci, bi, di, si = 1, 1, 0, 1   # cursors: conv-mat, bn, downsample-mat, scratch
        src_idx = 0                    # scratch slot holding the current block input
        final = None
        f_h = None

        for k, (stride, h_in, c_out, has_ds) in enumerate(plan):
            h_o = h_in // stride
            src = scratch[src_idx]

            # conv1 + bn1 + relu -> padded mid buffer (input of conv2)
            out1 = _conv3x3_bn(src, n, h_in, stride, cw_ref, ci,
                               g_ref[bi], b_ref[bi], c_out)
            mid = scratch[si]
            _store(mid, jnp.maximum(out1, 0.0), n, h_o)

            # shortcut path
            if has_ds:
                res = _downsample_bn(src, n, h_in, stride, dw_ref[di],
                                     g_ref[bi + 2], b_ref[bi + 2], c_out)
                di += 1
            else:
                res = _read_identity(src, n, h_in)

            # conv2 + bn2 + residual add + final relu (all fused)
            out2 = _conv3x3_bn(mid, n, h_o, 1, cw_ref, ci + 1,
                               g_ref[bi + 1], b_ref[bi + 1], c_out)
            out2 = jnp.maximum(out2 + res, 0.0)

            ci += 2
            bi += 3 if has_ds else 2
            if k < n_blocks - 1:
                _store(scratch[si + 1], out2, n, h_o)
                src_idx = si + 1
                si += 2
            else:
                final, f_h = out2, h_o

        # ---- global average pool + final Linear ---------------------------------- #
        # 1/(H*W) is folded into fw; sum over H here, the sum over the packed (w, c)
        # lanes happens inside the matmul itself.
        s = jnp.sum(final.reshape(n, f_h, LANES), axis=1)            # (N, 128)
        logits = jnp.dot(s.astype(jnp.bfloat16), fw_ref[...],
                         preferred_element_type=jnp.float32) + fb_ref[...]
        o_ref[...] = logits

    return kernel


# ----------------------------- host-side weight packing --------------------------- #

def _pack_conv3x3(w, w_in, c_in_packed, w_out, c_out, stride):
    """(3,3,cin,cout) conv weight -> 3 banded (W_in*C_in, W_out*C_out) matrices:
    A[ky][wi*c_in_packed + ci, wo*c_out + co] = w[ky, wi - stride*wo + 1, ci, co]."""
    w = np.asarray(w, np.float32)
    c_in_real = w.shape[2]
    A = np.zeros((3, w_in * c_in_packed, w_out * c_out), np.float32)
    for ky in range(3):
        for wo in range(w_out):
            for kx in range(3):
                wi = stride * wo + kx - 1
                if 0 <= wi < w_in:
                    A[ky, wi * c_in_packed: wi * c_in_packed + c_in_real,
                      wo * c_out:(wo + 1) * c_out] = w[ky, kx]
    return A


def _pack_conv1x1(w, w_in, c_in, w_out, c_out, stride):
    """(cin,cout) 1x1 strided conv -> one (W_in*C_in, W_out*C_out) matrix."""
    w = np.asarray(w, np.float32)
    A = np.zeros((w_in * c_in, w_out * c_out), np.float32)
    for wo in range(w_out):
        wi = stride * wo
        A[wi * c_in:(wi + 1) * c_in, wo * c_out:(wo + 1) * c_out] = w
    return A


def _pack_bn_vec(v, c_out):
    """(c,) BN vector -> (1,128) lane-packed: lane w*c_out + c holds v[c]."""
    w_out = LANES // c_out
    return np.tile(np.asarray(v, np.float32), w_out).reshape(1, LANES)


# ----------------------------- wrapper / glue -------------------------------------- #

def residual_block_forward(x_nchw, params):
    n, cin0, h0, w0 = x_nchw.shape
    num_classes = params['fc_w'].shape[1]
    c0 = params['stem_w'].shape[-1]

    # lane-packing constraint of this specialized layout: W * C == 128 at every stage
    # (holds for 32x32 input with num_filters = [4, 4, 8, 16]); AvgPool2d(8) on the
    # final 8x8 map is a global pool, folded into the FC weight below.
    assert w0 * c0 == LANES and cin0 <= c0 and num_classes <= LANES

    # ---- pack parameters on the host (one-time glue) ----------------------------- #
    conv_mats = [_pack_conv3x3(params['stem_w'], w0, c0, w0, c0, 1)]
    gammas = [_pack_bn_vec(params['stem_g'], c0)]
    betas = [_pack_bn_vec(params['stem_b'], c0)]
    ds_mats = []
    plan = []
    cur_w, cur_c, cur_h = w0, c0, h0
    for bp, stride in params['blocks']:
        planes = bp['conv1_w'].shape[-1]
        w_o, h_o = cur_w // stride, cur_h // stride
        assert w_o * planes == LANES
        conv_mats.append(_pack_conv3x3(bp['conv1_w'], cur_w, cur_c, w_o, planes, stride))
        conv_mats.append(_pack_conv3x3(bp['conv2_w'], w_o, planes, w_o, planes, 1))
        gammas += [_pack_bn_vec(bp['bn1_g'], planes), _pack_bn_vec(bp['bn2_g'], planes)]
        betas += [_pack_bn_vec(bp['bn1_b'], planes), _pack_bn_vec(bp['bn2_b'], planes)]
        has_ds = 'ds_w' in bp
        if has_ds:
            ds_mats.append(_pack_conv1x1(bp['ds_w'], cur_w, cur_c, w_o, planes, stride))
            gammas.append(_pack_bn_vec(bp['ds_g'], planes))
            betas.append(_pack_bn_vec(bp['ds_b'], planes))
        plan.append((stride, cur_h, planes, has_ds))
        cur_w, cur_c, cur_h = w_o, planes, h_o

    # final FC: fold the global average pool (1/(H_f*W_f)) into the packed weight
    fc_w = np.asarray(params['fc_w'], np.float32)
    fw_np = np.zeros((LANES, LANES), np.float32)
    for wi in range(cur_w):
        fw_np[wi * cur_c:(wi + 1) * cur_c, :num_classes] = fc_w / float(cur_h * cur_w)
    fb_np = np.zeros((1, LANES), np.float32)
    fb_np[0, :num_classes] = np.asarray(params['fc_b'], np.float32)

    cw = jnp.asarray(np.stack(conv_mats), jnp.bfloat16)       # (n_conv, 3, 128, 128)
    dw = (jnp.asarray(np.stack(ds_mats), jnp.bfloat16) if ds_mats
          else jnp.zeros((1, LANES, LANES), jnp.bfloat16))
    gg = jnp.asarray(np.stack(gammas), jnp.float32)            # (n_bn, 1, 128)
    bb = jnp.asarray(np.stack(betas), jnp.float32)
    fw = jnp.asarray(fw_np, jnp.bfloat16)                      # (128, 128)
    fb = jnp.asarray(fb_np, jnp.float32)                       # (1, 128)

    # ---- pack the input: NCHW -> (N, H, W*C) lane-packed + 1-row zero H halo ------ #
    x = jnp.transpose(x_nchw, (0, 2, 3, 1)).astype(jnp.float32)          # NHWC
    x = jnp.pad(x, ((0, 0), (0, 0), (0, 0), (0, c0 - cin0)))             # per-pixel C pad
    x = x.reshape(n, h0, w0 * c0)                                        # lane = w*c0 + c
    x_p = jnp.pad(x, ((0, 0), (1, 1), (0, 0)))

    # ---- VMEM-resident packed activations: stem out, then (mid, out) per block ---- #
    scratch = [pltpu.VMEM((n, h0 + 2, LANES), jnp.float32)]
    for k, (stride, h_in, _, _) in enumerate(plan):
        h_o = h_in // stride
        scratch.append(pltpu.VMEM((n, h_o + 2, LANES), jnp.float32))      # conv1 out
        if k < len(plan) - 1:
            scratch.append(pltpu.VMEM((n, h_o + 2, LANES), jnp.float32))  # block out
    # Total VMEM footprint ~1 MiB -> no vmem_limit override needed; ample headroom on
    # v7x's 64 MiB even at much larger batch.
    # Note: single un-gridded call = one TensorCore; a v7x dual-core split (spatial M
    # split + BN partial-sum exchange) only pays off at much larger batch sizes.

    vmem_spec = pl.BlockSpec(memory_space=pltpu.MemorySpace.VMEM)
    out = pl.pallas_call(
        make_resnet_kernel(n, h0, c0, plan),
        out_shape=jax.ShapeDtypeStruct((n, LANES), jnp.float32),
        in_specs=[vmem_spec] * 7,
        out_specs=vmem_spec,
        scratch_shapes=scratch,
    )(x_p, cw, dw, gg, bb, fw, fb)
    return out[:, :num_classes]


# ----------------------------- parameters ------------------------------------------ #

def init_params(key, depth, num_filters, K, num_classes):
    assert (depth - 2) % (K * 2) == 0
    n = (depth - 2) // (K * 2)
    keys = jax.random.split(key, 64)
    ki = iter(range(64))

    def kaiming(k, kh, kw, cin, cout):  # kaiming_normal_, fan_out, relu
        fan_out = cout * kh * kw
        return (2.0 / fan_out) ** 0.5 * jax.random.normal(k, (kh, kw, cin, cout),
                                                          jnp.float32)

    params = {
        'stem_w': kaiming(keys[next(ki)], 3, 3, 3, num_filters[0]),
        'stem_g': jnp.ones((num_filters[0],), jnp.float32),
        'stem_b': jnp.zeros((num_filters[0],), jnp.float32),
        'blocks': [],
    }
    inplanes = num_filters[0]
    layer_planes = [num_filters[1], num_filters[2]]
    layer_strides = [1, 2]
    if K > 2:
        layer_planes.append(num_filters[3]); layer_strides.append(2)
    if K > 3:
        layer_planes.append(num_filters[4]); layer_strides.append(2)

    for planes, lstride in zip(layer_planes, layer_strides):
        for i in range(n):
            stride = lstride if i == 0 else 1
            bp = {
                'conv1_w': kaiming(keys[next(ki)], 3, 3, inplanes, planes),
                'bn1_g': jnp.ones((planes,), jnp.float32),
                'bn1_b': jnp.zeros((planes,), jnp.float32),
                'conv2_w': kaiming(keys[next(ki)], 3, 3, planes, planes),
                'bn2_g': jnp.ones((planes,), jnp.float32),
                'bn2_b': jnp.zeros((planes,), jnp.float32),
            }
            if stride != 1 or inplanes != planes:
                bp['ds_w'] = kaiming(keys[next(ki)], 1, 1, inplanes, planes
                                     ).reshape(inplanes, planes)
                bp['ds_g'] = jnp.ones((planes,), jnp.float32)
                bp['ds_b'] = jnp.zeros((planes,), jnp.float32)
            params['blocks'].append((bp, stride))
            inplanes = planes

    C = num_filters[K]
    bound = 1.0 / (C ** 0.5)  # nn.Linear default init
    params['fc_w'] = jax.random.uniform(keys[next(ki)], (C, num_classes),
                                        jnp.float32, -bound, bound)
    params['fc_b'] = jax.random.uniform(keys[next(ki)], (num_classes,),
                                        jnp.float32, -bound, bound)
    return params


# ----------------------------- main ------------------------------------------------- #

if __name__ == "__main__":
    key = jax.random.PRNGKey(0)
    kx, kp = jax.random.split(key)

    # depth=8, K=3 -> 1 BasicBlock per layer; AvgPool2d(8) implies a 32x32 input
    depth, K, num_classes = 8, 3, 10
    num_filters = [4, 4, 8, 16]   # W*C == 128 at every stage: 32*4, 16*8, 8*16

    x = jax.random.normal(kx, (2, 3, 32, 32), jnp.float32)  # NCHW, as in PyTorch
    params = init_params(kp, depth, num_filters, K, num_classes)

    out = residual_block_forward(x, params)
    out = jax.block_until_ready(out)
    assert out.shape == (2, num_classes), out.shape
    assert bool(jnp.all(jnp.isfinite(out)))
    print("KERNEL_OK")
</pallas_src>

<mosaic_0001>
module attributes {stable_mosaic.version = 11 : i64} {
  func.func @kernel(%arg0: memref<2x34x128xf32, #tpu.memory_space<vmem>>, %arg1: memref<7x3x128x128xbf16, #tpu.memory_space<vmem>>, %arg2: memref<2x128x128xbf16, #tpu.memory_space<vmem>>, %arg3: memref<9x1x128xf32, #tpu.memory_space<vmem>>, %arg4: memref<9x1x128xf32, #tpu.memory_space<vmem>>, %arg5: memref<128x128xbf16, #tpu.memory_space<vmem>>, %arg6: memref<1x128xf32, #tpu.memory_space<vmem>>, %arg7: memref<2x128xf32, #tpu.memory_space<vmem>>, %arg8: memref<2x34x128xf32, #tpu.memory_space<vmem>>, %arg9: memref<2x34x128xf32, #tpu.memory_space<vmem>>, %arg10: memref<2x34x128xf32, #tpu.memory_space<vmem>>, %arg11: memref<2x18x128xf32, #tpu.memory_space<vmem>>, %arg12: memref<2x18x128xf32, #tpu.memory_space<vmem>>, %arg13: memref<2x10x128xf32, #tpu.memory_space<vmem>>) attributes {dimension_semantics = [], scalar_prefetch = 0 : i64, scratch_operands = 6 : i64, tpu.core_type = #tpu.core_type<tc>} {
    %cst = arith.constant 0.000000e+00 : f32
    %0 = vector.broadcast %cst : f32 to vector<2x1x128xf32>
    %c0 = arith.constant 0 : index
    %c0_0 = arith.constant 0 : index
    %c0_1 = arith.constant 0 : index
    %1 = vector.load %arg8[%c0, %c0_0, %c0_1] : memref<2x34x128xf32, #tpu.memory_space<vmem>>, vector<2x1x128xf32>
    tpu.vector_store %arg8[%c0, %c0_0, %c0_1], %0 {strides = array<i32>} : memref<2x34x128xf32, #tpu.memory_space<vmem>>, vector<2x1x128xf32>,
    %c0_2 = arith.constant 0 : index
    %c33 = arith.constant 33 : index
    %c0_3 = arith.constant 0 : index
    %2 = vector.load %arg8[%c0_2, %c33, %c0_3] : memref<2x34x128xf32, #tpu.memory_space<vmem>>, vector<2x1x128xf32>
    tpu.vector_store %arg8[%c0_2, %c33, %c0_3], %0 {strides = array<i32>} : memref<2x34x128xf32, #tpu.memory_space<vmem>>, vector<2x1x128xf32>,
    %c0_4 = arith.constant 0 : index
    %c0_5 = arith.constant 0 : index
    %c0_6 = arith.constant 0 : index
    %3 = vector.load %arg9[%c0_4, %c0_5, %c0_6] : memref<2x34x128xf32, #tpu.memory_space<vmem>>, vector<2x1x128xf32>
    tpu.vector_store %arg9[%c0_4, %c0_5, %c0_6], %0 {strides = array<i32>} : memref<2x34x128xf32, #tpu.memory_space<vmem>>, vector<2x1x128xf32>,
    %c0_7 = arith.constant 0 : index
    %c33_8 = arith.constant 33 : index
    %c0_9 = arith.constant 0 : index
    %4 = vector.load %arg9[%c0_7, %c33_8, %c0_9] : memref<2x34x128xf32, #tpu.memory_space<vmem>>, vector<2x1x128xf32>
    tpu.vector_store %arg9[%c0_7, %c33_8, %c0_9], %0 {strides = array<i32>} : memref<2x34x128xf32, #tpu.memory_space<vmem>>, vector<2x1x128xf32>,
    %c0_10 = arith.constant 0 : index
    %c0_11 = arith.constant 0 : index
    %c0_12 = arith.constant 0 : index
    %5 = vector.load %arg10[%c0_10, %c0_11, %c0_12] : memref<2x34x128xf32, #tpu.memory_space<vmem>>, vector<2x1x128xf32>
    tpu.vector_store %arg10[%c0_10, %c0_11, %c0_12], %0 {strides = array<i32>} : memref<2x34x128xf32, #tpu.memory_space<vmem>>, vector<2x1x128xf32>,
    %c0_13 = arith.constant 0 : index
    %c33_14 = arith.constant 33 : index
    %c0_15 = arith.constant 0 : index
    %6 = vector.load %arg10[%c0_13, %c33_14, %c0_15] : memref<2x34x128xf32, #tpu.memory_space<vmem>>, vector<2x1x128xf32>
    tpu.vector_store %arg10[%c0_13, %c33_14, %c0_15], %0 {strides = array<i32>} : memref<2x34x128xf32, #tpu.memory_space<vmem>>, vector<2x1x128xf32>,
    %c0_16 = arith.constant 0 : index
    %c0_17 = arith.constant 0 : index
    %c0_18 = arith.constant 0 : index
    %7 = vector.load %arg11[%c0_16, %c0_17, %c0_18] : memref<2x18x128xf32, #tpu.memory_space<vmem>>, vector<2x1x128xf32>
    tpu.vector_store %arg11[%c0_16, %c0_17, %c0_18], %0 {strides = array<i32>} : memref<2x18x128xf32, #tpu.memory_space<vmem>>, vector<2x1x128xf32>,
    %c0_19 = arith.constant 0 : index
    %c17 = arith.constant 17 : index
    %c0_20 = arith.constant 0 : index
    %8 = vector.load %arg11[%c0_19, %c17, %c0_20] : memref<2x18x128xf32, #tpu.memory_space<vmem>>, vector<2x1x128xf32>
    tpu.vector_store %arg11[%c0_19, %c17, %c0_20], %0 {strides = array<i32>} : memref<2x18x128xf32, #tpu.memory_space<vmem>>, vector<2x1x128xf32>,
    %c0_21 = arith.constant 0 : index
    %c0_22 = arith.constant 0 : index
    %c0_23 = arith.constant 0 : index
    %9 = vector.load %arg12[%c0_21, %c0_22, %c0_23] : memref<2x18x128xf32, #tpu.memory_space<vmem>>, vector<2x1x128xf32>
    tpu.vector_store %arg12[%c0_21, %c0_22, %c0_23], %0 {strides = array<i32>} : memref<2x18x128xf32, #tpu.memory_space<vmem>>, vector<2x1x128xf32>,
    %c0_24 = arith.constant 0 : index
    %c17_25 = arith.constant 17 : index
    %c0_26 = arith.constant 0 : index
    %10 = vector.load %arg12[%c0_24, %c17_25, %c0_26] : memref<2x18x128xf32, #tpu.memory_space<vmem>>, vector<2x1x128xf32>
    tpu.vector_store %arg12[%c0_24, %c17_25, %c0_26], %0 {strides = array<i32>} : memref<2x18x128xf32, #tpu.memory_space<vmem>>, vector<2x1x128xf32>,
    %c0_27 = arith.constant 0 : index
    %c0_28 = arith.constant 0 : index
    %c0_29 = arith.constant 0 : index
    %11 = vector.load %arg13[%c0_27, %c0_28, %c0_29] : memref<2x10x128xf32, #tpu.memory_space<vmem>>, vector<2x1x128xf32>
    tpu.vector_store %arg13[%c0_27, %c0_28, %c0_29], %0 {strides = array<i32>} : memref<2x10x128xf32, #tpu.memory_space<vmem>>, vector<2x1x128xf32>,
    %c0_30 = arith.constant 0 : index
    %c9 = arith.constant 9 : index
    %c0_31 = arith.constant 0 : index
    %12 = vector.load %arg13[%c0_30, %c9, %c0_31] : memref<2x10x128xf32, #tpu.memory_space<vmem>>, vector<2x1x128xf32>
    tpu.vector_store %arg13[%c0_30, %c9, %c0_31], %0 {strides = array<i32>} : memref<2x10x128xf32, #tpu.memory_space<vmem>>, vector<2x1x128xf32>,
    %c0_32 = arith.constant 0 : index
    %c0_33 = arith.constant 0 : index
    %c0_34 = arith.constant 0 : index
    %13 = vector.load %arg3[%c0_32, %c0_33, %c0_34] : memref<9x1x128xf32, #tpu.memory_space<vmem>>, vector<1x1x128xf32>
    %14 = vector.shape_cast %13 : vector<1x1x128xf32> to vector<1x128xf32>
    %c0_35 = arith.constant 0 : index
    %c0_36 = arith.constant 0 : index
    %c0_37 = arith.constant 0 : index
    %15 = vector.load %arg4[%c0_35, %c0_36, %c0_37] : memref<9x1x128xf32, #tpu.memory_space<vmem>>, vector<1x1x128xf32>
    %16 = vector.shape_cast %15 : vector<1x1x128xf32> to vector<1x128xf32>
    %c0_38 = arith.constant 0 : index
    %c0_39 = arith.constant 0 : index
    %c0_40 = arith.constant 0 : index
    %17 = vector.load %arg0[%c0_38, %c0_39, %c0_40] : memref<2x34x128xf32, #tpu.memory_space<vmem>>, vector<2x32x128xf32>
    %18 = vector.shape_cast %17 : vector<2x32x128xf32> to vector<64x128xf32>
    %19 = arith.truncf %18 : vector<64x128xf32> to vector<64x128xbf16>
    %c0_41 = arith.constant 0 : index
    %c0_42 = arith.constant 0 : index
    %c0_43 = arith.constant 0 : index
    %c0_44 = arith.constant 0 : index
    %20 = vector.load %arg1[%c0_41, %c0_42, %c0_43, %c0_44] : memref<7x3x128x128xbf16, #tpu.memory_space<vmem>>, vector<1x1x128x128xbf16>
    %21 = vector.shape_cast %20 : vector<1x1x128x128xbf16> to vector<128x128xbf16>
    %cst_45 = arith.constant dense<0.000000e+00> : vector<64x128xf32>
    %22 = tpu.matmul %19, %21, %cst_45 {dimension_numbers = #tpu.dot_dimension_numbers<[1], [0], [0], [1], [0, 0, 1, 1], [], []>} : vector<64x128xbf16>, vector<128x128xbf16>, vector<64x128xf32> -> vector<64x128xf32>
    %c0_46 = arith.constant 0 : index
    %c1 = arith.constant 1 : index
    %c0_47 = arith.constant 0 : index
    %23 = vector.load %arg0[%c0_46, %c1, %c0_47] : memref<2x34x128xf32, #tpu.memory_space<vmem>>, vector<2x32x128xf32>
    %24 = vector.shape_cast %23 : vector<2x32x128xf32> to vector<64x128xf32>
    %25 = arith.truncf %24 : vector<64x128xf32> to vector<64x128xbf16>
    %c0_48 = arith.constant 0 : index
    %c1_49 = arith.constant 1 : index
    %c0_50 = arith.constant 0 : index
    %c0_51 = arith.constant 0 : index
    %26 = vector.load %arg1[%c0_48, %c1_49, %c0_50, %c0_51] : memref<7x3x128x128xbf16, #tpu.memory_space<vmem>>, vector<1x1x128x128xbf16>
    %27 = vector.shape_cast %26 : vector<1x1x128x128xbf16> to vector<128x128xbf16>
    %cst_52 = arith.constant dense<0.000000e+00> : vector<64x128xf32>
    %28 = tpu.matmul %25, %27, %cst_52 {dimension_numbers = #tpu.dot_dimension_numbers<[1], [0], [0], [1], [0, 0, 1, 1], [], []>} : vector<64x128xbf16>, vector<128x128xbf16>, vector<64x128xf32> -> vector<64x128xf32>
    %29 = arith.addf %22, %28 : vector<64x128xf32>
    %c0_53 = arith.constant 0 : index
    %c2 = arith.constant 2 : index
    %c0_54 = arith.constant 0 : index
    %30 = vector.load %arg0[%c0_53, %c2, %c0_54] : memref<2x34x128xf32, #tpu.memory_space<vmem>>, vector<2x32x128xf32>
    %31 = vector.shape_cast %30 : vector<2x32x128xf32> to vector<64x128xf32>
    %32 = arith.truncf %31 : vector<64x128xf32> to vector<64x128xbf16>
    %c0_55 = arith.constant 0 : index
    %c2_56 = arith.constant 2 : index
    %c0_57 = arith.constant 0 : index
    %c0_58 = arith.constant 0 : index
    %33 = vector.load %arg1[%c0_55, %c2_56, %c0_57, %c0_58] : memref<7x3x128x128xbf16, #tpu.memory_space<vmem>>, vector<1x1x128x128xbf16>
    %34 = vector.shape_cast %33 : vector<1x1x128x128xbf16> to vector<128x128xbf16>
    %cst_59 = arith.constant dense<0.000000e+00> : vector<64x128xf32>
    %35 = tpu.matmul %32, %34, %cst_59 {dimension_numbers = #tpu.dot_dimension_numbers<[1], [0], [0], [1], [0, 0, 1, 1], [], []>} : vector<64x128xbf16>, vector<128x128xbf16>, vector<64x128xf32> -> vector<64x128xf32>
    %36 = arith.addf %29, %35 : vector<64x128xf32>
    %cst_60 = arith.constant dense<0.000000e+00> : vector<128xf32>
    %37 = vector.multi_reduction <add>, %36, %cst_60 [0] : vector<64x128xf32> to vector<128xf32>
    %38 = vector.shape_cast %37 : vector<128xf32> to vector<1x128xf32>
    %c4_i32 = arith.constant 4 : i32
    %39 = tpu.dynamic_rotate %38 by %c4_i32 dim 1 : vector<1x128xf32>, i32 -> vector<1x128xf32>
    %40 = arith.addf %38, %39 : vector<1x128xf32>
    %c8_i32 = arith.constant 8 : i32
    %41 = tpu.dynamic_rotate %40 by %c8_i32 dim 1 : vector<1x128xf32>, i32 -> vector<1x128xf32>
    %42 = arith.addf %40, %41 : vector<1x128xf32>
    %c16_i32 = arith.constant 16 : i32
    %43 = tpu.dynamic_rotate %42 by %c16_i32 dim 1 : vector<1x128xf32>, i32 -> vector<1x128xf32>
    %44 = arith.addf %42, %43 : vector<1x128xf32>
    %c32_i32 = arith.constant 32 : i32
    %45 = tpu.dynamic_rotate %44 by %c32_i32 dim 1 : vector<1x128xf32>, i32 -> vector<1x128xf32>
    %46 = arith.addf %44, %45 : vector<1x128xf32>
    %c64_i32 = arith.constant 64 : i32
    %47 = tpu.dynamic_rotate %46 by %c64_i32 dim 1 : vector<1x128xf32>, i32 -> vector<1x128xf32>
    %48 = arith.addf %46, %47 : vector<1x128xf32>
    %cst_61 = arith.constant 4.8828125E-4 : f32
    %49 = vector.broadcast %cst_61 : f32 to vector<1x128xf32>
    %50 = arith.mulf %48, %49 : vector<1x128xf32>
    %51 = vector.broadcast %50 : vector<1x128xf32> to vector<64x128xf32>
    %52 = arith.subf %36, %51 : vector<64x128xf32>
    %53 = arith.mulf %52, %52 : vector<64x128xf32>
    %cst_62 = arith.constant dense<0.000000e+00> : vector<128xf32>
    %54 = vector.multi_reduction <add>, %53, %cst_62 [0] : vector<64x128xf32> to vector<128xf32>
    %55 = vector.shape_cast %54 : vector<128xf32> to vector<1x128xf32>
    %c4_i32_63 = arith.constant 4 : i32
    %56 = tpu.dynamic_rotate %55 by %c4_i32_63 dim 1 : vector<1x128xf32>, i32 -> vector<1x128xf32>
    %57 = arith.addf %55, %56 : vector<1x128xf32>
    %c8_i32_64 = arith.constant 8 : i32
    %58 = tpu.dynamic_rotate %57 by %c8_i32_64 dim 1 : vector<1x128xf32>, i32 -> vector<1x128xf32>
    %59 = arith.addf %57, %58 : vector<1x128xf32>
    %c16_i32_65 = arith.constant 16 : i32
    %60 = tpu.dynamic_rotate %59 by %c16_i32_65 dim 1 : vector<1x128xf32>, i32 -> vector<1x128xf32>
    %61 = arith.addf %59, %60 : vector<1x128xf32>
    %c32_i32_66 = arith.constant 32 : i32
    %62 = tpu.dynamic_rotate %61 by %c32_i32_66 dim 1 : vector<1x128xf32>, i32 -> vector<1x128xf32>
    %63 = arith.addf %61, %62 : vector<1x128xf32>
    %c64_i32_67 = arith.constant 64 : i32
    %64 = tpu.dynamic_rotate %63 by %c64_i32_67 dim 1 : vector<1x128xf32>, i32 -> vector<1x128xf32>
    %65 = arith.addf %63, %64 : vector<1x128xf32>
    %cst_68 = arith.constant 4.8828125E-4 : f32
    %66 = vector.broadcast %cst_68 : f32 to vector<1x128xf32>
    %67 = arith.mulf %65, %66 : vector<1x128xf32>
    %cst_69 = arith.constant 9.99999974E-6 : f32
    %68 = vector.broadcast %cst_69 : f32 to vector<1x128xf32>
    %69 = arith.addf %67, %68 : vector<1x128xf32>
    %70 = math.rsqrt %69 : vector<1x128xf32>
    %71 = arith.mulf %14, %70 : vector<1x128xf32>
    %72 = vector.broadcast %71 : vector<1x128xf32> to vector<64x128xf32>
    %73 = arith.mulf %52, %72 : vector<64x128xf32>
    %74 = vector.broadcast %16 : vector<1x128xf32> to vector<64x128xf32>
    %75 = arith.addf %73, %74 : vector<64x128xf32>
    %cst_70 = arith.constant 0.000000e+00 : f32
    %76 = vector.broadcast %cst_70 : f32 to vector<64x128xf32>
    %77 = arith.maximumf %75, %76 : vector<64x128xf32>
    %78 = vector.shape_cast %77 : vector<64x128xf32> to vector<2x32x128xf32>
    %c0_71 = arith.constant 0 : index
    %c1_72 = arith.constant 1 : index
    %c0_73 = arith.constant 0 : index
    %79 = vector.load %arg8[%c0_71, %c1_72, %c0_73] : memref<2x34x128xf32, #tpu.memory_space<vmem>>, vector<2x32x128xf32>
    tpu.vector_store %arg8[%c0_71, %c1_72, %c0_73], %78 {strides = array<i32>} : memref<2x34x128xf32, #tpu.memory_space<vmem>>, vector<2x32x128xf32>,
    %c1_74 = arith.constant 1 : index
    %c0_75 = arith.constant 0 : index
    %c0_76 = arith.constant 0 : index
    %80 = vector.load %arg3[%c1_74, %c0_75, %c0_76] : memref<9x1x128xf32, #tpu.memory_space<vmem>>, vector<1x1x128xf32>
    %81 = vector.shape_cast %80 : vector<1x1x128xf32> to vector<1x128xf32>
    %c1_77 = arith.constant 1 : index
    %c0_78 = arith.constant 0 : index
    %c0_79 = arith.constant 0 : index
    %82 = vector.load %arg4[%c1_77, %c0_78, %c0_79] : memref<9x1x128xf32, #tpu.memory_space<vmem>>, vector<1x1x128xf32>
    %83 = vector.shape_cast %82 : vector<1x1x128xf32> to vector<1x128xf32>
    %c0_80 = arith.constant 0 : index
    %c0_81 = arith.constant 0 : index
    %c0_82 = arith.constant 0 : index
    %84 = vector.load %arg8[%c0_80, %c0_81, %c0_82] : memref<2x34x128xf32, #tpu.memory_space<vmem>>, vector<2x32x128xf32>
    %85 = vector.shape_cast %84 : vector<2x32x128xf32> to vector<64x128xf32>
    %86 = arith.truncf %85 : vector<64x128xf32> to vector<64x128xbf16>
    %c1_83 = arith.constant 1 : index
    %c0_84 = arith.constant 0 : index
    %c0_85 = arith.constant 0 : index
    %c0_86 = arith.constant 0 : index
    %87 = vector.load %arg1[%c1_83, %c0_84, %c0_85, %c0_86] : memref<7x3x128x128xbf16, #tpu.memory_space<vmem>>, vector<1x1x128x128xbf16>
    %88 = vector.shape_cast %87 : vector<1x1x128x128xbf16> to vector<128x128xbf16>
    %cst_87 = arith.constant dense<0.000000e+00> : vector<64x128xf32>
    %89 = tpu.matmul %86, %88, %cst_87 {dimension_numbers = #tpu.dot_dimension_numbers<[1], [0], [0], [1], [0, 0, 1, 1], [], []>} : vector<64x128xbf16>, vector<128x128xbf16>, vector<64x128xf32> -> vector<64x128xf32>
    %c0_88 = arith.constant 0 : index
    %c1_89 = arith.constant 1 : index
    %c0_90 = arith.constant 0 : index
    %90 = vector.load %arg8[%c0_88, %c1_89, %c0_90] : memref<2x34x128xf32, #tpu.memory_space<vmem>>, vector<2x32x128xf32>
    %91 = vector.shape_cast %90 : vector<2x32x128xf32> to vector<64x128xf32>
    %92 = arith.truncf %91 : vector<64x128xf32> to vector<64x128xbf16>
    %c1_91 = arith.constant 1 : index
    %c1_92 = arith.constant 1 : index
    %c0_93 = arith.constant 0 : index
    %c0_94 = arith.constant 0 : index
    %93 = vector.load %arg1[%c1_91, %c1_92, %c0_93, %c0_94] : memref<7x3x128x128xbf16, #tpu.memory_space<vmem>>, vector<1x1x128x128xbf16>
    %94 = vector.shape_cast %93 : vector<1x1x128x128xbf16> to vector<128x128xbf16>
    %cst_95 = arith.constant dense<0.000000e+00> : vector<64x128xf32>
    %95 = tpu.matmul %92, %94, %cst_95 {dimension_numbers = #tpu.dot_dimension_numbers<[1], [0], [0], [1], [0, 0, 1, 1], [], []>} : vector<64x128xbf16>, vector<128x128xbf16>, vector<64x128xf32> -> vector<64x128xf32>
    %96 = arith.addf %89, %95 : vector<64x128xf32>
    %c0_96 = arith.constant 0 : index
    %c2_97 = arith.constant 2 : index
    %c0_98 = arith.constant 0 : index
    %97 = vector.load %arg8[%c0_96, %c2_97, %c0_98] : memref<2x34x128xf32, #tpu.memory_space<vmem>>, vector<2x32x128xf32>
    %98 = vector.shape_cast %97 : vector<2x32x128xf32> to vector<64x128xf32>
    %99 = arith.truncf %98 : vector<64x128xf32> to vector<64x128xbf16>
    %c1_99 = arith.constant 1 : index
    %c2_100 = arith.constant 2 : index
    %c0_101 = arith.constant 0 : index
    %c0_102 = arith.constant 0 : index
    %100 = vector.load %arg1[%c1_99, %c2_100, %c0_101, %c0_102] : memref<7x3x128x128xbf16, #tpu.memory_space<vmem>>, vector<1x1x128x128xbf16>
    %101 = vector.shape_cast %100 : vector<1x1x128x128xbf16> to vector<128x128xbf16>
    %cst_103 = arith.constant dense<0.000000e+00> : vector<64x128xf32>
    %102 = tpu.matmul %99, %101, %cst_103 {dimension_numbers = #tpu.dot_dimension_numbers<[1], [0], [0], [1], [0, 0, 1, 1], [], []>} : vector<64x128xbf16>, vector<128x128xbf16>, vector<64x128xf32> -> vector<64x128xf32>
    %103 = arith.addf %96, %102 : vector<64x128xf32>
    %cst_104 = arith.constant dense<0.000000e+00> : vector<128xf32>
    %104 = vector.multi_reduction <add>, %103, %cst_104 [0] : vector<64x128xf32> to vector<128xf32>
    %105 = vector.shape_cast %104 : vector<128xf32> to vector<1x128xf32>
    %c4_i32_105 = arith.constant 4 : i32
    %106 = tpu.dynamic_rotate %105 by %c4_i32_105 dim 1 : vector<1x128xf32>, i32 -> vector<1x128xf32>
    %107 = arith.addf %105, %106 : vector<1x128xf32>
    %c8_i32_106 = arith.constant 8 : i32
    %108 = tpu.dynamic_rotate %107 by %c8_i32_106 dim 1 : vector<1x128xf32>, i32 -> vector<1x128xf32>
    %109 = arith.addf %107, %108 : vector<1x128xf32>
    %c16_i32_107 = arith.constant 16 : i32
    %110 = tpu.dynamic_rotate %109 by %c16_i32_107 dim 1 : vector<1x128xf32>, i32 -> vector<1x128xf32>
    %111 = arith.addf %109, %110 : vector<1x128xf32>
    %c32_i32_108 = arith.constant 32 : i32
    %112 = tpu.dynamic_rotate %111 by %c32_i32_108 dim 1 : vector<1x128xf32>, i32 -> vector<1x128xf32>
    %113 = arith.addf %111, %112 : vector<1x128xf32>
    %c64_i32_109 = arith.constant 64 : i32
    %114 = tpu.dynamic_rotate %113 by %c64_i32_109 dim 1 : vector<1x128xf32>, i32 -> vector<1x128xf32>
    %115 = arith.addf %113, %114 : vector<1x128xf32>
    %cst_110 = arith.constant 4.8828125E-4 : f32
    %116 = vector.broadcast %cst_110 : f32 to vector<1x128xf32>
    %117 = arith.mulf %115, %116 : vector<1x128xf32>
    %118 = vector.broadcast %117 : vector<1x128xf32> to vector<64x128xf32>
    %119 = arith.subf %103, %118 : vector<64x128xf32>
    %120 = arith.mulf %119, %119 : vector<64x128xf32>
    %cst_111 = arith.constant dense<0.000000e+00> : vector<128xf32>
    %121 = vector.multi_reduction <add>, %120, %cst_111 [0] : vector<64x128xf32> to vector<128xf32>
    %122 = vector.shape_cast %121 : vector<128xf32> to vector<1x128xf32>
    %c4_i32_112 = arith.constant 4 : i32
    %123 = tpu.dynamic_rotate %122 by %c4_i32_112 dim 1 : vector<1x128xf32>, i32 -> vector<1x128xf32>
    %124 = arith.addf %122, %123 : vector<1x128xf32>
    %c8_i32_113 = arith.constant 8 : i32
    %125 = tpu.dynamic_rotate %124 by %c8_i32_113 dim 1 : vector<1x128xf32>, i32 -> vector<1x128xf32>
    %126 = arith.addf %124, %125 : vector<1x128xf32>
    %c16_i32_114 = arith.constant 16 : i32
    %127 = tpu.dynamic_rotate %126 by %c16_i32_114 dim 1 : vector<1x128xf32>, i32 -> vector<1x128xf32>
    %128 = arith.addf %126, %127 : vector<1x128xf32>
    %c32_i32_115 = arith.constant 32 : i32
    %129 = tpu.dynamic_rotate %128 by %c32_i32_115 dim 1 : vector<1x128xf32>, i32 -> vector<1x128xf32>
    %130 = arith.addf %128, %129 : vector<1x128xf32>
    %c64_i32_116 = arith.constant 64 : i32
    %131 = tpu.dynamic_rotate %130 by %c64_i32_116 dim 1 : vector<1x128xf32>, i32 -> vector<1x128xf32>
    %132 = arith.addf %130, %131 : vector<1x128xf32>
    %cst_117 = arith.constant 4.8828125E-4 : f32
    %133 = vector.broadcast %cst_117 : f32 to vector<1x128xf32>
    %134 = arith.mulf %132, %133 : vector<1x128xf32>
    %cst_118 = arith.constant 9.99999974E-6 : f32
    %135 = vector.broadcast %cst_118 : f32 to vector<1x128xf32>
    %136 = arith.addf %134, %135 : vector<1x128xf32>
    %137 = math.rsqrt %136 : vector<1x128xf32>
    %138 = arith.mulf %81, %137 : vector<1x128xf32>
    %139 = vector.broadcast %138 : vector<1x128xf32> to vector<64x128xf32>
    %140 = arith.mulf %119, %139 : vector<64x128xf32>
    %141 = vector.broadcast %83 : vector<1x128xf32> to vector<64x128xf32>
    %142 = arith.addf %140, %141 : vector<64x128xf32>
    %cst_119 = arith.constant 0.000000e+00 : f32
    %143 = vector.broadcast %cst_119 : f32 to vector<64x128xf32>
    %144 = arith.maximumf %142, %143 : vector<64x128xf32>
    %145 = vector.shape_cast %144 : vector<64x128xf32> to vector<2x32x128xf32>
    %c0_120 = arith.constant 0 : index
    %c1_121 = arith.constant 1 : index
    %c0_122 = arith.constant 0 : index
    %146 = vector.load %arg9[%c0_120, %c1_121, %c0_122] : memref<2x34x128xf32, #tpu.memory_space<vmem>>, vector<2x32x128xf32>
    tpu.vector_store %arg9[%c0_120, %c1_121, %c0_122], %145 {strides = array<i32>} : memref<2x34x128xf32, #tpu.memory_space<vmem>>, vector<2x32x128xf32>,
    %c0_123 = arith.constant 0 : index
    %c1_124 = arith.constant 1 : index
    %c0_125 = arith.constant 0 : index
    %147 = vector.load %arg8[%c0_123, %c1_124, %c0_125] : memref<2x34x128xf32, #tpu.memory_space<vmem>>, vector<2x32x128xf32>
    %148 = vector.shape_cast %147 : vector<2x32x128xf32> to vector<64x128xf32>
    %c2_126 = arith.constant 2 : index
    %c0_127 = arith.constant 0 : index
    %c0_128 = arith.constant 0 : index
    %149 = vector.load %arg3[%c2_126, %c0_127, %c0_128] : memref<9x1x128xf32, #tpu.memory_space<vmem>>, vector<1x1x128xf32>
    %150 = vector.shape_cast %149 : vector<1x1x128xf32> to vector<1x128xf32>
    %c2_129 = arith.constant 2 : index
    %c0_130 = arith.constant 0 : index
    %c0_131 = arith.constant 0 : index
    %151 = vector.load %arg4[%c2_129, %c0_130, %c0_131] : memref<9x1x128xf32, #tpu.memory_space<vmem>>, vector<1x1x128xf32>
    %152 = vector.shape_cast %151 : vector<1x1x128xf32> to vector<1x128xf32>
    %c0_132 = arith.constant 0 : index
    %c0_133 = arith.constant 0 : index
    %c0_134 = arith.constant 0 : index
    %153 = vector.load %arg9[%c0_132, %c0_133, %c0_134] : memref<2x34x128xf32, #tpu.memory_space<vmem>>, vector<2x32x128xf32>
    %154 = vector.shape_cast %153 : vector<2x32x128xf32> to vector<64x128xf32>
    %155 = arith.truncf %154 : vector<64x128xf32> to vector<64x128xbf16>
    %c2_135 = arith.constant 2 : index
    %c0_136 = arith.constant 0 : index
    %c0_137 = arith.constant 0 : index
    %c0_138 = arith.constant 0 : index
    %156 = vector.load %arg1[%c2_135, %c0_136, %c0_137, %c0_138] : memref<7x3x128x128xbf16, #tpu.memory_space<vmem>>, vector<1x1x128x128xbf16>
    %157 = vector.shape_cast %156 : vector<1x1x128x128xbf16> to vector<128x128xbf16>
    %cst_139 = arith.constant dense<0.000000e+00> : vector<64x128xf32>
    %158 = tpu.matmul %155, %157, %cst_139 {dimension_numbers = #tpu.dot_dimension_numbers<[1], [0], [0], [1], [0, 0, 1, 1], [], []>} : vector<64x128xbf16>, vector<128x128xbf16>, vector<64x128xf32> -> vector<64x128xf32>
    %c0_140 = arith.constant 0 : index
    %c1_141 = arith.constant 1 : index
    %c0_142 = arith.constant 0 : index
    %159 = vector.load %arg9[%c0_140, %c1_141, %c0_142] : memref<2x34x128xf32, #tpu.memory_space<vmem>>, vector<2x32x128xf32>
    %160 = vector.shape_cast %159 : vector<2x32x128xf32> to vector<64x128xf32>
    %161 = arith.truncf %160 : vector<64x128xf32> to vector<64x128xbf16>
    %c2_143 = arith.constant 2 : index
    %c1_144 = arith.constant 1 : index
    %c0_145 = arith.constant 0 : index
    %c0_146 = arith.constant 0 : index
    %162 = vector.load %arg1[%c2_143, %c1_144, %c0_145, %c0_146] : memref<7x3x128x128xbf16, #tpu.memory_space<vmem>>, vector<1x1x128x128xbf16>
    %163 = vector.shape_cast %162 : vector<1x1x128x128xbf16> to vector<128x128xbf16>
    %cst_147 = arith.constant dense<0.000000e+00> : vector<64x128xf32>
    %164 = tpu.matmul %161, %163, %cst_147 {dimension_numbers = #tpu.dot_dimension_numbers<[1], [0], [0], [1], [0, 0, 1, 1], [], []>} : vector<64x128xbf16>, vector<128x128xbf16>, vector<64x128xf32> -> vector<64x128xf32>
    %165 = arith.addf %158, %164 : vector<64x128xf32>
    %c0_148 = arith.constant 0 : index
    %c2_149 = arith.constant 2 : index
    %c0_150 = arith.constant 0 : index
    %166 = vector.load %arg9[%c0_148, %c2_149, %c0_150] : memref<2x34x128xf32, #tpu.memory_space<vmem>>, vector<2x32x128xf32>
    %167 = vector.shape_cast %166 : vector<2x32x128xf32> to vector<64x128xf32>
    %168 = arith.truncf %167 : vector<64x128xf32> to vector<64x128xbf16>
    %c2_151 = arith.constant 2 : index
    %c2_152 = arith.constant 2 : index
    %c0_153 = arith.constant 0 : index
    %c0_154 = arith.constant 0 : index
    %169 = vector.load %arg1[%c2_151, %c2_152, %c0_153, %c0_154] : memref<7x3x128x128xbf16, #tpu.memory_space<vmem>>, vector<1x1x128x128xbf16>
    %170 = vector.shape_cast %169 : vector<1x1x128x128xbf16> to vector<128x128xbf16>
    %cst_155 = arith.constant dense<0.000000e+00> : vector<64x128xf32>
    %171 = tpu.matmul %168, %170, %cst_155 {dimension_numbers = #tpu.dot_dimension_numbers<[1], [0], [0], [1], [0, 0, 1, 1], [], []>} : vector<64x128xbf16>, vector<128x128xbf16>, vector<64x128xf32> -> vector<64x128xf32>
    %172 = arith.addf %165, %171 : vector<64x128xf32>
    %cst_156 = arith.constant dense<0.000000e+00> : vector<128xf32>
    %173 = vector.multi_reduction <add>, %172, %cst_156 [0] : vector<64x128xf32> to vector<128xf32>
    %174 = vector.shape_cast %173 : vector<128xf32> to vector<1x128xf32>
    %c4_i32_157 = arith.constant 4 : i32
    %175 = tpu.dynamic_rotate %174 by %c4_i32_157 dim 1 : vector<1x128xf32>, i32 -> vector<1x128xf32>
    %176 = arith.addf %174, %175 : vector<1x128xf32>
    %c8_i32_158 = arith.constant 8 : i32
    %177 = tpu.dynamic_rotate %176 by %c8_i32_158 dim 1 : vector<1x128xf32>, i32 -> vector<1x128xf32>
    %178 = arith.addf %176, %177 : vector<1x128xf32>
    %c16_i32_159 = arith.constant 16 : i32
    %179 = tpu.dynamic_rotate %178 by %c16_i32_159 dim 1 : vector<1x128xf32>, i32 -> vector<1x128xf32>
    %180 = arith.addf %178, %179 : vector<1x128xf32>
    %c32_i32_160 = arith.constant 32 : i32
    %181 = tpu.dynamic_rotate %180 by %c32_i32_160 dim 1 : vector<1x128xf32>, i32 -> vector<1x128xf32>
    %182 = arith.addf %180, %181 : vector<1x128xf32>
    %c64_i32_161 = arith.constant 64 : i32
    %183 = tpu.dynamic_rotate %182 by %c64_i32_161 dim 1 : vector<1x128xf32>, i32 -> vector<1x128xf32>
    %184 = arith.addf %182, %183 : vector<1x128xf32>
    %cst_162 = arith.constant 4.8828125E-4 : f32
    %185 = vector.broadcast %cst_162 : f32 to vector<1x128xf32>
    %186 = arith.mulf %184, %185 : vector<1x128xf32>
    %187 = vector.broadcast %186 : vector<1x128xf32> to vector<64x128xf32>
    %188 = arith.subf %172, %187 : vector<64x128xf32>
    %189 = arith.mulf %188, %188 : vector<64x128xf32>
    %cst_163 = arith.constant dense<0.000000e+00> : vector<128xf32>
    %190 = vector.multi_reduction <add>, %189, %cst_163 [0] : vector<64x128xf32> to vector<128xf32>
    %191 = vector.shape_cast %190 : vector<128xf32> to vector<1x128xf32>
    %c4_i32_164 = arith.constant 4 : i32
    %192 = tpu.dynamic_rotate %191 by %c4_i32_164 dim 1 : vector<1x128xf32>, i32 -> vector<1x128xf32>
    %193 = arith.addf %191, %192 : vector<1x128xf32>
    %c8_i32_165 = arith.constant 8 : i32
    %194 = tpu.dynamic_rotate %193 by %c8_i32_165 dim 1 : vector<1x128xf32>, i32 -> vector<1x128xf32>
    %195 = arith.addf %193, %194 : vector<1x128xf32>
    %c16_i32_166 = arith.constant 16 : i32
    %196 = tpu.dynamic_rotate %195 by %c16_i32_166 dim 1 : vector<1x128xf32>, i32 -> vector<1x128xf32>
    %197 = arith.addf %195, %196 : vector<1x128xf32>
    %c32_i32_167 = arith.constant 32 : i32
    %198 = tpu.dynamic_rotate %197 by %c32_i32_167 dim 1 : vector<1x128xf32>, i32 -> vector<1x128xf32>
    %199 = arith.addf %197, %198 : vector<1x128xf32>
    %c64_i32_168 = arith.constant 64 : i32
    %200 = tpu.dynamic_rotate %199 by %c64_i32_168 dim 1 : vector<1x128xf32>, i32 -> vector<1x128xf32>
    %201 = arith.addf %199, %200 : vector<1x128xf32>
    %cst_169 = arith.constant 4.8828125E-4 : f32
    %202 = vector.broadcast %cst_169 : f32 to vector<1x128xf32>
    %203 = arith.mulf %201, %202 : vector<1x128xf32>
    %cst_170 = arith.constant 9.99999974E-6 : f32
    %204 = vector.broadcast %cst_170 : f32 to vector<1x128xf32>
    %205 = arith.addf %203, %204 : vector<1x128xf32>
    %206 = math.rsqrt %205 : vector<1x128xf32>
    %207 = arith.mulf %150, %206 : vector<1x128xf32>
    %208 = vector.broadcast %207 : vector<1x128xf32> to vector<64x128xf32>
    %209 = arith.mulf %188, %208 : vector<64x128xf32>
    %210 = vector.broadcast %152 : vector<1x128xf32> to vector<64x128xf32>
    %211 = arith.addf %209, %210 : vector<64x128xf32>
    %212 = arith.addf %211, %148 : vector<64x128xf32>
    %cst_171 = arith.constant 0.000000e+00 : f32
    %213 = vector.broadcast %cst_171 : f32 to vector<64x128xf32>
    %214 = arith.maximumf %212, %213 : vector<64x128xf32>
    %215 = vector.shape_cast %214 : vector<64x128xf32> to vector<2x32x128xf32>
    %c0_172 = arith.constant 0 : index
    %c1_173 = arith.constant 1 : index
    %c0_174 = arith.constant 0 : index
    %216 = vector.load %arg10[%c0_172, %c1_173, %c0_174] : memref<2x34x128xf32, #tpu.memory_space<vmem>>, vector<2x32x128xf32>
    tpu.vector_store %arg10[%c0_172, %c1_173, %c0_174], %215 {strides = array<i32>} : memref<2x34x128xf32, #tpu.memory_space<vmem>>, vector<2x32x128xf32>,
    %c3 = arith.constant 3 : index
    %c0_175 = arith.constant 0 : index
    %c0_176 = arith.constant 0 : index
    %217 = vector.load %arg3[%c3, %c0_175, %c0_176] : memref<9x1x128xf32, #tpu.memory_space<vmem>>, vector<1x1x128xf32>
    %218 = vector.shape_cast %217 : vector<1x1x128xf32> to vector<1x128xf32>
    %c3_177 = arith.constant 3 : index
    %c0_178 = arith.constant 0 : index
    %c0_179 = arith.constant 0 : index
    %219 = vector.load %arg4[%c3_177, %c0_178, %c0_179] : memref<9x1x128xf32, #tpu.memory_space<vmem>>, vector<1x1x128xf32>
    %220 = vector.shape_cast %219 : vector<1x1x128xf32> to vector<1x128xf32>
    %c0_180 = arith.constant 0 : index
    %c0_181 = arith.constant 0 : index
    %c0_182 = arith.constant 0 : index
    %221 = tpu.strided_load %arg10[%c0_180, %c0_181, %c0_182] {strides = array<i32: 1, 2, 1>} : memref<2x34x128xf32, #tpu.memory_space<vmem>>, vector<2x16x128xf32>
    %222 = vector.shape_cast %221 : vector<2x16x128xf32> to vector<32x128xf32>
    %223 = arith.truncf %222 : vector<32x128xf32> to vector<32x128xbf16>
    %c3_183 = arith.constant 3 : index
    %c0_184 = arith.constant 0 : index
    %c0_185 = arith.constant 0 : index
    %c0_186 = arith.constant 0 : index
    %224 = vector.load %arg1[%c3_183, %c0_184, %c0_185, %c0_186] : memref<7x3x128x128xbf16, #tpu.memory_space<vmem>>, vector<1x1x128x128xbf16>
    %225 = vector.shape_cast %224 : vector<1x1x128x128xbf16> to vector<128x128xbf16>
    %cst_187 = arith.constant dense<0.000000e+00> : vector<32x128xf32>
    %226 = tpu.matmul %223, %225, %cst_187 {dimension_numbers = #tpu.dot_dimension_numbers<[1], [0], [0], [1], [0, 0, 1, 1], [], []>} : vector<32x128xbf16>, vector<128x128xbf16>, vector<32x128xf32> -> vector<32x128xf32>
    %c0_188 = arith.constant 0 : index
    %c1_189 = arith.constant 1 : index
    %c0_190 = arith.constant 0 : index
    %227 = tpu.strided_load %arg10[%c0_188, %c1_189, %c0_190] {strides = array<i32: 1, 2, 1>} : memref<2x34x128xf32, #tpu.memory_space<vmem>>, vector<2x16x128xf32>
    %228 = vector.shape_cast %227 : vector<2x16x128xf32> to vector<32x128xf32>
    %229 = arith.truncf %228 : vector<32x128xf32> to vector<32x128xbf16>
    %c3_191 = arith.constant 3 : index
    %c1_192 = arith.constant 1 : index
    %c0_193 = arith.constant 0 : index
    %c0_194 = arith.constant 0 : index
    %230 = vector.load %arg1[%c3_191, %c1_192, %c0_193, %c0_194] : memref<7x3x128x128xbf16, #tpu.memory_space<vmem>>, vector<1x1x128x128xbf16>
    %231 = vector.shape_cast %230 : vector<1x1x128x128xbf16> to vector<128x128xbf16>
    %cst_195 = arith.constant dense<0.000000e+00> : vector<32x128xf32>
    %232 = tpu.matmul %229, %231, %cst_195 {dimension_numbers = #tpu.dot_dimension_numbers<[1], [0], [0], [1], [0, 0, 1, 1], [], []>} : vector<32x128xbf16>, vector<128x128xbf16>, vector<32x128xf32> -> vector<32x128xf32>
    %233 = arith.addf %226, %232 : vector<32x128xf32>
    %c0_196 = arith.constant 0 : index
    %c2_197 = arith.constant 2 : index
    %c0_198 = arith.constant 0 : index
    %234 = tpu.strided_load %arg10[%c0_196, %c2_197, %c0_198] {strides = array<i32: 1, 2, 1>} : memref<2x34x128xf32, #tpu.memory_space<vmem>>, vector<2x16x128xf32>
    %235 = vector.shape_cast %234 : vector<2x16x128xf32> to vector<32x128xf32>
    %236 = arith.truncf %235 : vector<32x128xf32> to vector<32x128xbf16>
    %c3_199 = arith.constant 3 : index
    %c2_200 = arith.constant 2 : index
    %c0_201 = arith.constant 0 : index
    %c0_202 = arith.constant 0 : index
    %237 = vector.load %arg1[%c3_199, %c2_200, %c0_201, %c0_202] : memref<7x3x128x128xbf16, #tpu.memory_space<vmem>>, vector<1x1x128x128xbf16>
    %238 = vector.shape_cast %237 : vector<1x1x128x128xbf16> to vector<128x128xbf16>
    %cst_203 = arith.constant dense<0.000000e+00> : vector<32x128xf32>
    %239 = tpu.matmul %236, %238, %cst_203 {dimension_numbers = #tpu.dot_dimension_numbers<[1], [0], [0], [1], [0, 0, 1, 1], [], []>} : vector<32x128xbf16>, vector<128x128xbf16>, vector<32x128xf32> -> vector<32x128xf32>
    %240 = arith.addf %233, %239 : vector<32x128xf32>
    %cst_204 = arith.constant dense<0.000000e+00> : vector<128xf32>
    %241 = vector.multi_reduction <add>, %240, %cst_204 [0] : vector<32x128xf32> to vector<128xf32>
    %242 = vector.shape_cast %241 : vector<128xf32> to vector<1x128xf32>
    %c8_i32_205 = arith.constant 8 : i32
    %243 = tpu.dynamic_rotate %242 by %c8_i32_205 dim 1 : vector<1x128xf32>, i32 -> vector<1x128xf32>
    %244 = arith.addf %242, %243 : vector<1x128xf32>
    %c16_i32_206 = arith.constant 16 : i32
    %245 = tpu.dynamic_rotate %244 by %c16_i32_206 dim 1 : vector<1x128xf32>, i32 -> vector<1x128xf32>
    %246 = arith.addf %244, %245 : vector<1x128xf32>
    %c32_i32_207 = arith.constant 32 : i32
    %247 = tpu.dynamic_rotate %246 by %c32_i32_207 dim 1 : vector<1x128xf32>, i32 -> vector<1x128xf32>
    %248 = arith.addf %246, %247 : vector<1x128xf32>
    %c64_i32_208 = arith.constant 64 : i32
    %249 = tpu.dynamic_rotate %248 by %c64_i32_208 dim 1 : vector<1x128xf32>, i32 -> vector<1x128xf32>
    %250 = arith.addf %248, %249 : vector<1x128xf32>
    %cst_209 = arith.constant 0.001953125 : f32
    %251 = vector.broadcast %cst_209 : f32 to vector<1x128xf32>
    %252 = arith.mulf %250, %251 : vector<1x128xf32>
    %253 = vector.broadcast %252 : vector<1x128xf32> to vector<32x128xf32>
    %254 = arith.subf %240, %253 : vector<32x128xf32>
    %255 = arith.mulf %254, %254 : vector<32x128xf32>
    %cst_210 = arith.constant dense<0.000000e+00> : vector<128xf32>
    %256 = vector.multi_reduction <add>, %255, %cst_210 [0] : vector<32x128xf32> to vector<128xf32>
    %257 = vector.shape_cast %256 : vector<128xf32> to vector<1x128xf32>
    %c8_i32_211 = arith.constant 8 : i32
    %258 = tpu.dynamic_rotate %257 by %c8_i32_211 dim 1 : vector<1x128xf32>, i32 -> vector<1x128xf32>
    %259 = arith.addf %257, %258 : vector<1x128xf32>
    %c16_i32_212 = arith.constant 16 : i32
    %260 = tpu.dynamic_rotate %259 by %c16_i32_212 dim 1 : vector<1x128xf32>, i32 -> vector<1x128xf32>
    %261 = arith.addf %259, %260 : vector<1x128xf32>
    %c32_i32_213 = arith.constant 32 : i32
    %262 = tpu.dynamic_rotate %261 by %c32_i32_213 dim 1 : vector<1x128xf32>, i32 -> vector<1x128xf32>
    %263 = arith.addf %261, %262 : vector<1x128xf32>
    %c64_i32_214 = arith.constant 64 : i32
    %264 = tpu.dynamic_rotate %263 by %c64_i32_214 dim 1 : vector<1x128xf32>, i32 -> vector<1x128xf32>
    %265 = arith.addf %263, %264 : vector<1x128xf32>
    %cst_215 = arith.constant 0.001953125 : f32
    %266 = vector.broadcast %cst_215 : f32 to vector<1x128xf32>
    %267 = arith.mulf %265, %266 : vector<1x128xf32>
    %cst_216 = arith.constant 9.99999974E-6 : f32
    %268 = vector.broadcast %cst_216 : f32 to vector<1x128xf32>
    %269 = arith.addf %267, %268 : vector<1x128xf32>
    %270 = math.rsqrt %269 : vector<1x128xf32>
    %271 = arith.mulf %218, %270 : vector<1x128xf32>
    %272 = vector.broadcast %271 : vector<1x128xf32> to vector<32x128xf32>
    %273 = arith.mulf %254, %272 : vector<32x128xf32>
    %274 = vector.broadcast %220 : vector<1x128xf32> to vector<32x128xf32>
    %275 = arith.addf %273, %274 : vector<32x128xf32>
    %cst_217 = arith.constant 0.000000e+00 : f32
    %276 = vector.broadcast %cst_217 : f32 to vector<32x128xf32>
    %277 = arith.maximumf %275, %276 : vector<32x128xf32>
    %278 = vector.shape_cast %277 : vector<32x128xf32> to vector<2x16x128xf32>
    %c0_218 = arith.constant 0 : index
    %c1_219 = arith.constant 1 : index
    %c0_220 = arith.constant 0 : index
    %279 = vector.load %arg11[%c0_218, %c1_219, %c0_220] : memref<2x18x128xf32, #tpu.memory_space<vmem>>, vector<2x16x128xf32>
    tpu.vector_store %arg11[%c0_218, %c1_219, %c0_220], %278 {strides = array<i32>} : memref<2x18x128xf32, #tpu.memory_space<vmem>>, vector<2x16x128xf32>,
    %c0_221 = arith.constant 0 : index
    %c0_222 = arith.constant 0 : index
    %c0_223 = arith.constant 0 : index
    %280 = vector.load %arg2[%c0_221, %c0_222, %c0_223] : memref<2x128x128xbf16, #tpu.memory_space<vmem>>, vector<1x128x128xbf16>
    %281 = vector.shape_cast %280 : vector<1x128x128xbf16> to vector<128x128xbf16>
    %c5 = arith.constant 5 : index
    %c0_224 = arith.constant 0 : index
    %c0_225 = arith.constant 0 : index
    %282 = vector.load %arg3[%c5, %c0_224, %c0_225] : memref<9x1x128xf32, #tpu.memory_space<vmem>>, vector<1x1x128xf32>
    %283 = vector.shape_cast %282 : vector<1x1x128xf32> to vector<1x128xf32>
    %c5_226 = arith.constant 5 : index
    %c0_227 = arith.constant 0 : index
    %c0_228 = arith.constant 0 : index
    %284 = vector.load %arg4[%c5_226, %c0_227, %c0_228] : memref<9x1x128xf32, #tpu.memory_space<vmem>>, vector<1x1x128xf32>
    %285 = vector.shape_cast %284 : vector<1x1x128xf32> to vector<1x128xf32>
    %c0_229 = arith.constant 0 : index
    %c1_230 = arith.constant 1 : index
    %c0_231 = arith.constant 0 : index
    %286 = tpu.strided_load %arg10[%c0_229, %c1_230, %c0_231] {strides = array<i32: 1, 2, 1>} : memref<2x34x128xf32, #tpu.memory_space<vmem>>, vector<2x16x128xf32>
    %287 = vector.shape_cast %286 : vector<2x16x128xf32> to vector<32x128xf32>
    %288 = arith.truncf %287 : vector<32x128xf32> to vector<32x128xbf16>
    %cst_232 = arith.constant dense<0.000000e+00> : vector<32x128xf32>
    %289 = tpu.matmul %288, %281, %cst_232 {dimension_numbers = #tpu.dot_dimension_numbers<[1], [0], [0], [1], [0, 0, 1, 1], [], []>} : vector<32x128xbf16>, vector<128x128xbf16>, vector<32x128xf32> -> vector<32x128xf32>
    %cst_233 = arith.constant dense<0.000000e+00> : vector<128xf32>
    %290 = vector.multi_reduction <add>, %289, %cst_233 [0] : vector<32x128xf32> to vector<128xf32>
    %291 = vector.shape_cast %290 : vector<128xf32> to vector<1x128xf32>
    %c8_i32_234 = arith.constant 8 : i32
    %292 = tpu.dynamic_rotate %291 by %c8_i32_234 dim 1 : vector<1x128xf32>, i32 -> vector<1x128xf32>
    %293 = arith.addf %291, %292 : vector<1x128xf32>
    %c16_i32_235 = arith.constant 16 : i32
    %294 = tpu.dynamic_rotate %293 by %c16_i32_235 dim 1 : vector<1x128xf32>, i32 -> vector<1x128xf32>
    %295 = arith.addf %293, %294 : vector<1x128xf32>
    %c32_i32_236 = arith.constant 32 : i32
    %296 = tpu.dynamic_rotate %295 by %c32_i32_236 dim 1 : vector<1x128xf32>, i32 -> vector<1x128xf32>
    %297 = arith.addf %295, %296 : vector<1x128xf32>
    %c64_i32_237 = arith.constant 64 : i32
    %298 = tpu.dynamic_rotate %297 by %c64_i32_237 dim 1 : vector<1x128xf32>, i32 -> vector<1x128xf32>
    %299 = arith.addf %297, %298 : vector<1x128xf32>
    %cst_238 = arith.constant 0.001953125 : f32
    %300 = vector.broadcast %cst_238 : f32 to vector<1x128xf32>
    %301 = arith.mulf %299, %300 : vector<1x128xf32>
    %302 = vector.broadcast %301 : vector<1x128xf32> to vector<32x128xf32>
    %303 = arith.subf %289, %302 : vector<32x128xf32>
    %304 = arith.mulf %303, %303 : vector<32x128xf32>
    %cst_239 = arith.constant dense<0.000000e+00> : vector<128xf32>
    %305 = vector.multi_reduction <add>, %304, %cst_239 [0] : vector<32x128xf32> to vector<128xf32>
    %306 = vector.shape_cast %305 : vector<128xf32> to vector<1x128xf32>
    %c8_i32_240 = arith.constant 8 : i32
    %307 = tpu.dynamic_rotate %306 by %c8_i32_240 dim 1 : vector<1x128xf32>, i32 -> vector<1x128xf32>
    %308 = arith.addf %306, %307 : vector<1x128xf32>
    %c16_i32_241 = arith.constant 16 : i32
    %309 = tpu.dynamic_rotate %308 by %c16_i32_241 dim 1 : vector<1x128xf32>, i32 -> vector<1x128xf32>
    %310 = arith.addf %308, %309 : vector<1x128xf32>
    %c32_i32_242 = arith.constant 32 : i32
    %311 = tpu.dynamic_rotate %310 by %c32_i32_242 dim 1 : vector<1x128xf32>, i32 -> vector<1x128xf32>
    %312 = arith.addf %310, %311 : vector<1x128xf32>
    %c64_i32_243 = arith.constant 64 : i32
    %313 = tpu.dynamic_rotate %312 by %c64_i32_243 dim 1 : vector<1x128xf32>, i32 -> vector<1x128xf32>
    %314 = arith.addf %312, %313 : vector<1x128xf32>
    %cst_244 = arith.constant 0.001953125 : f32
    %315 = vector.broadcast %cst_244 : f32 to vector<1x128xf32>
    %316 = arith.mulf %314, %315 : vector<1x128xf32>
    %cst_245 = arith.constant 9.99999974E-6 : f32
    %317 = vector.broadcast %cst_245 : f32 to vector<1x128xf32>
    %318 = arith.addf %316, %317 : vector<1x128xf32>
    %319 = math.rsqrt %318 : vector<1x128xf32>
    %320 = arith.mulf %283, %319 : vector<1x128xf32>
    %321 = vector.broadcast %320 : vector<1x128xf32> to vector<32x128xf32>
    %322 = arith.mulf %303, %321 : vector<32x128xf32>
    %323 = vector.broadcast %285 : vector<1x128xf32> to vector<32x128xf32>
    %324 = arith.addf %322, %323 : vector<32x128xf32>
    %c4 = arith.constant 4 : index
    %c0_246 = arith.constant 0 : index
    %c0_247 = arith.constant 0 : index
    %325 = vector.load %arg3[%c4, %c0_246, %c0_247] : memref<9x1x128xf32, #tpu.memory_space<vmem>>, vector<1x1x128xf32>
    %326 = vector.shape_cast %325 : vector<1x1x128xf32> to vector<1x128xf32>
    %c4_248 = arith.constant 4 : index
    %c0_249 = arith.constant 0 : index
    %c0_250 = arith.constant 0 : index
    %327 = vector.load %arg4[%c4_248, %c0_249, %c0_250] : memref<9x1x128xf32, #tpu.memory_space<vmem>>, vector<1x1x128xf32>
    %328 = vector.shape_cast %327 : vector<1x1x128xf32> to vector<1x128xf32>
    %c0_251 = arith.constant 0 : index
    %c0_252 = arith.constant 0 : index
    %c0_253 = arith.constant 0 : index
    %329 = vector.load %arg11[%c0_251, %c0_252, %c0_253] : memref<2x18x128xf32, #tpu.memory_space<vmem>>, vector<2x16x128xf32>
    %330 = vector.shape_cast %329 : vector<2x16x128xf32> to vector<32x128xf32>
    %331 = arith.truncf %330 : vector<32x128xf32> to vector<32x128xbf16>
    %c4_254 = arith.constant 4 : index
    %c0_255 = arith.constant 0 : index
    %c0_256 = arith.constant 0 : index
    %c0_257 = arith.constant 0 : index
    %332 = vector.load %arg1[%c4_254, %c0_255, %c0_256, %c0_257] : memref<7x3x128x128xbf16, #tpu.memory_space<vmem>>, vector<1x1x128x128xbf16>
    %333 = vector.shape_cast %332 : vector<1x1x128x128xbf16> to vector<128x128xbf16>
    %cst_258 = arith.constant dense<0.000000e+00> : vector<32x128xf32>
    %334 = tpu.matmul %331, %333, %cst_258 {dimension_numbers = #tpu.dot_dimension_numbers<[1], [0], [0], [1], [0, 0, 1, 1], [], []>} : vector<32x128xbf16>, vector<128x128xbf16>, vector<32x128xf32> -> vector<32x128xf32>
    %c0_259 = arith.constant 0 : index
    %c1_260 = arith.constant 1 : index
    %c0_261 = arith.constant 0 : index
    %335 = vector.load %arg11[%c0_259, %c1_260, %c0_261] : memref<2x18x128xf32, #tpu.memory_space<vmem>>, vector<2x16x128xf32>
    %336 = vector.shape_cast %335 : vector<2x16x128xf32> to vector<32x128xf32>
    %337 = arith.truncf %336 : vector<32x128xf32> to vector<32x128xbf16>
    %c4_262 = arith.constant 4 : index
    %c1_263 = arith.constant 1 : index
    %c0_264 = arith.constant 0 : index
    %c0_265 = arith.constant 0 : index
    %338 = vector.load %arg1[%c4_262, %c1_263, %c0_264, %c0_265] : memref<7x3x128x128xbf16, #tpu.memory_space<vmem>>, vector<1x1x128x128xbf16>
    %339 = vector.shape_cast %338 : vector<1x1x128x128xbf16> to vector<128x128xbf16>
    %cst_266 = arith.constant dense<0.000000e+00> : vector<32x128xf32>
    %340 = tpu.matmul %337, %339, %cst_266 {dimension_numbers = #tpu.dot_dimension_numbers<[1], [0], [0], [1], [0, 0, 1, 1], [], []>} : vector<32x128xbf16>, vector<128x128xbf16>, vector<32x128xf32> -> vector<32x128xf32>
    %341 = arith.addf %334, %340 : vector<32x128xf32>
    %c0_267 = arith.constant 0 : index
    %c2_268 = arith.constant 2 : index
    %c0_269 = arith.constant 0 : index
    %342 = vector.load %arg11[%c0_267, %c2_268, %c0_269] : memref<2x18x128xf32, #tpu.memory_space<vmem>>, vector<2x16x128xf32>
    %343 = vector.shape_cast %342 : vector<2x16x128xf32> to vector<32x128xf32>
    %344 = arith.truncf %343 : vector<32x128xf32> to vector<32x128xbf16>
    %c4_270 = arith.constant 4 : index
    %c2_271 = arith.constant 2 : index
    %c0_272 = arith.constant 0 : index
    %c0_273 = arith.constant 0 : index
    %345 = vector.load %arg1[%c4_270, %c2_271, %c0_272, %c0_273] : memref<7x3x128x128xbf16, #tpu.memory_space<vmem>>, vector<1x1x128x128xbf16>
    %346 = vector.shape_cast %345 : vector<1x1x128x128xbf16> to vector<128x128xbf16>
    %cst_274 = arith.constant dense<0.000000e+00> : vector<32x128xf32>
    %347 = tpu.matmul %344, %346, %cst_274 {dimension_numbers = #tpu.dot_dimension_numbers<[1], [0], [0], [1], [0, 0, 1, 1], [], []>} : vector<32x128xbf16>, vector<128x128xbf16>, vector<32x128xf32> -> vector<32x128xf32>
    %348 = arith.addf %341, %347 : vector<32x128xf32>
    %cst_275 = arith.constant dense<0.000000e+00> : vector<128xf32>
    %349 = vector.multi_reduction <add>, %348, %cst_275 [0] : vector<32x128xf32> to vector<128xf32>
    %350 = vector.shape_cast %349 : vector<128xf32> to vector<1x128xf32>
    %c8_i32_276 = arith.constant 8 : i32
    %351 = tpu.dynamic_rotate %350 by %c8_i32_276 dim 1 : vector<1x128xf32>, i32 -> vector<1x128xf32>
    %352 = arith.addf %350, %351 : vector<1x128xf32>
    %c16_i32_277 = arith.constant 16 : i32
    %353 = tpu.dynamic_rotate %352 by %c16_i32_277 dim 1 : vector<1x128xf32>, i32 -> vector<1x128xf32>
    %354 = arith.addf %352, %353 : vector<1x128xf32>
    %c32_i32_278 = arith.constant 32 : i32
    %355 = tpu.dynamic_rotate %354 by %c32_i32_278 dim 1 : vector<1x128xf32>, i32 -> vector<1x128xf32>
    %356 = arith.addf %354, %355 : vector<1x128xf32>
    %c64_i32_279 = arith.constant 64 : i32
    %357 = tpu.dynamic_rotate %356 by %c64_i32_279 dim 1 : vector<1x128xf32>, i32 -> vector<1x128xf32>
    %358 = arith.addf %356, %357 : vector<1x128xf32>
    %cst_280 = arith.constant 0.001953125 : f32
    %359 = vector.broadcast %cst_280 : f32 to vector<1x128xf32>
    %360 = arith.mulf %358, %359 : vector<1x128xf32>
    %361 = vector.broadcast %360 : vector<1x128xf32> to vector<32x128xf32>
    %362 = arith.subf %348, %361 : vector<32x128xf32>
    %363 = arith.mulf %362, %362 : vector<32x128xf32>
    %cst_281 = arith.constant dense<0.000000e+00> : vector<128xf32>
    %364 = vector.multi_reduction <add>, %363, %cst_281 [0] : vector<32x128xf32> to vector<128xf32>
    %365 = vector.shape_cast %364 : vector<128xf32> to vector<1x128xf32>
    %c8_i32_282 = arith.constant 8 : i32
    %366 = tpu.dynamic_rotate %365 by %c8_i32_282 dim 1 : vector<1x128xf32>, i32 -> vector<1x128xf32>
    %367 = arith.addf %365, %366 : vector<1x128xf32>
    %c16_i32_283 = arith.constant 16 : i32
    %368 = tpu.dynamic_rotate %367 by %c16_i32_283 dim 1 : vector<1x128xf32>, i32 -> vector<1x128xf32>
    %369 = arith.addf %367, %368 : vector<1x128xf32>
    %c32_i32_284 = arith.constant 32 : i32
    %370 = tpu.dynamic_rotate %369 by %c32_i32_284 dim 1 : vector<1x128xf32>, i32 -> vector<1x128xf32>
    %371 = arith.addf %369, %370 : vector<1x128xf32>
    %c64_i32_285 = arith.constant 64 : i32
    %372 = tpu.dynamic_rotate %371 by %c64_i32_285 dim 1 : vector<1x128xf32>, i32 -> vector<1x128xf32>
    %373 = arith.addf %371, %372 : vector<1x128xf32>
    %cst_286 = arith.constant 0.001953125 : f32
    %374 = vector.broadcast %cst_286 : f32 to vector<1x128xf32>
    %375 = arith.mulf %373, %374 : vector<1x128xf32>
    %cst_287 = arith.constant 9.99999974E-6 : f32
    %376 = vector.broadcast %cst_287 : f32 to vector<1x128xf32>
    %377 = arith.addf %375, %376 : vector<1x128xf32>
    %378 = math.rsqrt %377 : vector<1x128xf32>
    %379 = arith.mulf %326, %378 : vector<1x128xf32>
    %380 = vector.broadcast %379 : vector<1x128xf32> to vector<32x128xf32>
    %381 = arith.mulf %362, %380 : vector<32x128xf32>
    %382 = vector.broadcast %328 : vector<1x128xf32> to vector<32x128xf32>
    %383 = arith.addf %381, %382 : vector<32x128xf32>
    %384 = arith.addf %383, %324 : vector<32x128xf32>
    %cst_288 = arith.constant 0.000000e+00 : f32
    %385 = vector.broadcast %cst_288 : f32 to vector<32x128xf32>
    %386 = arith.maximumf %384, %385 : vector<32x128xf32>
    %387 = vector.shape_cast %386 : vector<32x128xf32> to vector<2x16x128xf32>
    %c0_289 = arith.constant 0 : index
    %c1_290 = arith.constant 1 : index
    %c0_291 = arith.constant 0 : index
    %388 = vector.load %arg12[%c0_289, %c1_290, %c0_291] : memref<2x18x128xf32, #tpu.memory_space<vmem>>, vector<2x16x128xf32>
    tpu.vector_store %arg12[%c0_289, %c1_290, %c0_291], %387 {strides = array<i32>} : memref<2x18x128xf32, #tpu.memory_space<vmem>>, vector<2x16x128xf32>,
    %c6 = arith.constant 6 : index
    %c0_292 = arith.constant 0 : index
    %c0_293 = arith.constant 0 : index
    %389 = vector.load %arg3[%c6, %c0_292, %c0_293] : memref<9x1x128xf32, #tpu.memory_space<vmem>>, vector<1x1x128xf32>
    %390 = vector.shape_cast %389 : vector<1x1x128xf32> to vector<1x128xf32>
    %c6_294 = arith.constant 6 : index
    %c0_295 = arith.constant 0 : index
    %c0_296 = arith.constant 0 : index
    %391 = vector.load %arg4[%c6_294, %c0_295, %c0_296] : memref<9x1x128xf32, #tpu.memory_space<vmem>>, vector<1x1x128xf32>
    %392 = vector.shape_cast %391 : vector<1x1x128xf32> to vector<1x128xf32>
    %c0_297 = arith.constant 0 : index
    %c0_298 = arith.constant 0 : index
    %c0_299 = arith.constant 0 : index
    %393 = tpu.strided_load %arg12[%c0_297, %c0_298, %c0_299] {strides = array<i32: 1, 2, 1>} : memref<2x18x128xf32, #tpu.memory_space<vmem>>, vector<2x8x128xf32>
    %394 = vector.shape_cast %393 : vector<2x8x128xf32> to vector<16x128xf32>
    %395 = arith.truncf %394 : vector<16x128xf32> to vector<16x128xbf16>
    %c5_300 = arith.constant 5 : index
    %c0_301 = arith.constant 0 : index
    %c0_302 = arith.constant 0 : index
    %c0_303 = arith.constant 0 : index
    %396 = vector.load %arg1[%c5_300, %c0_301, %c0_302, %c0_303] : memref<7x3x128x128xbf16, #tpu.memory_space<vmem>>, vector<1x1x128x128xbf16>
    %397 = vector.shape_cast %396 : vector<1x1x128x128xbf16> to vector<128x128xbf16>
    %cst_304 = arith.constant dense<0.000000e+00> : vector<16x128xf32>
    %398 = tpu.matmul %395, %397, %cst_304 {dimension_numbers = #tpu.dot_dimension_numbers<[1], [0], [0], [1], [0, 0, 1, 1], [], []>} : vector<16x128xbf16>, vector<128x128xbf16>, vector<16x128xf32> -> vector<16x128xf32>
    %c0_305 = arith.constant 0 : index
    %c1_306 = arith.constant 1 : index
    %c0_307 = arith.constant 0 : index
    %399 = tpu.strided_load %arg12[%c0_305, %c1_306, %c0_307] {strides = array<i32: 1, 2, 1>} : memref<2x18x128xf32, #tpu.memory_space<vmem>>, vector<2x8x128xf32>
    %400 = vector.shape_cast %399 : vector<2x8x128xf32> to vector<16x128xf32>
    %401 = arith.truncf %400 : vector<16x128xf32> to vector<16x128xbf16>
    %c5_308 = arith.constant 5 : index
    %c1_309 = arith.constant 1 : index
    %c0_310 = arith.constant 0 : index
    %c0_311 = arith.constant 0 : index
    %402 = vector.load %arg1[%c5_308, %c1_309, %c0_310, %c0_311] : memref<7x3x128x128xbf16, #tpu.memory_space<vmem>>, vector<1x1x128x128xbf16>
    %403 = vector.shape_cast %402 : vector<1x1x128x128xbf16> to vector<128x128xbf16>
    %cst_312 = arith.constant dense<0.000000e+00> : vector<16x128xf32>
    %404 = tpu.matmul %401, %403, %cst_312 {dimension_numbers = #tpu.dot_dimension_numbers<[1], [0], [0], [1], [0, 0, 1, 1], [], []>} : vector<16x128xbf16>, vector<128x128xbf16>, vector<16x128xf32> -> vector<16x128xf32>
    %405 = arith.addf %398, %404 : vector<16x128xf32>
    %c0_313 = arith.constant 0 : index
    %c2_314 = arith.constant 2 : index
    %c0_315 = arith.constant 0 : index
    %406 = tpu.strided_load %arg12[%c0_313, %c2_314, %c0_315] {strides = array<i32: 1, 2, 1>} : memref<2x18x128xf32, #tpu.memory_space<vmem>>, vector<2x8x128xf32>
    %407 = vector.shape_cast %406 : vector<2x8x128xf32> to vector<16x128xf32>
    %408 = arith.truncf %407 : vector<16x128xf32> to vector<16x128xbf16>
    %c5_316 = arith.constant 5 : index
    %c2_317 = arith.constant 2 : index
    %c0_318 = arith.constant 0 : index
    %c0_319 = arith.constant 0 : index
    %409 = vector.load %arg1[%c5_316, %c2_317, %c0_318, %c0_319] : memref<7x3x128x128xbf16, #tpu.memory_space<vmem>>, vector<1x1x128x128xbf16>
    %410 = vector.shape_cast %409 : vector<1x1x128x128xbf16> to vector<128x128xbf16>
    %cst_320 = arith.constant dense<0.000000e+00> : vector<16x128xf32>
    %411 = tpu.matmul %408, %410, %cst_320 {dimension_numbers = #tpu.dot_dimension_numbers<[1], [0], [0], [1], [0, 0, 1, 1], [], []>} : vector<16x128xbf16>, vector<128x128xbf16>, vector<16x128xf32> -> vector<16x128xf32>
    %412 = arith.addf %405, %411 : vector<16x128xf32>
    %cst_321 = arith.constant dense<0.000000e+00> : vector<128xf32>
    %413 = vector.multi_reduction <add>, %412, %cst_321 [0] : vector<16x128xf32> to vector<128xf32>
    %414 = vector.shape_cast %413 : vector<128xf32> to vector<1x128xf32>
    %c16_i32_322 = arith.constant 16 : i32
    %415 = tpu.dynamic_rotate %414 by %c16_i32_322 dim 1 : vector<1x128xf32>, i32 -> vector<1x128xf32>
    %416 = arith.addf %414, %415 : vector<1x128xf32>
    %c32_i32_323 = arith.constant 32 : i32
    %417 = tpu.dynamic_rotate %416 by %c32_i32_323 dim 1 : vector<1x128xf32>, i32 -> vector<1x128xf32>
    %418 = arith.addf %416, %417 : vector<1x128xf32>
    %c64_i32_324 = arith.constant 64 : i32
    %419 = tpu.dynamic_rotate %418 by %c64_i32_324 dim 1 : vector<1x128xf32>, i32 -> vector<1x128xf32>
    %420 = arith.addf %418, %419 : vector<1x128xf32>
    %cst_325 = arith.constant 7.812500e-03 : f32
    %421 = vector.broadcast %cst_325 : f32 to vector<1x128xf32>
    %422 = arith.mulf %420, %421 : vector<1x128xf32>
    %423 = vector.broadcast %422 : vector<1x128xf32> to vector<16x128xf32>
    %424 = arith.subf %412, %423 : vector<16x128xf32>
    %425 = arith.mulf %424, %424 : vector<16x128xf32>
    %cst_326 = arith.constant dense<0.000000e+00> : vector<128xf32>
    %426 = vector.multi_reduction <add>, %425, %cst_326 [0] : vector<16x128xf32> to vector<128xf32>
    %427 = vector.shape_cast %426 : vector<128xf32> to vector<1x128xf32>
    %c16_i32_327 = arith.constant 16 : i32
    %428 = tpu.dynamic_rotate %427 by %c16_i32_327 dim 1 : vector<1x128xf32>, i32 -> vector<1x128xf32>
    %429 = arith.addf %427, %428 : vector<1x128xf32>
    %c32_i32_328 = arith.constant 32 : i32
    %430 = tpu.dynamic_rotate %429 by %c32_i32_328 dim 1 : vector<1x128xf32>, i32 -> vector<1x128xf32>
    %431 = arith.addf %429, %430 : vector<1x128xf32>
    %c64_i32_329 = arith.constant 64 : i32
    %432 = tpu.dynamic_rotate %431 by %c64_i32_329 dim 1 : vector<1x128xf32>, i32 -> vector<1x128xf32>
    %433 = arith.addf %431, %432 : vector<1x128xf32>
    %cst_330 = arith.constant 7.812500e-03 : f32
    %434 = vector.broadcast %cst_330 : f32 to vector<1x128xf32>
    %435 = arith.mulf %433, %434 : vector<1x128xf32>
    %cst_331 = arith.constant 9.99999974E-6 : f32
    %436 = vector.broadcast %cst_331 : f32 to vector<1x128xf32>
    %437 = arith.addf %435, %436 : vector<1x128xf32>
    %438 = math.rsqrt %437 : vector<1x128xf32>
    %439 = arith.mulf %390, %438 : vector<1x128xf32>
    %440 = vector.broadcast %439 : vector<1x128xf32> to vector<16x128xf32>
    %441 = arith.mulf %424, %440 : vector<16x128xf32>
    %442 = vector.broadcast %392 : vector<1x128xf32> to vector<16x128xf32>
    %443 = arith.addf %441, %442 : vector<16x128xf32>
    %cst_332 = arith.constant 0.000000e+00 : f32
    %444 = vector.broadcast %cst_332 : f32 to vector<16x128xf32>
    %445 = arith.maximumf %443, %444 : vector<16x128xf32>
    %446 = vector.shape_cast %445 : vector<16x128xf32> to vector<2x8x128xf32>
    %c0_333 = arith.constant 0 : index
    %c1_334 = arith.constant 1 : index
    %c0_335 = arith.constant 0 : index
    %447 = vector.load %arg13[%c0_333, %c1_334, %c0_335] : memref<2x10x128xf32, #tpu.memory_space<vmem>>, vector<2x8x128xf32>
    tpu.vector_store %arg13[%c0_333, %c1_334, %c0_335], %446 {strides = array<i32>} : memref<2x10x128xf32, #tpu.memory_space<vmem>>, vector<2x8x128xf32>,
    %c1_336 = arith.constant 1 : index
    %c0_337 = arith.constant 0 : index
    %c0_338 = arith.constant 0 : index
    %448 = vector.load %arg2[%c1_336, %c0_337, %c0_338] : memref<2x128x128xbf16, #tpu.memory_space<vmem>>, vector<1x128x128xbf16>
    %449 = vector.shape_cast %448 : vector<1x128x128xbf16> to vector<128x128xbf16>
    %c8 = arith.constant 8 : index
    %c0_339 = arith.constant 0 : index
    %c0_340 = arith.constant 0 : index
    %450 = vector.load %arg3[%c8, %c0_339, %c0_340] : memref<9x1x128xf32, #tpu.memory_space<vmem>>, vector<1x1x128xf32>
    %451 = vector.shape_cast %450 : vector<1x1x128xf32> to vector<1x128xf32>
    %c8_341 = arith.constant 8 : index
    %c0_342 = arith.constant 0 : index
    %c0_343 = arith.constant 0 : index
    %452 = vector.load %arg4[%c8_341, %c0_342, %c0_343] : memref<9x1x128xf32, #tpu.memory_space<vmem>>, vector<1x1x128xf32>
    %453 = vector.shape_cast %452 : vector<1x1x128xf32> to vector<1x128xf32>
    %c0_344 = arith.constant 0 : index
    %c1_345 = arith.constant 1 : index
    %c0_346 = arith.constant 0 : index
    %454 = tpu.strided_load %arg12[%c0_344, %c1_345, %c0_346] {strides = array<i32: 1, 2, 1>} : memref<2x18x128xf32, #tpu.memory_space<vmem>>, vector<2x8x128xf32>
    %455 = vector.shape_cast %454 : vector<2x8x128xf32> to vector<16x128xf32>
    %456 = arith.truncf %455 : vector<16x128xf32> to vector<16x128xbf16>
    %cst_347 = arith.constant dense<0.000000e+00> : vector<16x128xf32>
    %457 = tpu.matmul %456, %449, %cst_347 {dimension_numbers = #tpu.dot_dimension_numbers<[1], [0], [0], [1], [0, 0, 1, 1], [], []>} : vector<16x128xbf16>, vector<128x128xbf16>, vector<16x128xf32> -> vector<16x128xf32>
    %cst_348 = arith.constant dense<0.000000e+00> : vector<128xf32>
    %458 = vector.multi_reduction <add>, %457, %cst_348 [0] : vector<16x128xf32> to vector<128xf32>
    %459 = vector.shape_cast %458 : vector<128xf32> to vector<1x128xf32>
    %c16_i32_349 = arith.constant 16 : i32
    %460 = tpu.dynamic_rotate %459 by %c16_i32_349 dim 1 : vector<1x128xf32>, i32 -> vector<1x128xf32>
    %461 = arith.addf %459, %460 : vector<1x128xf32>
    %c32_i32_350 = arith.constant 32 : i32
    %462 = tpu.dynamic_rotate %461 by %c32_i32_350 dim 1 : vector<1x128xf32>, i32 -> vector<1x128xf32>
    %463 = arith.addf %461, %462 : vector<1x128xf32>
    %c64_i32_351 = arith.constant 64 : i32
    %464 = tpu.dynamic_rotate %463 by %c64_i32_351 dim 1 : vector<1x128xf32>, i32 -> vector<1x128xf32>
    %465 = arith.addf %463, %464 : vector<1x128xf32>
    %cst_352 = arith.constant 7.812500e-03 : f32
    %466 = vector.broadcast %cst_352 : f32 to vector<1x128xf32>
    %467 = arith.mulf %465, %466 : vector<1x128xf32>
    %468 = vector.broadcast %467 : vector<1x128xf32> to vector<16x128xf32>
    %469 = arith.subf %457, %468 : vector<16x128xf32>
    %470 = arith.mulf %469, %469 : vector<16x128xf32>
    %cst_353 = arith.constant dense<0.000000e+00> : vector<128xf32>
    %471 = vector.multi_reduction <add>, %470, %cst_353 [0] : vector<16x128xf32> to vector<128xf32>
    %472 = vector.shape_cast %471 : vector<128xf32> to vector<1x128xf32>
    %c16_i32_354 = arith.constant 16 : i32
    %473 = tpu.dynamic_rotate %472 by %c16_i32_354 dim 1 : vector<1x128xf32>, i32 -> vector<1x128xf32>
    %474 = arith.addf %472, %473 : vector<1x128xf32>
    %c32_i32_355 = arith.constant 32 : i32
    %475 = tpu.dynamic_rotate %474 by %c32_i32_355 dim 1 : vector<1x128xf32>, i32 -> vector<1x128xf32>
    %476 = arith.addf %474, %475 : vector<1x128xf32>
    %c64_i32_356 = arith.constant 64 : i32
    %477 = tpu.dynamic_rotate %476 by %c64_i32_356 dim 1 : vector<1x128xf32>, i32 -> vector<1x128xf32>
    %478 = arith.addf %476, %477 : vector<1x128xf32>
    %cst_357 = arith.constant 7.812500e-03 : f32
    %479 = vector.broadcast %cst_357 : f32 to vector<1x128xf32>
    %480 = arith.mulf %478, %479 : vector<1x128xf32>
    %cst_358 = arith.constant 9.99999974E-6 : f32
    %481 = vector.broadcast %cst_358 : f32 to vector<1x128xf32>
    %482 = arith.addf %480, %481 : vector<1x128xf32>
    %483 = math.rsqrt %482 : vector<1x128xf32>
    %484 = arith.mulf %451, %483 : vector<1x128xf32>
    %485 = vector.broadcast %484 : vector<1x128xf32> to vector<16x128xf32>
    %486 = arith.mulf %469, %485 : vector<16x128xf32>
    %487 = vector.broadcast %453 : vector<1x128xf32> to vector<16x128xf32>
    %488 = arith.addf %486, %487 : vector<16x128xf32>
    %c7 = arith.constant 7 : index
    %c0_359 = arith.constant 0 : index
    %c0_360 = arith.constant 0 : index
    %489 = vector.load %arg3[%c7, %c0_359, %c0_360] : memref<9x1x128xf32, #tpu.memory_space<vmem>>, vector<1x1x128xf32>
    %490 = vector.shape_cast %489 : vector<1x1x128xf32> to vector<1x128xf32>
    %c7_361 = arith.constant 7 : index
    %c0_362 = arith.constant 0 : index
    %c0_363 = arith.constant 0 : index
    %491 = vector.load %arg4[%c7_361, %c0_362, %c0_363] : memref<9x1x128xf32, #tpu.memory_space<vmem>>, vector<1x1x128xf32>
    %492 = vector.shape_cast %491 : vector<1x1x128xf32> to vector<1x128xf32>
    %c0_364 = arith.constant 0 : index
    %c0_365 = arith.constant 0 : index
    %c0_366 = arith.constant 0 : index
    %493 = vector.load %arg13[%c0_364, %c0_365, %c0_366] : memref<2x10x128xf32, #tpu.memory_space<vmem>>, vector<2x8x128xf32>
    %494 = vector.shape_cast %493 : vector<2x8x128xf32> to vector<16x128xf32>
    %495 = arith.truncf %494 : vector<16x128xf32> to vector<16x128xbf16>
    %c6_367 = arith.constant 6 : index
    %c0_368 = arith.constant 0 : index
    %c0_369 = arith.constant 0 : index
    %c0_370 = arith.constant 0 : index
    %496 = vector.load %arg1[%c6_367, %c0_368, %c0_369, %c0_370] : memref<7x3x128x128xbf16, #tpu.memory_space<vmem>>, vector<1x1x128x128xbf16>
    %497 = vector.shape_cast %496 : vector<1x1x128x128xbf16> to vector<128x128xbf16>
    %cst_371 = arith.constant dense<0.000000e+00> : vector<16x128xf32>
    %498 = tpu.matmul %495, %497, %cst_371 {dimension_numbers = #tpu.dot_dimension_numbers<[1], [0], [0], [1], [0, 0, 1, 1], [], []>} : vector<16x128xbf16>, vector<128x128xbf16>, vector<16x128xf32> -> vector<16x128xf32>
    %c0_372 = arith.constant 0 : index
    %c1_373 = arith.constant 1 : index
    %c0_374 = arith.constant 0 : index
    %499 = vector.load %arg13[%c0_372, %c1_373, %c0_374] : memref<2x10x128xf32, #tpu.memory_space<vmem>>, vector<2x8x128xf32>
    %500 = vector.shape_cast %499 : vector<2x8x128xf32> to vector<16x128xf32>
    %501 = arith.truncf %500 : vector<16x128xf32> to vector<16x128xbf16>
    %c6_375 = arith.constant 6 : index
    %c1_376 = arith.constant 1 : index
    %c0_377 = arith.constant 0 : index
    %c0_378 = arith.constant 0 : index
    %502 = vector.load %arg1[%c6_375, %c1_376, %c0_377, %c0_378] : memref<7x3x128x128xbf16, #tpu.memory_space<vmem>>, vector<1x1x128x128xbf16>
    %503 = vector.shape_cast %502 : vector<1x1x128x128xbf16> to vector<128x128xbf16>
    %cst_379 = arith.constant dense<0.000000e+00> : vector<16x128xf32>
    %504 = tpu.matmul %501, %503, %cst_379 {dimension_numbers = #tpu.dot_dimension_numbers<[1], [0], [0], [1], [0, 0, 1, 1], [], []>} : vector<16x128xbf16>, vector<128x128xbf16>, vector<16x128xf32> -> vector<16x128xf32>
    %505 = arith.addf %498, %504 : vector<16x128xf32>
    %c0_380 = arith.constant 0 : index
    %c2_381 = arith.constant 2 : index
    %c0_382 = arith.constant 0 : index
    %506 = vector.load %arg13[%c0_380, %c2_381, %c0_382] : memref<2x10x128xf32, #tpu.memory_space<vmem>>, vector<2x8x128xf32>
    %507 = vector.shape_cast %506 : vector<2x8x128xf32> to vector<16x128xf32>
    %508 = arith.truncf %507 : vector<16x128xf32> to vector<16x128xbf16>
    %c6_383 = arith.constant 6 : index
    %c2_384 = arith.constant 2 : index
    %c0_385 = arith.constant 0 : index
    %c0_386 = arith.constant 0 : index
    %509 = vector.load %arg1[%c6_383, %c2_384, %c0_385, %c0_386] : memref<7x3x128x128xbf16, #tpu.memory_space<vmem>>, vector<1x1x128x128xbf16>
    %510 = vector.shape_cast %509 : vector<1x1x128x128xbf16> to vector<128x128xbf16>
    %cst_387 = arith.constant dense<0.000000e+00> : vector<16x128xf32>
    %511 = tpu.matmul %508, %510, %cst_387 {dimension_numbers = #tpu.dot_dimension_numbers<[1], [0], [0], [1], [0, 0, 1, 1], [], []>} : vector<16x128xbf16>, vector<128x128xbf16>, vector<16x128xf32> -> vector<16x128xf32>
    %512 = arith.addf %505, %511 : vector<16x128xf32>
    %cst_388 = arith.constant dense<0.000000e+00> : vector<128xf32>
    %513 = vector.multi_reduction <add>, %512, %cst_388 [0] : vector<16x128xf32> to vector<128xf32>
    %514 = vector.shape_cast %513 : vector<128xf32> to vector<1x128xf32>
    %c16_i32_389 = arith.constant 16 : i32
    %515 = tpu.dynamic_rotate %514 by %c16_i32_389 dim 1 : vector<1x128xf32>, i32 -> vector<1x128xf32>
    %516 = arith.addf %514, %515 : vector<1x128xf32>
    %c32_i32_390 = arith.constant 32 : i32
    %517 = tpu.dynamic_rotate %516 by %c32_i32_390 dim 1 : vector<1x128xf32>, i32 -> vector<1x128xf32>
    %518 = arith.addf %516, %517 : vector<1x128xf32>
    %c64_i32_391 = arith.constant 64 : i32
    %519 = tpu.dynamic_rotate %518 by %c64_i32_391 dim 1 : vector<1x128xf32>, i32 -> vector<1x128xf32>
    %520 = arith.addf %518, %519 : vector<1x128xf32>
    %cst_392 = arith.constant 7.812500e-03 : f32
    %521 = vector.broadcast %cst_392 : f32 to vector<1x128xf32>
    %522 = arith.mulf %520, %521 : vector<1x128xf32>
    %523 = vector.broadcast %522 : vector<1x128xf32> to vector<16x128xf32>
    %524 = arith.subf %512, %523 : vector<16x128xf32>
    %525 = arith.mulf %524, %524 : vector<16x128xf32>
    %cst_393 = arith.constant dense<0.000000e+00> : vector<128xf32>
    %526 = vector.multi_reduction <add>, %525, %cst_393 [0] : vector<16x128xf32> to vector<128xf32>
    %527 = vector.shape_cast %526 : vector<128xf32> to vector<1x128xf32>
    %c16_i32_394 = arith.constant 16 : i32
    %528 = tpu.dynamic_rotate %527 by %c16_i32_394 dim 1 : vector<1x128xf32>, i32 -> vector<1x128xf32>
    %529 = arith.addf %527, %528 : vector<1x128xf32>
    %c32_i32_395 = arith.constant 32 : i32
    %530 = tpu.dynamic_rotate %529 by %c32_i32_395 dim 1 : vector<1x128xf32>, i32 -> vector<1x128xf32>
    %531 = arith.addf %529, %530 : vector<1x128xf32>
    %c64_i32_396 = arith.constant 64 : i32
    %532 = tpu.dynamic_rotate %531 by %c64_i32_396 dim 1 : vector<1x128xf32>, i32 -> vector<1x128xf32>
    %533 = arith.addf %531, %532 : vector<1x128xf32>
    %cst_397 = arith.constant 7.812500e-03 : f32
    %534 = vector.broadcast %cst_397 : f32 to vector<1x128xf32>
    %535 = arith.mulf %533, %534 : vector<1x128xf32>
    %cst_398 = arith.constant 9.99999974E-6 : f32
    %536 = vector.broadcast %cst_398 : f32 to vector<1x128xf32>
    %537 = arith.addf %535, %536 : vector<1x128xf32>
    %538 = math.rsqrt %537 : vector<1x128xf32>
    %539 = arith.mulf %490, %538 : vector<1x128xf32>
    %540 = vector.broadcast %539 : vector<1x128xf32> to vector<16x128xf32>
    %541 = arith.mulf %524, %540 : vector<16x128xf32>
    %542 = vector.broadcast %492 : vector<1x128xf32> to vector<16x128xf32>
    %543 = arith.addf %541, %542 : vector<16x128xf32>
    %544 = arith.addf %543, %488 : vector<16x128xf32>
    %cst_399 = arith.constant 0.000000e+00 : f32
    %545 = vector.broadcast %cst_399 : f32 to vector<16x128xf32>
    %546 = arith.maximumf %544, %545 : vector<16x128xf32>
    %547 = vector.shape_cast %546 : vector<16x128xf32> to vector<2x8x128xf32>
    %cst_400 = arith.constant dense<0.000000e+00> : vector<2x128xf32>
    %548 = vector.multi_reduction <add>, %547, %cst_400 [1] : vector<2x8x128xf32> to vector<2x128xf32>
    %549 = arith.truncf %548 : vector<2x128xf32> to vector<2x128xbf16>
    %c0_401 = arith.constant 0 : index
    %c0_402 = arith.constant 0 : index
    %550 = vector.load %arg5[%c0_401, %c0_402] : memref<128x128xbf16, #tpu.memory_space<vmem>>, vector<128x128xbf16>
    %cst_403 = arith.constant dense<0.000000e+00> : vector<2x128xf32>
    %551 = tpu.matmul %549, %550, %cst_403 {dimension_numbers = #tpu.dot_dimension_numbers<[1], [0], [0], [1], [0, 0, 1, 1], [], []>} : vector<2x128xbf16>, vector<128x128xbf16>, vector<2x128xf32> -> vector<2x128xf32>
    %c0_404 = arith.constant 0 : index
    %c0_405 = arith.constant 0 : index
    %552 = vector.load %arg6[%c0_404, %c0_405] : memref<1x128xf32, #tpu.memory_space<vmem>>, vector<1x128xf32>
    %553 = vector.broadcast %552 : vector<1x128xf32> to vector<2x128xf32>
    %554 = arith.addf %551, %553 : vector<2x128xf32>
    %c0_406 = arith.constant 0 : index
    %c0_407 = arith.constant 0 : index
    %555 = vector.load %arg7[%c0_406, %c0_407] : memref<2x128xf32, #tpu.memory_space<vmem>>, vector<2x128xf32>
    tpu.vector_store %arg7[%c0_406, %c0_407], %554 {strides = array<i32>} : memref<2x128xf32, #tpu.memory_space<vmem>>, vector<2x128xf32>,
    return
  }
}

</mosaic_0001>

<llo_original>
// kernel: tpu_custom_call.1
$region0: #{tpu_custom_call.1}
  #allocation0 [shape = 'u32[]', space=smem, size = 0x4, offset = 0x4, fixed_abs, tag = 'smem constant byte address 0x4 - core index']
  #allocation1 [shape = 'u32[144,128]{1,0:T(1,128)}', space=vmem, size = 0x12000, scoped, tag = 'internal scratch']
  #allocation2 [shape = 'f32[2,34,128]{2,1,0:T(8,128)}', space=vmem, size = 0xa000, scoped, tag = 'scratch operand']
  #allocation3 [shape = 'f32[2,34,128]{2,1,0:T(8,128)}', space=vmem, size = 0xa000, scoped, tag = 'scratch operand']
  #allocation4 [shape = 'f32[2,34,128]{2,1,0:T(8,128)}', space=vmem, size = 0xa000, scoped, tag = 'scratch operand']
  #allocation5 [shape = 'f32[2,18,128]{2,1,0:T(8,128)}', space=vmem, size = 0x6000, scoped, tag = 'scratch operand']
  #allocation6 [shape = 'f32[2,18,128]{2,1,0:T(8,128)}', space=vmem, size = 0x6000, scoped, tag = 'scratch operand']
  #allocation7 [shape = 'f32[2,10,128]{2,1,0:T(8,128)}', space=vmem, size = 0x4000, scoped, tag = 'scratch operand']
  %s0 = inlined_call_operand.vmem [shape: f32[2,34,128], index: 0, kind: input, shape index: {}]
  %s1 = inlined_call_operand.hbm [shape: bf16[7,3,128,128], index: 1, kind: input, shape index: {}]
  %s2 = inlined_call_operand.vmem [shape: bf16[2,128,128], index: 2, kind: input, shape index: {}]
  %s3 = inlined_call_operand.vmem [shape: f32[9,1,128], index: 3, kind: input, shape index: {}]
  %s4 = inlined_call_operand.vmem [shape: f32[9,1,128], index: 4, kind: input, shape index: {}]
  %s5 = inlined_call_operand.hbm [shape: bf16[128,128], index: 5, kind: input, shape index: {}]
  %s6 = inlined_call_operand.vmem [shape: f32[1,128], index: 6, kind: input, shape index: {}]
  %s7 = inlined_call_operand.hbm [shape: f32[2,128], index: 7, kind: output, shape index: {}]
  %s8 = sld [smem:[#allocation0]]
  $region46: #{tpu_custom_call.1} parent=0
    _
  %s10 = ssub.s32 1, %s8
  %s11 = scalar_select 0, %s10, %s8
  $region1: #{tpu_custom_call.1} parent=0
    #allocation8 [shape = 'u8[688128]{0}', space=vmem, size = 0xa8000, scoped, tag = 'input window, operand 1, single buffered']
    #allocation9 [shape = 's32[1]{0}', space=sflag, size = 0x4, scoped, tag = 'scoped memory for tpu_custom_call.1']
    #allocation10 [shape = 's32[1]{0}', space=sflag, size = 0x4, scoped, tag = 'scoped memory for tpu_custom_call.1']
    #allocation11 [shape = 'u8[32768]{0}', space=vmem, size = 0x8000, scoped, tag = 'input window, operand 5, single buffered']
    #allocation12 [shape = 's32[1]{0}', space=sflag, size = 0x4, scoped, tag = 'scoped memory for tpu_custom_call.1']
    #allocation13 [shape = 'u8[1024]{0}', space=vmem, size = 0x400, scoped, tag = 'output window, operand 0, single buffered']
    %12 = vsyncpa [#allocation9], 0
    %13 = vsyncpa [#allocation12], 0
    %14 = vsyncpa [#allocation10], 0
    // Predicated region
    $region2: #{tpu_custom_call.1} parent=1 // pred_check
      _
    $region3: #{tpu_custom_call.1} parent=1 // pred_check_branch
      %16 = sbr.rel (0) target = $region5
    $region4: #{tpu_custom_call.1} parent=1 // pred_region
      _
    $region5: #{tpu_custom_call.1} parent=1 // pred_fallthru
      _
    // Predicated region
    $region6: #{tpu_custom_call.1} parent=1 // pred_check
      _
    $region7: #{tpu_custom_call.1} parent=1 // pred_check_branch
      %18 = sbr.rel (0) target = $region9
    $region8: #{tpu_custom_call.1} parent=1 // pred_region
      %s20 = ssub.s32 21504, 21504
      %21 = vsyncadd [#allocation9], %s20
      %s22 = sshll.u32 [#allocation8], 4
      %s23 = int_to_ptr.vmem [resolvable:$true] %s22
      %28 = dma.hbm_to_vmem [thread:$0]  %s1, 21504, %s23, [#allocation9], 64, 64, 4
    $region9: #{tpu_custom_call.1} parent=1 // pred_fallthru
      _
    // Predicated region
    $region10: #{tpu_custom_call.1} parent=1 // pred_check
      _
    $region11: #{tpu_custom_call.1} parent=1 // pred_check_branch
      %30 = sbr.rel (0) target = $region13
    $region12: #{tpu_custom_call.1} parent=1 // pred_region
      _
    $region13: #{tpu_custom_call.1} parent=1 // pred_fallthru
      _
    // Predicated region
    $region14: #{tpu_custom_call.1} parent=1 // pred_check
      _
    $region15: #{tpu_custom_call.1} parent=1 // pred_check_branch
      %32 = sbr.rel (0) target = $region17
    $region16: #{tpu_custom_call.1} parent=1 // pred_region
      _
    $region17: #{tpu_custom_call.1} parent=1 // pred_fallthru
      _
    // Predicated region
    $region18: #{tpu_custom_call.1} parent=1 // pred_check
      _
    $region19: #{tpu_custom_call.1} parent=1 // pred_check_branch
      %34 = sbr.rel (0) target = $region21
    $region20: #{tpu_custom_call.1} parent=1 // pred_region
      _
    $region21: #{tpu_custom_call.1} parent=1 // pred_fallthru
      _
    // Predicated region
    $region22: #{tpu_custom_call.1} parent=1 // pred_check
      _
    $region23: #{tpu_custom_call.1} parent=1 // pred_check_branch
      %36 = sbr.rel (0) target = $region25
    $region24: #{tpu_custom_call.1} parent=1 // pred_region
      %s38 = ssub.s32 1024, 1024
      %39 = vsyncadd [#allocation12], %s38
      %s40 = sshll.u32 [#allocation11], 4
      %s41 = int_to_ptr.vmem [resolvable:$true] %s40
      %46 = dma.hbm_to_vmem [thread:$0]  %s5, 1024, %s41, [#allocation12], 64, 64, 4
    $region25: #{tpu_custom_call.1} parent=1 // pred_fallthru
      _
    // Predicated region
    $region26: #{tpu_custom_call.1} parent=1 // pred_check
      _
    $region27: #{tpu_custom_call.1} parent=1 // pred_check_branch
      %48 = sbr.rel (0) target = $region29
    $region28: #{tpu_custom_call.1} parent=1 // pred_region
      _
    $region29: #{tpu_custom_call.1} parent=1 // pred_fallthru
      _
    // Predicated region
    $region30: #{tpu_custom_call.1} parent=1 // pred_check
      _
    $region31: #{tpu_custom_call.1} parent=1 // pred_check_branch
      %50 = sbr.rel (0) target = $region33
    $region32: #{tpu_custom_call.1} parent=1 // pred_region
      %51 = dma.done [#allocation9], 21504
    $region33: #{tpu_custom_call.1} parent=1 // pred_fallthru
      _
    // Predicated region
    $region34: #{tpu_custom_call.1} parent=1 // pred_check
      _
    $region35: #{tpu_custom_call.1} parent=1 // pred_check_branch
      %53 = sbr.rel (0) target = $region37
    $region36: #{tpu_custom_call.1} parent=1 // pred_region
      %54 = dma.done [#allocation12], 1024
    $region37: #{tpu_custom_call.1} parent=1 // pred_fallthru
      _
    %56 = vst [vmem:[#allocation2] sm:$0x1] 0.0
    %57 = vst [vmem:[#allocation2 + $0x28] sm:$0x1] 0.0
    %58 = vst [vmem:[#allocation2 + $0x21] sm:$0x1] 0.0
    %59 = vst [vmem:[#allocation2 + $0x49] sm:$0x1] 0.0
    %60 = vst [vmem:[#allocation3] sm:$0x1] 0.0
    %61 = vst [vmem:[#allocation3 + $0x28] sm:$0x1] 0.0
    %62 = vst [vmem:[#allocation3 + $0x21] sm:$0x1] 0.0
    %63 = vst [vmem:[#allocation3 + $0x49] sm:$0x1] 0.0
    %64 = vst [vmem:[#allocation4] sm:$0x1] 0.0
    %65 = vst [vmem:[#allocation4 + $0x28] sm:$0x1] 0.0
    %66 = vst [vmem:[#allocation4 + $0x21] sm:$0x1] 0.0
    %67 = vst [vmem:[#allocation4 + $0x49] sm:$0x1] 0.0
    %68 = vst [vmem:[#allocation5] sm:$0x1] 0.0
    %69 = vst [vmem:[#allocation5 + $0x18] sm:$0x1] 0.0
    %70 = vst [vmem:[#allocation5 + $0x11] sm:$0x1] 0.0
    %71 = vst [vmem:[#allocation5 + $0x29] sm:$0x1] 0.0
    %72 = vst [vmem:[#allocation6] sm:$0x1] 0.0
    %73 = vst [vmem:[#allocation6 + $0x18] sm:$0x1] 0.0
    %74 = vst [vmem:[#allocation6 + $0x11] sm:$0x1] 0.0
    %75 = vst [vmem:[#allocation6 + $0x29] sm:$0x1] 0.0
    %76 = vst [vmem:[#allocation7] sm:$0x1] 0.0
    %77 = vst [vmem:[#allocation7 + $0x10] sm:$0x1] 0.0
    %78 = vst [vmem:[#allocation7 + $0x9] sm:$0x1] 0.0
    %79 = vst [vmem:[#allocation7 + $0x19] sm:$0x1] 0.0
    %v80 = vld [vmem:[%s3] sm:$0x1]
    %v81 = vld [vmem:[%s4] sm:$0x1]
    %v82 = vld [vmem:[%s0] sm:$0xff]
    %v83 = vld [vmem:[%s0 + $0x8] sm:$0xff]
    %v84 = vld [vmem:[%s0 + $0x10] sm:$0xff]
    %v85 = vld [vmem:[%s0 + $0x18] sm:$0xff]
    %v86 = vld [vmem:[%s0 + $0x28] sm:$0xff]
    %v87 = vld [vmem:[%s0 + $0x30] sm:$0xff]
    %v88 = vld [vmem:[%s0 + $0x38] sm:$0xff]
    %v89 = vld [vmem:[%s0 + $0x40] sm:$0xff]
    %v90 = vpack.c.bf16 %v83, %v82
    %v91 = vpack.c.bf16 %v85, %v84
    %v92 = vpack.c.bf16 %v87, %v86
    %v93 = vpack.c.bf16 %v89, %v88
    %v94 = vld [vmem:[#allocation8] sm:$0xf]
    %v95 = vld [vmem:[#allocation8 + $0x4] sm:$0xf]
    %v96 = vld [vmem:[#allocation8 + $0x8] sm:$0xf]
    %v97 = vld [vmem:[#allocation8 + $0xc] sm:$0xf]
    %v98 = vld [vmem:[#allocation8 + $0x10] sm:$0xf]
    %v99 = vld [vmem:[#allocation8 + $0x14] sm:$0xf]
    %v100 = vld [vmem:[#allocation8 + $0x18] sm:$0xf]
    %v101 = vld [vmem:[#allocation8 + $0x1c] sm:$0xf]
    %v102 = vld [vmem:[#allocation8 + $0x20] sm:$0xf]
    %v103 = vld [vmem:[#allocation8 + $0x24] sm:$0xf]
    %v104 = vld [vmem:[#allocation8 + $0x28] sm:$0xf]
    %v105 = vld [vmem:[#allocation8 + $0x2c] sm:$0xf]
    %v106 = vld [vmem:[#allocation8 + $0x30] sm:$0xf]
    %v107 = vld [vmem:[#allocation8 + $0x34] sm:$0xf]
    %v108 = vld [vmem:[#allocation8 + $0x38] sm:$0xf]
    %v109 = vld [vmem:[#allocation8 + $0x3c] sm:$0xf]
    %v110 = vld [vmem:[%s0 + $0x1] sm:$0xff]
    %v111 = vld [vmem:[%s0 + $0x9] sm:$0xff]
    %v112 = vld [vmem:[%s0 + $0x11] sm:$0xff]
    %v113 = vld [vmem:[%s0 + $0x19] sm:$0xff]
    %v114 = vld [vmem:[%s0 + $0x29] sm:$0xff]
    %v115 = vld [vmem:[%s0 + $0x31] sm:$0xff]
    %v116 = vld [vmem:[%s0 + $0x39] sm:$0xff]
    %v117 = vld [vmem:[%s0 + $0x41] sm:$0xff]
    %v118 = vpack.c.bf16 %v111, %v110
    %v119 = vpack.c.bf16 %v113, %v112
    %v120 = vpack.c.bf16 %v115, %v114
    %v121 = vpack.c.bf16 %v117, %v116
    %s122 = scalar_lea.vmem [#allocation8], 64
    %v123 = vld [vmem:[%s122] sm:$0xf]
    %v124 = vld [vmem:[%s122 + $0x4] sm:$0xf]
    %v125 = vld [vmem:[%s122 + $0x8] sm:$0xf]
    %v126 = vld [vmem:[%s122 + $0xc] sm:$0xf]
    %v127 = vld [vmem:[%s122 + $0x10] sm:$0xf]
    %v128 = vld [vmem:[%s122 + $0x14] sm:$0xf]
    %v129 = vld [vmem:[%s122 + $0x18] sm:$0xf]
    %v130 = vld [vmem:[%s122 + $0x1c] sm:$0xf]
    %v131 = vld [vmem:[%s122 + $0x20] sm:$0xf]
    %v132 = vld [vmem:[%s122 + $0x24] sm:$0xf]
    %v133 = vld [vmem:[%s122 + $0x28] sm:$0xf]
    %v134 = vld [vmem:[%s122 + $0x2c] sm:$0xf]
    %v135 = vld [vmem:[%s122 + $0x30] sm:$0xf]
    %v136 = vld [vmem:[%s122 + $0x34] sm:$0xf]
    %v137 = vld [vmem:[%s122 + $0x38] sm:$0xf]
    %v138 = vld [vmem:[%s122 + $0x3c] sm:$0xf]
    %v155 = vunpack.c.l.b16 %v123
    %v156 = vunpack.c.l.b16 %v124
    %v157 = vunpack.c.l.b16 %v125
    %v158 = vunpack.c.l.b16 %v126
    %v159 = vunpack.c.l.b16 %v127
    %v160 = vunpack.c.l.b16 %v128
    %v161 = vunpack.c.l.b16 %v129
    %v162 = vunpack.c.l.b16 %v130
    %v163 = vunpack.c.l.b16 %v131
    %v164 = vunpack.c.l.b16 %v132
    %v165 = vunpack.c.l.b16 %v133
    %v166 = vunpack.c.l.b16 %v134
    %v167 = vunpack.c.l.b16 %v135
    %v168 = vunpack.c.l.b16 %v136
    %v169 = vunpack.c.l.b16 %v137
    %v170 = vunpack.c.l.b16 %v138
    %v171 = vpack.c.b16 %v156, %v155
    %v172 = vpack.c.b16 %v158, %v157
    %v173 = vpack.c.b16 %v160, %v159
    %v174 = vpack.c.b16 %v162, %v161
    %v175 = vpack.c.b16 %v164, %v163
    %v176 = vpack.c.b16 %v166, %v165
    %v177 = vpack.c.b16 %v168, %v167
    %v178 = vpack.c.b16 %v170, %v169
    %187 = vmatprep.subr.bf16.mxu0 0
    %188 = vmatpush1.bf16.msra.mxu0 %v171
    %189 = vmatprep.subr.bf16.mxu0 0
    %190 = vmatpush1.bf16.msra.mxu0 %v172
    %191 = vmatprep.subr.bf16.mxu0 0
    %192 = vmatpush1.bf16.msra.mxu0 %v173
    %193 = vmatprep.subr.bf16.mxu0 0
    %194 = vmatpush1.bf16.msra.mxu0 %v174
    %195 = vmatprep.subr.bf16.mxu0 0
    %196 = vmatpush1.bf16.msra.mxu0 %v175
    %197 = vmatprep.subr.bf16.mxu0 0
    %198 = vmatpush1.bf16.msra.mxu0 %v176
    %199 = vmatprep.subr.bf16.mxu0 0
    %200 = vmatpush1.bf16.msra.mxu0 %v177
    %201 = vmatprep.subr.bf16.mxu0 0
    %202 = vmatpush1.bf16.msra.mxu0 %v178
    %203 = vmatprep.subr.bf16.mxu0 0
    %204 = vmatpush1.bf16.msra.mxu0 0
    %205 = vmatprep.subr.bf16.mxu0 0
    %206 = vmatpush1.bf16.msra.mxu0 0
    %207 = vmatprep.subr.bf16.mxu0 0
    %208 = vmatpush1.bf16.msra.mxu0 0
    %209 = vmatprep.subr.bf16.mxu0 0
    %210 = vmatpush1.bf16.msra.mxu0 0
    %211 = vmatprep.subr.bf16.mxu0 0
    %212 = vmatpush1.bf16.msra.mxu0 0
    %213 = vmatprep.subr.bf16.mxu0 0
    %214 = vmatpush1.bf16.msra.mxu0 0
    %215 = vmatprep.subr.bf16.mxu0 0
    %216 = vmatpush1.bf16.msra.mxu0 0
    %217 = vmatprep.subr.bf16.mxu0 0
    %218 = vmatpush1.bf16.msra.mxu0 0
    %219 = vmatprep.mubr.bf16.mxu0 0
    %220 = vmatmul.mubr.bf16.gmra.mrb[0].mxu0 %v118
    %v221 = vpop.f32.mrb[0].mxu0
    %v222 = vadd.f32 0.0, %v221
    %v223 = vpop.f32.mrb[0].mxu0
    %v224 = vpop.f32.mrb[0].mxu0
    %v225 = vadd.f32 0.0, %v224
    %v226 = vpop.f32.mrb[0].mxu0
    %227 = vmatprep.mubr.bf16.mxu0 0
    %228 = vmatmul.mubr.bf16.gmra.mrb[0].mxu0 %v119
    %v229 = vpop.f32.mrb[0].mxu0
    %v230 = vadd.f32 0.0, %v229
    %v231 = vpop.f32.mrb[0].mxu0
    %v232 = vpop.f32.mrb[0].mxu0
    %v233 = vadd.f32 0.0, %v232
    %v234 = vpop.f32.mrb[0].mxu0
    %235 = vmatprep.mubr.bf16.mxu0 0
    %236 = vmatmul.mubr.bf16.gmra.mrb[0].mxu0 %v120
    %v237 = vpop.f32.mrb[0].mxu0
    %v238 = vadd.f32 0.0, %v237
    %v239 = vpop.f32.mrb[0].mxu0
    %v240 = vpop.f32.mrb[0].mxu0
    %v241 = vadd.f32 0.0, %v240
    %v242 = vpop.f32.mrb[0].mxu0
    %243 = vmatprep.mubr.bf16.mxu0 0
    %244 = vmatmul.mubr.bf16.gmra.mrb[0].mxu0 %v121
    %v245 = vpop.f32.mrb[0].mxu0
    %v246 = vadd.f32 0.0, %v245
    %v247 = vpop.f32.mrb[0].mxu0
    %v248 = vpop.f32.mrb[0].mxu0
    %v249 = vadd.f32 0.0, %v248
    %v250 = vpop.f32.mrb[0].mxu0
    %251 = vdwg.mxu0
    %v268 = vunpack.c.l.b16 %v94
    %v269 = vunpack.c.l.b16 %v95
    %v270 = vunpack.c.l.b16 %v96
    %v271 = vunpack.c.l.b16 %v97
    %v272 = vunpack.c.l.b16 %v98
    %v273 = vunpack.c.l.b16 %v99
    %v274 = vunpack.c.l.b16 %v100
    %v275 = vunpack.c.l.b16 %v101
    %v276 = vunpack.c.l.b16 %v102
    %v277 = vunpack.c.l.b16 %v103
    %v278 = vunpack.c.l.b16 %v104
    %v279 = vunpack.c.l.b16 %v105
    %v280 = vunpack.c.l.b16 %v106
    %v281 = vunpack.c.l.b16 %v107
    %v282 = vunpack.c.l.b16 %v108
    %v283 = vunpack.c.l.b16 %v109
    %v284 = vpack.c.b16 %v269, %v268
    %v285 = vpack.c.b16 %v271, %v270
    %v286 = vpack.c.b16 %v273, %v272
    %v287 = vpack.c.b16 %v275, %v274
    %v288 = vpack.c.b16 %v277, %v276
    %v289 = vpack.c.b16 %v279, %v278
    %v290 = vpack.c.b16 %v281, %v280
    %v291 = vpack.c.b16 %v283, %v282
    %300 = vmatprep.subr.bf16.mxu0 0
    %301 = vmatpush1.bf16.msra.mxu0 %v284
    %302 = vmatprep.subr.bf16.mxu0 0
    %303 = vmatpush1.bf16.msra.mxu0 %v285
    %304 = vmatprep.subr.bf16.mxu0 0
    %305 = vmatpush1.bf16.msra.mxu0 %v286
    %306 = vmatprep.subr.bf16.mxu0 0
    %307 = vmatpush1.bf16.msra.mxu0 %v287
    %308 = vmatprep.subr.bf16.mxu0 0
    %309 = vmatpush1.bf16.msra.mxu0 %v288
    %310 = vmatprep.subr.bf16.mxu0 0
    %311 = vmatpush1.bf16.msra.mxu0 %v289
    %312 = vmatprep.subr.bf16.mxu0 0
    %313 = vmatpush1.bf16.msra.mxu0 %v290
    %314 = vmatprep.subr.bf16.mxu0 0
    %315 = vmatpush1.bf16.msra.mxu0 %v291
    %316 = vmatprep.subr.bf16.mxu0 0
    %317 = vmatpush1.bf16.msra.mxu0 0
    %318 = vmatprep.subr.bf16.mxu0 0
    %319 = vmatpush1.bf16.msra.mxu0 0
    %320 = vmatprep.subr.bf16.mxu0 0
    %321 = vmatpush1.bf16.msra.mxu0 0
    %322 = vmatprep.subr.bf16.mxu0 0
    %323 = vmatpush1.bf16.msra.mxu0 0
    %324 = vmatprep.subr.bf16.mxu0 0
    %325 = vmatpush1.bf16.msra.mxu0 0
    %326 = vmatprep.subr.bf16.mxu0 0
    %327 = vmatpush1.bf16.msra.mxu0 0
    %328 = vmatprep.subr.bf16.mxu0 0
    %329 = vmatpush1.bf16.msra.mxu0 0
    %330 = vmatprep.subr.bf16.mxu0 0
    %331 = vmatpush1.bf16.msra.mxu0 0
    %332 = vmatprep.mubr.bf16.mxu0 0
    %333 = vmatmul.mubr.bf16.gmra.mrb[0].mxu0 %v90
    %v334 = vpop.f32.mrb[0].mxu0
    %v335 = vadd.f32 %v222, %v334
    %v336 = vpop.f32.mrb[0].mxu0
    %v337 = vpop.f32.mrb[0].mxu0
    %v338 = vadd.f32 %v225, %v337
    %v339 = vpop.f32.mrb[0].mxu0
    %340 = vmatprep.mubr.bf16.mxu0 0
    %341 = vmatmul.mubr.bf16.gmra.mrb[0].mxu0 %v91
    %v342 = vpop.f32.mrb[0].mxu0
    %v343 = vadd.f32 %v230, %v342
    %v344 = vpop.f32.mrb[0].mxu0
    %v345 = vpop.f32.mrb[0].mxu0
    %v346 = vadd.f32 %v233, %v345
    %v347 = vpop.f32.mrb[0].mxu0
    %348 = vmatprep.mubr.bf16.mxu0 0
    %349 = vmatmul.mubr.bf16.gmra.mrb[0].mxu0 %v92
    %v350 = vpop.f32.mrb[0].mxu0
    %v351 = vadd.f32 %v238, %v350
    %v352 = vpop.f32.mrb[0].mxu0
    %v353 = vpop.f32.mrb[0].mxu0
    %v354 = vadd.f32 %v241, %v353
    %v355 = vpop.f32.mrb[0].mxu0
    %356 = vmatprep.mubr.bf16.mxu0 0
    %357 = vmatmul.mubr.bf16.gmra.mrb[0].mxu0 %v93
    %v358 = vpop.f32.mrb[0].mxu0
    %v359 = vadd.f32 %v246, %v358
    %v360 = vpop.f32.mrb[0].mxu0
    %v361 = vpop.f32.mrb[0].mxu0
    %v362 = vadd.f32 %v249, %v361
    %v363 = vpop.f32.mrb[0].mxu0
    %364 = vdwg.mxu0
    %v365 = vld [vmem:[%s0 + $0x2] sm:$0xff]
    %v366 = vld [vmem:[%s0 + $0xa] sm:$0xff]
    %v367 = vld [vmem:[%s0 + $0x12] sm:$0xff]
    %v368 = vld [vmem:[%s0 + $0x1a] sm:$0xff]
    %v369 = vld [vmem:[%s0 + $0x2a] sm:$0xff]
    %v370 = vld [vmem:[%s0 + $0x32] sm:$0xff]
    %v371 = vld [vmem:[%s0 + $0x3a] sm:$0xff]
    %v372 = vld [vmem:[%s0 + $0x42] sm:$0xff]
    %v373 = vpack.c.bf16 %v366, %v365
    %v374 = vpack.c.bf16 %v368, %v367
    %v375 = vpack.c.bf16 %v370, %v369
    %v376 = vpack.c.bf16 %v372, %v371
    %s377 = scalar_lea.vmem [#allocation8], 128
    %v378 = vld [vmem:[%s377] sm:$0xf]
    %v379 = vld [vmem:[%s377 + $0x4] sm:$0xf]
    %v380 = vld [vmem:[%s377 + $0x8] sm:$0xf]
    %v381 = vld [vmem:[%s377 + $0xc] sm:$0xf]
    %v382 = vld [vmem:[%s377 + $0x10] sm:$0xf]
    %v383 = vld [vmem:[%s377 + $0x14] sm:$0xf]
    %v384 = vld [vmem:[%s377 + $0x18] sm:$0xf]
    %v385 = vld [vmem:[%s377 + $0x1c] sm:$0xf]
    %v386 = vld [vmem:[%s377 + $0x20] sm:$0xf]
    %v387 = vld [vmem:[%s377 + $0x24] sm:$0xf]
    %v388 = vld [vmem:[%s377 + $0x28] sm:$0xf]
    %v389 = vld [vmem:[%s377 + $0x2c] sm:$0xf]
    %v390 = vld [vmem:[%s377 + $0x30] sm:$0xf]
    %v391 = vld [vmem:[%s377 + $0x34] sm:$0xf]
    %v392 = vld [vmem:[%s377 + $0x38] sm:$0xf]
    %v393 = vld [vmem:[%s377 + $0x3c] sm:$0xf]
    %v410 = vunpack.c.l.b16 %v378
    %v411 = vunpack.c.l.b16 %v379
    %v412 = vunpack.c.l.b16 %v380
    %v413 = vunpack.c.l.b16 %v381
    %v414 = vunpack.c.l.b16 %v382
    %v415 = vunpack.c.l.b16 %v383
    %v416 = vunpack.c.l.b16 %v384
    %v417 = vunpack.c.l.b16 %v385
    %v418 = vunpack.c.l.b16 %v386
    %v419 = vunpack.c.l.b16 %v387
    %v420 = vunpack.c.l.b16 %v388
    %v421 = vunpack.c.l.b16 %v389
    %v422 = vunpack.c.l.b16 %v390
    %v423 = vunpack.c.l.b16 %v391
    %v424 = vunpack.c.l.b16 %v392
    %v425 = vunpack.c.l.b16 %v393
    %v426 = vpack.c.b16 %v411, %v410
    %v427 = vpack.c.b16 %v413, %v412
    %v428 = vpack.c.b16 %v415, %v414
    %v429 = vpack.c.b16 %v417, %v416
    %v430 = vpack.c.b16 %v419, %v418
    %v431 = vpack.c.b16 %v421, %v420
    %v432 = vpack.c.b16 %v423, %v422
    %v433 = vpack.c.b16 %v425, %v424
    %442 = vmatprep.subr.bf16.mxu0 0
    %443 = vmatpush1.bf16.msra.mxu0 %v426
    %444 = vmatprep.subr.bf16.mxu0 0
    %445 = vmatpush1.bf16.msra.mxu0 %v427
    %446 = vmatprep.subr.bf16.mxu0 0
    %447 = vmatpush1.bf16.msra.mxu0 %v428
    %448 = vmatprep.subr.bf16.mxu0 0
    %449 = vmatpush1.bf16.msra.mxu0 %v429
    %450 = vmatprep.subr.bf16.mxu0 0
    %451 = vmatpush1.bf16.msra.mxu0 %v430
    %452 = vmatprep.subr.bf16.mxu0 0
    %453 = vmatpush1.bf16.msra.mxu0 %v431
    %454 = vmatprep.subr.bf16.mxu0 0
    %455 = vmatpush1.bf16.msra.mxu0 %v432
    %456 = vmatprep.subr.bf16.mxu0 0
    %457 = vmatpush1.bf16.msra.mxu0 %v433
    %458 = vmatprep.subr.bf16.mxu0 0
    %459 = vmatpush1.bf16.msra.mxu0 0
    %460 = vmatprep.subr.bf16.mxu0 0
    %461 = vmatpush1.bf16.msra.mxu0 0
    %462 = vmatprep.subr.bf16.mxu0 0
    %463 = vmatpush1.bf16.msra.mxu0 0
    %464 = vmatprep.subr.bf16.mxu0 0
    %465 = vmatpush1.bf16.msra.mxu0 0
    %466 = vmatprep.subr.bf16.mxu0 0
    %467 = vmatpush1.bf16.msra.mxu0 0
    %468 = vmatprep.subr.bf16.mxu0 0
    %469 = vmatpush1.bf16.msra.mxu0 0
    %470 = vmatprep.subr.bf16.mxu0 0
    %471 = vmatpush1.bf16.msra.mxu0 0
    %472 = vmatprep.subr.bf16.mxu0 0
    %473 = vmatpush1.bf16.msra.mxu0 0
    %474 = vmatprep.mubr.bf16.mxu0 0
    %475 = vmatmul.mubr.bf16.gmra.mrb[0].mxu0 %v373
    %v476 = vpop.f32.mrb[0].mxu0
    %v477 = vadd.f32 0.0, %v476
    %v478 = vpop.f32.mrb[0].mxu0
    %v479 = vpop.f32.mrb[0].mxu0
    %v480 = vadd.f32 0.0, %v479
    %v481 = vpop.f32.mrb[0].mxu0
    %482 = vmatprep.mubr.bf16.mxu0 0
    %483 = vmatmul.mubr.bf16.gmra.mrb[0].mxu0 %v374
    %v484 = vpop.f32.mrb[0].mxu0
    %v485 = vadd.f32 0.0, %v484
    %v486 = vpop.f32.mrb[0].mxu0
    %v487 = vpop.f32.mrb[0].mxu0
    %v488 = vadd.f32 0.0, %v487
    %v489 = vpop.f32.mrb[0].mxu0
    %490 = vmatprep.mubr.bf16.mxu0 0
    %491 = vmatmul.mubr.bf16.gmra.mrb[0].mxu0 %v375
    %v492 = vpop.f32.mrb[0].mxu0
    %v493 = vadd.f32 0.0, %v492
    %v494 = vpop.f32.mrb[0].mxu0
    %v495 = vpop.f32.mrb[0].mxu0
    %v496 = vadd.f32 0.0, %v495
    %v497 = vpop.f32.mrb[0].mxu0
    %498 = vmatprep.mubr.bf16.mxu0 0
    %499 = vmatmul.mubr.bf16.gmra.mrb[0].mxu0 %v376
    %v500 = vpop.f32.mrb[0].mxu0
    %v501 = vadd.f32 0.0, %v500
    %v502 = vpop.f32.mrb[0].mxu0
    %v503 = vpop.f32.mrb[0].mxu0
    %v504 = vadd.f32 0.0, %v503
    %v505 = vpop.f32.mrb[0].mxu0
    %506 = vdwg.mxu0
    %v507 = vadd.f32 %v335, %v477
    %v508 = vadd.f32 %v338, %v480
    %v509 = vadd.f32 %v343, %v485
    %v510 = vadd.f32 %v346, %v488
    %v511 = vadd.f32 %v351, %v493
    %v512 = vadd.f32 %v354, %v496
    %v513 = vadd.f32 %v359, %v501
    %v514 = vadd.f32 %v362, %v504
    %v515 = vadd.f32 %v507, %v508
    %v516 = vadd.f32 %v515, %v509
    %v517 = vadd.f32 %v516, %v510
    %v518 = vadd.f32 %v517, %v511
    %v519 = vadd.f32 %v518, %v512
    %v520 = vadd.f32 %v519, %v513
    %v521 = vadd.f32 %v520, %v514
    %v522 = vrot.slane %v521, 4
    %v523 = vadd.f32 %v521, %v522
    %v524 = vrot.slane %v523, 2
    %v525 = vadd.f32 %v523, %v524
    %v526 = vrot.slane %v525, 1
    %v527 = vadd.f32 %v525, %v526
    %528 = vrot.lane.b32.xlu0 %v527, 4
    %v529 = vpop.permute.xlu0 %528
    %v530 = vadd.f32 %v527, %v529
    %531 = vrot.lane.b32.xlu0 %v530, 8
    %v532 = vpop.permute.xlu0 %531
    %v533 = vadd.f32 %v530, %v532
    %534 = vrot.lane.b32.xlu0 %v533, 16
    %v535 = vpop.permute.xlu0 %534
    %v536 = vadd.f32 %v533, %v535
    %537 = vrot.lane.b32.xlu0 %v536, 32
    %v538 = vpop.permute.xlu0 %537
    %v539 = vadd.f32 %v536, %v538
    %540 = vrot.lane.b32.xlu0 %v539, 64
    %v541 = vpop.permute.xlu0 %540
    %v542 = vadd.f32 %v539, %v541
    %v543 = vmul.f32 %v542, 0.00048828125
    %v544 = vlaneseq
    %v545 = vshrl.u32 %v544, 7
    %v546 = vsub.s32 0, %v545
    %v547 = vrot.slane %v543, %v546
    %v548 = vsub.f32 %v507, %v547
    %v549 = vsub.f32 %v508, %v547
    %v550 = vsub.f32 %v509, %v547
    %v551 = vsub.f32 %v510, %v547
    %v552 = vsub.f32 %v511, %v547
    %v553 = vsub.f32 %v512, %v547
    %v554 = vsub.f32 %v513, %v547
    %v555 = vsub.f32 %v514, %v547
    %v556 = vmul.f32 %v548, %v548
    %v557 = vmul.f32 %v549, %v549
    %v558 = vmul.f32 %v550, %v550
    %v559 = vmul.f32 %v551, %v551
    %v560 = vmul.f32 %v552, %v552
    %v561 = vmul.f32 %v553, %v553
    %v562 = vmul.f32 %v554, %v554
    %v563 = vmul.f32 %v555, %v555
    %v564 = vadd.f32 %v556, %v557
    %v565 = vadd.f32 %v564, %v558
    %v566 = vadd.f32 %v565, %v559
    %v567 = vadd.f32 %v566, %v560
    %v568 = vadd.f32 %v567, %v561
    %v569 = vadd.f32 %v568, %v562
    %v570 = vadd.f32 %v569, %v563
    %v571 = vrot.slane %v570, 4
    %v572 = vadd.f32 %v570, %v571
    %v573 = vrot.slane %v572, 2
    %v574 = vadd.f32 %v572, %v573
    %v575 = vrot.slane %v574, 1
    %v576 = vadd.f32 %v574, %v575
    %577 = vrot.lane.b32.xlu0 %v576, 4
    %v578 = vpop.permute.xlu0 %577
    %v579 = vadd.f32 %v576, %v578
    %580 = vrot.lane.b32.xlu0 %v579, 8
    %v581 = vpop.permute.xlu0 %580
    %v582 = vadd.f32 %v579, %v581
    %583 = vrot.lane.b32.xlu0 %v582, 16
    %v584 = vpop.permute.xlu0 %583
    %v585 = vadd.f32 %v582, %v584
    %586 = vrot.lane.b32.xlu0 %v585, 32
    %v587 = vpop.permute.xlu0 %586
    %v588 = vadd.f32 %v585, %v587
    %589 = vrot.lane.b32.xlu0 %v588, 64
    %v590 = vpop.permute.xlu0 %589
    %v591 = vadd.f32 %v588, %v590
    %v592 = vmul.f32 %v591, 0.00048828125
    %v593 = vadd.f32 %v592, 1e-05
    %v594 = vrsqrt.pop %v593
    %v595 = vmul.f32 %v80, %v594
    %v597 = vlaneseq
    %v598 = vshrl.u32 %v597, 7
    %v599 = vsub.s32 0, %v598
    %v600 = vrot.slane %v595, %v599
    %v602 = vmul.f32 %v548, %v600
    %v603 = vmul.f32 %v549, %v600
    %v604 = vmul.f32 %v550, %v600
    %v605 = vmul.f32 %v551, %v600
    %v606 = vmul.f32 %v552, %v600
    %v607 = vmul.f32 %v553, %v600
    %v608 = vmul.f32 %v554, %v600
    %v609 = vmul.f32 %v555, %v600
    %v611 = vlaneseq
    %v612 = vshrl.u32 %v611, 7
    %v613 = vsub.s32 0, %v612
    %v614 = vrot.slane %v81, %v613
    %v616 = vadd.f32 %v602, %v614
    %v617 = vadd.f32 %v603, %v614
    %v618 = vadd.f32 %v604, %v614
    %v619 = vadd.f32 %v605, %v614
    %v620 = vadd.f32 %v606, %v614
    %v621 = vadd.f32 %v607, %v614
    %v622 = vadd.f32 %v608, %v614
    %v623 = vadd.f32 %v609, %v614
    %v624 = vmax.f32 %v616, 0.0
    %v625 = vmax.f32 %v617, 0.0
    %v626 = vmax.f32 %v618, 0.0
    %v627 = vmax.f32 %v619, 0.0
    %v628 = vmax.f32 %v620, 0.0
    %v629 = vmax.f32 %v621, 0.0
    %v630 = vmax.f32 %v622, 0.0
    %v631 = vmax.f32 %v623, 0.0
    %632 = vst [vmem:[#allocation2 + $0x1] sm:$0xff] %v624
    %633 = vst [vmem:[#allocation2 + $0x9] sm:$0xff] %v625
    %634 = vst [vmem:[#allocation2 + $0x11] sm:$0xff] %v626
    %635 = vst [vmem:[#allocation2 + $0x19] sm:$0xff] %v627
    %636 = vst [vmem:[#allocation2 + $0x29] sm:$0xff] %v628
    %637 = vst [vmem:[#allocation2 + $0x31] sm:$0xff] %v629
    %638 = vst [vmem:[#allocation2 + $0x39] sm:$0xff] %v630
    %639 = vst [vmem:[#allocation2 + $0x41] sm:$0xff] %v631
    %s640 = scalar_lea.vmem %s3, 1
    %v641 = vld [vmem:[%s640] sm:$0x1]
    %s642 = scalar_lea.vmem %s4, 1
    %v643 = vld [vmem:[%s642] sm:$0x1]
    %v644 = vld [vmem:[#allocation2] sm:$0xff]
    %v645 = vld [vmem:[#allocation2 + $0x8] sm:$0xff]
    %v646 = vld [vmem:[#allocation2 + $0x10] sm:$0xff]
    %v647 = vld [vmem:[#allocation2 + $0x18] sm:$0xff]
    %v648 = vld [vmem:[#allocation2 + $0x28] sm:$0xff]
    %v649 = vld [vmem:[#allocation2 + $0x30] sm:$0xff]
    %v650 = vld [vmem:[#allocation2 + $0x38] sm:$0xff]
    %v651 = vld [vmem:[#allocation2 + $0x40] sm:$0xff]
    %v652 = vpack.c.bf16 %v645, %v644
    %v653 = vpack.c.bf16 %v647, %v646
    %v654 = vpack.c.bf16 %v649, %v648
    %v655 = vpack.c.bf16 %v651, %v650
    %s656 = scalar_lea.vmem [#allocation8], 192
    %v657 = vld [vmem:[%s656] sm:$0xf]
    %v658 = vld [vmem:[%s656 + $0x4] sm:$0xf]
    %v659 = vld [vmem:[%s656 + $0x8] sm:$0xf]
    %v660 = vld [vmem:[%s656 + $0xc] sm:$0xf]
    %v661 = vld [vmem:[%s656 + $0x10] sm:$0xf]
    %v662 = vld [vmem:[%s656 + $0x14] sm:$0xf]
    %v663 = vld [vmem:[%s656 + $0x18] sm:$0xf]
    %v664 = vld [vmem:[%s656 + $0x1c] sm:$0xf]
    %v665 = vld [vmem:[%s656 + $0x20] sm:$0xf]
    %v666 = vld [vmem:[%s656 + $0x24] sm:$0xf]
    %v667 = vld [vmem:[%s656 + $0x28] sm:$0xf]
    %v668 = vld [vmem:[%s656 + $0x2c] sm:$0xf]
    %v669 = vld [vmem:[%s656 + $0x30] sm:$0xf]
    %v670 = vld [vmem:[%s656 + $0x34] sm:$0xf]
    %v671 = vld [vmem:[%s656 + $0x38] sm:$0xf]
    %v672 = vld [vmem:[%s656 + $0x3c] sm:$0xf]
    %v673 = vld [vmem:[#allocation2 + $0x1] sm:$0xff]
    %v674 = vld [vmem:[#allocation2 + $0x9] sm:$0xff]
    %v675 = vld [vmem:[#allocation2 + $0x11] sm:$0xff]
    %v676 = vld [vmem:[#allocation2 + $0x19] sm:$0xff]
    %v677 = vld [vmem:[#allocation2 + $0x29] sm:$0xff]
    %v678 = vld [vmem:[#allocation2 + $0x31] sm:$0xff]
    %v679 = vld [vmem:[#allocation2 + $0x39] sm:$0xff]
    %v680 = vld [vmem:[#allocation2 + $0x41] sm:$0xff]
    %v681 = vpack.c.bf16 %v674, %v673
    %v682 = vpack.c.bf16 %v676, %v675
    %v683 = vpack.c.bf16 %v678, %v677
    %v684 = vpack.c.bf16 %v680, %v679
    %s685 = scalar_lea.vmem [#allocation8], 256
    %v686 = vld [vmem:[%s685] sm:$0xf]
    %v687 = vld [vmem:[%s685 + $0x4] sm:$0xf]
    %v688 = vld [vmem:[%s685 + $0x8] sm:$0xf]
    %v689 = vld [vmem:[%s685 + $0xc] sm:$0xf]
    %v690 = vld [vmem:[%s685 + $0x10] sm:$0xf]
    %v691 = vld [vmem:[%s685 + $0x14] sm:$0xf]
    %v692 = vld [vmem:[%s685 + $0x18] sm:$0xf]
    %v693 = vld [vmem:[%s685 + $0x1c] sm:$0xf]
    %v694 = vld [vmem:[%s685 + $0x20] sm:$0xf]
    %v695 = vld [vmem:[%s685 + $0x24] sm:$0xf]
    %v696 = vld [vmem:[%s685 + $0x28] sm:$0xf]
    %v697 = vld [vmem:[%s685 + $0x2c] sm:$0xf]
    %v698 = vld [vmem:[%s685 + $0x30] sm:$0xf]
    %v699 = vld [vmem:[%s685 + $0x34] sm:$0xf]
    %v700 = vld [vmem:[%s685 + $0x38] sm:$0xf]
    %v701 = vld [vmem:[%s685 + $0x3c] sm:$0xf]
    %v718 = vunpack.c.l.b16 %v686
    %v719 = vunpack.c.l.b16 %v687
    %v720 = vunpack.c.l.b16 %v688
    %v721 = vunpack.c.l.b16 %v689
    %v722 = vunpack.c.l.b16 %v690
    %v723 = vunpack.c.l.b16 %v691
    %v724 = vunpack.c.l.b16 %v692
    %v725 = vunpack.c.l.b16 %v693
    %v726 = vunpack.c.l.b16 %v694
    %v727 = vunpack.c.l.b16 %v695
    %v728 = vunpack.c.l.b16 %v696
    %v729 = vunpack.c.l.b16 %v697
    %v730 = vunpack.c.l.b16 %v698
    %v731 = vunpack.c.l.b16 %v699
    %v732 = vunpack.c.l.b16 %v700
    %v733 = vunpack.c.l.b16 %v701
    %v734 = vpack.c.b16 %v719, %v718
    %v735 = vpack.c.b16 %v721, %v720
    %v736 = vpack.c.b16 %v723, %v722
    %v737 = vpack.c.b16 %v725, %v724
    %v738 = vpack.c.b16 %v727, %v726
    %v739 = vpack.c.b16 %v729, %v728
    %v740 = vpack.c.b16 %v731, %v730
    %v741 = vpack.c.b16 %v733, %v732
    %750 = vmatprep.subr.bf16.mxu0 0
    %751 = vmatpush1.bf16.msra.mxu0 %v734
    %752 = vmatprep.subr.bf16.mxu0 0
    %753 = vmatpush1.bf16.msra.mxu0 %v735
    %754 = vmatprep.subr.bf16.mxu0 0
    %755 = vmatpush1.bf16.msra.mxu0 %v736
    %756 = vmatprep.subr.bf16.mxu0 0
    %757 = vmatpush1.bf16.msra.mxu0 %v737
    %758 = vmatprep.subr.bf16.mxu0 0
    %759 = vmatpush1.bf16.msra.mxu0 %v738
    %760 = vmatprep.subr.bf16.mxu0 0
    %761 = vmatpush1.bf16.msra.mxu0 %v739
    %762 = vmatprep.subr.bf16.mxu0 0
    %763 = vmatpush1.bf16.msra.mxu0 %v740
    %764 = vmatprep.subr.bf16.mxu0 0
    %765 = vmatpush1.bf16.msra.mxu0 %v741
    %766 = vmatprep.subr.bf16.mxu0 0
    %767 = vmatpush1.bf16.msra.mxu0 0
    %768 = vmatprep.subr.bf16.mxu0 0
    %769 = vmatpush1.bf16.msra.mxu0 0
    %770 = vmatprep.subr.bf16.mxu0 0
    %771 = vmatpush1.bf16.msra.mxu0 0
    %772 = vmatprep.subr.bf16.mxu0 0
    %773 = vmatpush1.bf16.msra.mxu0 0
    %774 = vmatprep.subr.bf16.mxu0 0
    %775 = vmatpush1.bf16.msra.mxu0 0
    %776 = vmatprep.subr.bf16.mxu0 0
    %777 = vmatpush1.bf16.msra.mxu0 0
    %778 = vmatprep.subr.bf16.mxu0 0
    %779 = vmatpush1.bf16.msra.mxu0 0
    %780 = vmatprep.subr.bf16.mxu0 0
    %781 = vmatpush1.bf16.msra.mxu0 0
    %782 = vmatprep.mubr.bf16.mxu0 0
    %783 = vmatmul.mubr.bf16.gmra.mrb[0].mxu0 %v681
    %v784 = vpop.f32.mrb[0].mxu0
    %v785 = vadd.f32 0.0, %v784
    %v786 = vpop.f32.mrb[0].mxu0
    %v787 = vpop.f32.mrb[0].mxu0
    %v788 = vadd.f32 0.0, %v787
    %v789 = vpop.f32.mrb[0].mxu0
    %790 = vmatprep.mubr.bf16.mxu0 0
    %791 = vmatmul.mubr.bf16.gmra.mrb[0].mxu0 %v682
    %v792 = vpop.f32.mrb[0].mxu0
    %v793 = vadd.f32 0.0, %v792
    %v794 = vpop.f32.mrb[0].mxu0
    %v795 = vpop.f32.mrb[0].mxu0
    %v796 = vadd.f32 0.0, %v795
    %v797 = vpop.f32.mrb[0].mxu0
    %798 = vmatprep.mubr.bf16.mxu0 0
    %799 = vmatmul.mubr.bf16.gmra.mrb[0].mxu0 %v683
    %v800 = vpop.f32.mrb[0].mxu0
    %v801 = vadd.f32 0.0, %v800
    %v802 = vpop.f32.mrb[0].mxu0
    %v803 = vpop.f32.mrb[0].mxu0
    %v804 = vadd.f32 0.0, %v803
    %v805 = vpop.f32.mrb[0].mxu0
    %806 = vmatprep.mubr.bf16.mxu0 0
    %807 = vmatmul.mubr.bf16.gmra.mrb[0].mxu0 %v684
    %v808 = vpop.f32.mrb[0].mxu0
    %v809 = vadd.f32 0.0, %v808
    %v810 = vpop.f32.mrb[0].mxu0
    %v811 = vpop.f32.mrb[0].mxu0
    %v812 = vadd.f32 0.0, %v811
    %v813 = vpop.f32.mrb[0].mxu0
    %814 = vdwg.mxu0
    %v831 = vunpack.c.l.b16 %v657
    %v832 = vunpack.c.l.b16 %v658
    %v833 = vunpack.c.l.b16 %v659
    %v834 = vunpack.c.l.b16 %v660
    %v835 = vunpack.c.l.b16 %v661
    %v836 = vunpack.c.l.b16 %v662
    %v837 = vunpack.c.l.b16 %v663
    %v838 = vunpack.c.l.b16 %v664
    %v839 = vunpack.c.l.b16 %v665
    %v840 = vunpack.c.l.b16 %v666
    %v841 = vunpack.c.l.b16 %v667
    %v842 = vunpack.c.l.b16 %v668
    %v843 = vunpack.c.l.b16 %v669
    %v844 = vunpack.c.l.b16 %v670
    %v845 = vunpack.c.l.b16 %v671
    %v846 = vunpack.c.l.b16 %v672
    %v847 = vpack.c.b16 %v832, %v831
    %v848 = vpack.c.b16 %v834, %v833
    %v849 = vpack.c.b16 %v836, %v835
    %v850 = vpack.c.b16 %v838, %v837
    %v851 = vpack.c.b16 %v840, %v839
    %v852 = vpack.c.b16 %v842, %v841
    %v853 = vpack.c.b16 %v844, %v843
    %v854 = vpack.c.b16 %v846, %v845
    %863 = vmatprep.subr.bf16.mxu0 0
    %864 = vmatpush1.bf16.msra.mxu0 %v847
    %865 = vmatprep.subr.bf16.mxu0 0
    %866 = vmatpush1.bf16.msra.mxu0 %v848
    %867 = vmatprep.subr.bf16.mxu0 0
    %868 = vmatpush1.bf16.msra.mxu0 %v849
    %869 = vmatprep.subr.bf16.mxu0 0
    %870 = vmatpush1.bf16.msra.mxu0 %v850
    %871 = vmatprep.subr.bf16.mxu0 0
    %872 = vmatpush1.bf16.msra.mxu0 %v851
    %873 = vmatprep.subr.bf16.mxu0 0
    %874 = vmatpush1.bf16.msra.mxu0 %v852
    %875 = vmatprep.subr.bf16.mxu0 0
    %876 = vmatpush1.bf16.msra.mxu0 %v853
    %877 = vmatprep.subr.bf16.mxu0 0
    %878 = vmatpush1.bf16.msra.mxu0 %v854
    %879 = vmatprep.subr.bf16.mxu0 0
    %880 = vmatpush1.bf16.msra.mxu0 0
    %881 = vmatprep.subr.bf16.mxu0 0
    %882 = vmatpush1.bf16.msra.mxu0 0
    %883 = vmatprep.subr.bf16.mxu0 0
    %884 = vmatpush1.bf16.msra.mxu0 0
    %885 = vmatprep.subr.bf16.mxu0 0
    %886 = vmatpush1.bf16.msra.mxu0 0
    %887 = vmatprep.subr.bf16.mxu0 0
    %888 = vmatpush1.bf16.msra.mxu0 0
    %889 = vmatprep.subr.bf16.mxu0 0
    %890 = vmatpush1.bf16.msra.mxu0 0
    %891 = vmatprep.subr.bf16.mxu0 0
    %892 = vmatpush1.bf16.msra.mxu0 0
    %893 = vmatprep.subr.bf16.mxu0 0
    %894 = vmatpush1.bf16.msra.mxu0 0
    %895 = vmatprep.mubr.bf16.mxu0 0
    %896 = vmatmul.mubr.bf16.gmra.mrb[0].mxu0 %v652
    %v897 = vpop.f32.mrb[0].mxu0
    %v898 = vadd.f32 %v785, %v897
    %v899 = vpop.f32.mrb[0].mxu0
    %v900 = vpop.f32.mrb[0].mxu0
    %v901 = vadd.f32 %v788, %v900
    %v902 = vpop.f32.mrb[0].mxu0
    %903 = vmatprep.mubr.bf16.mxu0 0
    %904 = vmatmul.mubr.bf16.gmra.mrb[0].mxu0 %v653
    %v905 = vpop.f32.mrb[0].mxu0
    %v906 = vadd.f32 %v793, %v905
    %v907 = vpop.f32.mrb[0].mxu0
    %v908 = vpop.f32.mrb[0].mxu0
    %v909 = vadd.f32 %v796, %v908
    %v910 = vpop.f32.mrb[0].mxu0
    %911 = vmatprep.mubr.bf16.mxu0 0
    %912 = vmatmul.mubr.bf16.gmra.mrb[0].mxu0 %v654
    %v913 = vpop.f32.mrb[0].mxu0
    %v914 = vadd.f32 %v801, %v913
    %v915 = vpop.f32.mrb[0].mxu0
    %v916 = vpop.f32.mrb[0].mxu0
    %v917 = vadd.f32 %v804, %v916
    %v918 = vpop.f32.mrb[0].mxu0
    %919 = vmatprep.mubr.bf16.mxu0 0
    %920 = vmatmul.mubr.bf16.gmra.mrb[0].mxu0 %v655
    %v921 = vpop.f32.mrb[0].mxu0
    %v922 = vadd.f32 %v809, %v921
    %v923 = vpop.f32.mrb[0].mxu0
    %v924 = vpop.f32.mrb[0].mxu0
    %v925 = vadd.f32 %v812, %v924
    %v926 = vpop.f32.mrb[0].mxu0
    %927 = vdwg.mxu0
    %v928 = vld [vmem:[#allocation2 + $0x2] sm:$0xff]
    %v929 = vld [vmem:[#allocation2 + $0xa] sm:$0xff]
    %v930 = vld [vmem:[#allocation2 + $0x12] sm:$0xff]
    %v931 = vld [vmem:[#allocation2 + $0x1a] sm:$0xff]
    %v932 = vld [vmem:[#allocation2 + $0x2a] sm:$0xff]
    %v933 = vld [vmem:[#allocation2 + $0x32] sm:$0xff]
    %v934 = vld [vmem:[#allocation2 + $0x3a] sm:$0xff]
    %v935 = vld [vmem:[#allocation2 + $0x42] sm:$0xff]
    %v936 = vpack.c.bf16 %v929, %v928
    %v937 = vpack.c.bf16 %v931, %v930
    %v938 = vpack.c.bf16 %v933, %v932
    %v939 = vpack.c.bf16 %v935, %v934
    %s940 = scalar_lea.vmem [#allocation8], 320
    %v941 = vld [vmem:[%s940] sm:$0xf]
    %v942 = vld [vmem:[%s940 + $0x4] sm:$0xf]
    %v943 = vld [vmem:[%s940 + $0x8] sm:$0xf]
    %v944 = vld [vmem:[%s940 + $0xc] sm:$0xf]
    %v945 = vld [vmem:[%s940 + $0x10] sm:$0xf]
    %v946 = vld [vmem:[%s940 + $0x14] sm:$0xf]
    %v947 = vld [vmem:[%s940 + $0x18] sm:$0xf]
    %v948 = vld [vmem:[%s940 + $0x1c] sm:$0xf]
    %v949 = vld [vmem:[%s940 + $0x20] sm:$0xf]
    %v950 = vld [vmem:[%s940 + $0x24] sm:$0xf]
    %v951 = vld [vmem:[%s940 + $0x28] sm:$0xf]
    %v952 = vld [vmem:[%s940 + $0x2c] sm:$0xf]
    %v953 = vld [vmem:[%s940 + $0x30] sm:$0xf]
    %v954 = vld [vmem:[%s940 + $0x34] sm:$0xf]
    %v955 = vld [vmem:[%s940 + $0x38] sm:$0xf]
    %v956 = vld [vmem:[%s940 + $0x3c] sm:$0xf]
    %v973 = vunpack.c.l.b16 %v941
    %v974 = vunpack.c.l.b16 %v942
    %v975 = vunpack.c.l.b16 %v943
    %v976 = vunpack.c.l.b16 %v944
    %v977 = vunpack.c.l.b16 %v945
    %v978 = vunpack.c.l.b16 %v946
    %v979 = vunpack.c.l.b16 %v947
    %v980 = vunpack.c.l.b16 %v948
    %v981 = vunpack.c.l.b16 %v949
    %v982 = vunpack.c.l.b16 %v950
    %v983 = vunpack.c.l.b16 %v951
    %v984 = vunpack.c.l.b16 %v952
    %v985 = vunpack.c.l.b16 %v953
    %v986 = vunpack.c.l.b16 %v954
    %v987 = vunpack.c.l.b16 %v955
    %v988 = vunpack.c.l.b16 %v956
    %v989 = vpack.c.b16 %v974, %v973
    %v990 = vpack.c.b16 %v976, %v975
    %v991 = vpack.c.b16 %v978, %v977
    %v992 = vpack.c.b16 %v980, %v979
    %v993 = vpack.c.b16 %v982, %v981
    %v994 = vpack.c.b16 %v984, %v983
    %v995 = vpack.c.b16 %v986, %v985
    %v996 = vpack.c.b16 %v988, %v987
    %1005 = vmatprep.subr.bf16.mxu0 0
    %1006 = vmatpush1.bf16.msra.mxu0 %v989
    %1007 = vmatprep.subr.bf16.mxu0 0
    %1008 = vmatpush1.bf16.msra.mxu0 %v990
    %1009 = vmatprep.subr.bf16.mxu0 0
    %1010 = vmatpush1.bf16.msra.mxu0 %v991
    %1011 = vmatprep.subr.bf16.mxu0 0
    %1012 = vmatpush1.bf16.msra.mxu0 %v992
    %1013 = vmatprep.subr.bf16.mxu0 0
    %1014 = vmatpush1.bf16.msra.mxu0 %v993
    %1015 = vmatprep.subr.bf16.mxu0 0
    %1016 = vmatpush1.bf16.msra.mxu0 %v994
    %1017 = vmatprep.subr.bf16.mxu0 0
    %1018 = vmatpush1.bf16.msra.mxu0 %v995
    %1019 = vmatprep.subr.bf16.mxu0 0
    %1020 = vmatpush1.bf16.msra.mxu0 %v996
    %1021 = vmatprep.subr.bf16.mxu0 0
    %1022 = vmatpush1.bf16.msra.mxu0 0
    %1023 = vmatprep.subr.bf16.mxu0 0
    %1024 = vmatpush1.bf16.msra.mxu0 0
    %1025 = vmatprep.subr.bf16.mxu0 0
    %1026 = vmatpush1.bf16.msra.mxu0 0
    %1027 = vmatprep.subr.bf16.mxu0 0
    %1028 = vmatpush1.bf16.msra.mxu0 0
    %1029 = vmatprep.subr.bf16.mxu0 0
    %1030 = vmatpush1.bf16.msra.mxu0 0
    %1031 = vmatprep.subr.bf16.mxu0 0
    %1032 = vmatpush1.bf16.msra.mxu0 0
    %1033 = vmatprep.subr.bf16.mxu0 0
    %1034 = vmatpush1.bf16.msra.mxu0 0
    %1035 = vmatprep.subr.bf16.mxu0 0
    %1036 = vmatpush1.bf16.msra.mxu0 0
    %1037 = vmatprep.mubr.bf16.mxu0 0
    %1038 = vmatmul.mubr.bf16.gmra.mrb[0].mxu0 %v936
    %v1039 = vpop.f32.mrb[0].mxu0
    %v1040 = vadd.f32 0.0, %v1039
    %v1041 = vpop.f32.mrb[0].mxu0
    %v1042 = vpop.f32.mrb[0].mxu0
    %v1043 = vadd.f32 0.0, %v1042
    %v1044 = vpop.f32.mrb[0].mxu0
    %1045 = vmatprep.mubr.bf16.mxu0 0
    %1046 = vmatmul.mubr.bf16.gmra.mrb[0].mxu0 %v937
    %v1047 = vpop.f32.mrb[0].mxu0
    %v1048 = vadd.f32 0.0, %v1047
    %v1049 = vpop.f32.mrb[0].mxu0
    %v1050 = vpop.f32.mrb[0].mxu0
    %v1051 = vadd.f32 0.0, %v1050
    %v1052 = vpop.f32.mrb[0].mxu0
    %1053 = vmatprep.mubr.bf16.mxu0 0
    %1054 = vmatmul.mubr.bf16.gmra.mrb[0].mxu0 %v938
    %v1055 = vpop.f32.mrb[0].mxu0
    %v1056 = vadd.f32 0.0, %v1055
    %v1057 = vpop.f32.mrb[0].mxu0
    %v1058 = vpop.f32.mrb[0].mxu0
    %v1059 = vadd.f32 0.0, %v1058
    %v1060 = vpop.f32.mrb[0].mxu0
    %1061 = vmatprep.mubr.bf16.mxu0 0
    %1062 = vmatmul.mubr.bf16.gmra.mrb[0].mxu0 %v939
    %v1063 = vpop.f32.mrb[0].mxu0
    %v1064 = vadd.f32 0.0, %v1063
    %v1065 = vpop.f32.mrb[0].mxu0
    %v1066 = vpop.f32.mrb[0].mxu0
    %v1067 = vadd.f32 0.0, %v1066
    %v1068 = vpop.f32.mrb[0].mxu0
    %1069 = vdwg.mxu0
    %v1070 = vadd.f32 %v898, %v1040
    %v1071 = vadd.f32 %v901, %v1043
    %v1072 = vadd.f32 %v906, %v1048
    %v1073 = vadd.f32 %v909, %v1051
    %v1074 = vadd.f32 %v914, %v1056
    %v1075 = vadd.f32 %v917, %v1059
    %v1076 = vadd.f32 %v922, %v1064
    %v1077 = vadd.f32 %v925, %v1067
    %v1078 = vadd.f32 %v1070, %v1071
    %v1079 = vadd.f32 %v1078, %v1072
    %v1080 = vadd.f32 %v1079, %v1073
    %v1081 = vadd.f32 %v1080, %v1074
    %v1082 = vadd.f32 %v1081, %v1075
    %v1083 = vadd.f32 %v1082, %v1076
    %v1084 = vadd.f32 %v1083, %v1077
    %v1085 = vrot.slane %v1084, 4
    %v1086 = vadd.f32 %v1084, %v1085
    %v1087 = vrot.slane %v1086, 2
    %v1088 = vadd.f32 %v1086, %v1087
    %v1089 = vrot.slane %v1088, 1
    %v1090 = vadd.f32 %v1088, %v1089
    %1091 = vrot.lane.b32.xlu0 %v1090, 4
    %v1092 = vpop.permute.xlu0 %1091
    %v1093 = vadd.f32 %v1090, %v1092
    %1094 = vrot.lane.b32.xlu0 %v1093, 8
    %v1095 = vpop.permute.xlu0 %1094
    %v1096 = vadd.f32 %v1093, %v1095
    %1097 = vrot.lane.b32.xlu0 %v1096, 16
    %v1098 = vpop.permute.xlu0 %1097
    %v1099 = vadd.f32 %v1096, %v1098
    %1100 = vrot.lane.b32.xlu0 %v1099, 32
    %v1101 = vpop.permute.xlu0 %1100
    %v1102 = vadd.f32 %v1099, %v1101
    %1103 = vrot.lane.b32.xlu0 %v1102, 64
    %v1104 = vpop.permute.xlu0 %1103
    %v1105 = vadd.f32 %v1102, %v1104
    %v1106 = vmul.f32 %v1105, 0.00048828125
    %v1107 = vlaneseq
    %v1108 = vshrl.u32 %v1107, 7
    %v1109 = vsub.s32 0, %v1108
    %v1110 = vrot.slane %v1106, %v1109
    %v1111 = vsub.f32 %v1070, %v1110
    %v1112 = vsub.f32 %v1071, %v1110
    %v1113 = vsub.f32 %v1072, %v1110
    %v1114 = vsub.f32 %v1073, %v1110
    %v1115 = vsub.f32 %v1074, %v1110
    %v1116 = vsub.f32 %v1075, %v1110
    %v1117 = vsub.f32 %v1076, %v1110
    %v1118 = vsub.f32 %v1077, %v1110
    %v1119 = vmul.f32 %v1111, %v1111
    %v1120 = vmul.f32 %v1112, %v1112
    %v1121 = vmul.f32 %v1113, %v1113
    %v1122 = vmul.f32 %v1114, %v1114
    %v1123 = vmul.f32 %v1115, %v1115
    %v1124 = vmul.f32 %v1116, %v1116
    %v1125 = vmul.f32 %v1117, %v1117
    %v1126 = vmul.f32 %v1118, %v1118
    %v1127 = vadd.f32 %v1119, %v1120
    %v1128 = vadd.f32 %v1127, %v1121
    %v1129 = vadd.f32 %v1128, %v1122
    %v1130 = vadd.f32 %v1129, %v1123
    %v1131 = vadd.f32 %v1130, %v1124
    %v1132 = vadd.f32 %v1131, %v1125
    %v1133 = vadd.f32 %v1132, %v1126
    %v1134 = vrot.slane %v1133, 4
    %v1135 = vadd.f32 %v1133, %v1134
    %v1136 = vrot.slane %v1135, 2
    %v1137 = vadd.f32 %v1135, %v1136
    %v1138 = vrot.slane %v1137, 1
    %v1139 = vadd.f32 %v1137, %v1138
    %1140 = vrot.lane.b32.xlu0 %v1139, 4
    %v1141 = vpop.permute.xlu0 %1140
    %v1142 = vadd.f32 %v1139, %v1141
    %1143 = vrot.lane.b32.xlu0 %v1142, 8
    %v1144 = vpop.permute.xlu0 %1143
    %v1145 = vadd.f32 %v1142, %v1144
    %1146 = vrot.lane.b32.xlu0 %v1145, 16
    %v1147 = vpop.permute.xlu0 %1146
    %v1148 = vadd.f32 %v1145, %v1147
    %1149 = vrot.lane.b32.xlu0 %v1148, 32
    %v1150 = vpop.permute.xlu0 %1149
    %v1151 = vadd.f32 %v1148, %v1150
    %1152 = vrot.lane.b32.xlu0 %v1151, 64
    %v1153 = vpop.permute.xlu0 %1152
    %v1154 = vadd.f32 %v1151, %v1153
    %v1155 = vmul.f32 %v1154, 0.00048828125
    %v1156 = vadd.f32 %v1155, 1e-05
    %v1157 = vrsqrt.pop %v1156
    %v1158 = vmul.f32 %v641, %v1157
    %v1160 = vlaneseq
    %v1161 = vshrl.u32 %v1160, 7
    %v1162 = vsub.s32 0, %v1161
    %v1163 = vrot.slane %v1158, %v1162
    %v1165 = vmul.f32 %v1111, %v1163
    %v1166 = vmul.f32 %v1112, %v1163
    %v1167 = vmul.f32 %v1113, %v1163
    %v1168 = vmul.f32 %v1114, %v1163
    %v1169 = vmul.f32 %v1115, %v1163
    %v1170 = vmul.f32 %v1116, %v1163
    %v1171 = vmul.f32 %v1117, %v1163
    %v1172 = vmul.f32 %v1118, %v1163
    %v1174 = vlaneseq
    %v1175 = vshrl.u32 %v1174, 7
    %v1176 = vsub.s32 0, %v1175
    %v1177 = vrot.slane %v643, %v1176
    %v1179 = vadd.f32 %v1165, %v1177
    %v1180 = vadd.f32 %v1166, %v1177
    %v1181 = vadd.f32 %v1167, %v1177
    %v1182 = vadd.f32 %v1168, %v1177
    %v1183 = vadd.f32 %v1169, %v1177
    %v1184 = vadd.f32 %v1170, %v1177
    %v1185 = vadd.f32 %v1171, %v1177
    %v1186 = vadd.f32 %v1172, %v1177
    %v1187 = vmax.f32 %v1179, 0.0
    %v1188 = vmax.f32 %v1180, 0.0
    %v1189 = vmax.f32 %v1181, 0.0
    %v1190 = vmax.f32 %v1182, 0.0
    %v1191 = vmax.f32 %v1183, 0.0
    %v1192 = vmax.f32 %v1184, 0.0
    %v1193 = vmax.f32 %v1185, 0.0
    %v1194 = vmax.f32 %v1186, 0.0
    %1195 = vst [vmem:[#allocation3 + $0x1] sm:$0xff] %v1187
    %1196 = vst [vmem:[#allocation3 + $0x9] sm:$0xff] %v1188
    %1197 = vst [vmem:[#allocation3 + $0x11] sm:$0xff] %v1189
    %1198 = vst [vmem:[#allocation3 + $0x19] sm:$0xff] %v1190
    %1199 = vst [vmem:[#allocation3 + $0x29] sm:$0xff] %v1191
    %1200 = vst [vmem:[#allocation3 + $0x31] sm:$0xff] %v1192
    %1201 = vst [vmem:[#allocation3 + $0x39] sm:$0xff] %v1193
    %1202 = vst [vmem:[#allocation3 + $0x41] sm:$0xff] %v1194
    %v1203 = vld [vmem:[#allocation2 + $0x1] sm:$0xff]
    %v1204 = vld [vmem:[#allocation2 + $0x9] sm:$0xff]
    %v1205 = vld [vmem:[#allocation2 + $0x11] sm:$0xff]
    %v1206 = vld [vmem:[#allocation2 + $0x19] sm:$0xff]
    %v1207 = vld [vmem:[#allocation2 + $0x29] sm:$0xff]
    %v1208 = vld [vmem:[#allocation2 + $0x31] sm:$0xff]
    %v1209 = vld [vmem:[#allocation2 + $0x39] sm:$0xff]
    %v1210 = vld [vmem:[#allocation2 + $0x41] sm:$0xff]
    %s1211 = scalar_lea.vmem %s3, 2
    %v1212 = vld [vmem:[%s1211] sm:$0x1]
    %s1213 = scalar_lea.vmem %s4, 2
    %v1214 = vld [vmem:[%s1213] sm:$0x1]
    %v1215 = vld [vmem:[#allocation3] sm:$0xff]
    %v1216 = vld [vmem:[#allocation3 + $0x8] sm:$0xff]
    %v1217 = vld [vmem:[#allocation3 + $0x10] sm:$0xff]
    %v1218 = vld [vmem:[#allocation3 + $0x18] sm:$0xff]
    %v1219 = vld [vmem:[#allocation3 + $0x28] sm:$0xff]
    %v1220 = vld [vmem:[#allocation3 + $0x30] sm:$0xff]
    %v1221 = vld [vmem:[#allocation3 + $0x38] sm:$0xff]
    %v1222 = vld [vmem:[#allocation3 + $0x40] sm:$0xff]
    %v1223 = vpack.c.bf16 %v1216, %v1215
    %v1224 = vpack.c.bf16 %v1218, %v1217
    %v1225 = vpack.c.bf16 %v1220, %v1219
    %v1226 = vpack.c.bf16 %v1222, %v1221
    %s1227 = scalar_lea.vmem [#allocation8], 384
    %v1228 = vld [vmem:[%s1227] sm:$0xf]
    %v1229 = vld [vmem:[%s1227 + $0x4] sm:$0xf]
    %v1230 = vld [vmem:[%s1227 + $0x8] sm:$0xf]
    %v1231 = vld [vmem:[%s1227 + $0xc] sm:$0xf]
    %v1232 = vld [vmem:[%s1227 + $0x10] sm:$0xf]
    %v1233 = vld [vmem:[%s1227 + $0x14] sm:$0xf]
    %v1234 = vld [vmem:[%s1227 + $0x18] sm:$0xf]
    %v1235 = vld [vmem:[%s1227 + $0x1c] sm:$0xf]
    %v1236 = vld [vmem:[%s1227 + $0x20] sm:$0xf]
    %v1237 = vld [vmem:[%s1227 + $0x24] sm:$0xf]
    %v1238 = vld [vmem:[%s1227 + $0x28] sm:$0xf]
    %v1239 = vld [vmem:[%s1227 + $0x2c] sm:$0xf]
    %v1240 = vld [vmem:[%s1227 + $0x30] sm:$0xf]
    %v1241 = vld [vmem:[%s1227 + $0x34] sm:$0xf]
    %v1242 = vld [vmem:[%s1227 + $0x38] sm:$0xf]
    %v1243 = vld [vmem:[%s1227 + $0x3c] sm:$0xf]
    %v1244 = vld [vmem:[#allocation3 + $0x1] sm:$0xff]
    %v1245 = vld [vmem:[#allocation3 + $0x9] sm:$0xff]
    %v1246 = vld [vmem:[#allocation3 + $0x11] sm:$0xff]
    %v1247 = vld [vmem:[#allocation3 + $0x19] sm:$0xff]
    %v1248 = vld [vmem:[#allocation3 + $0x29] sm:$0xff]
    %v1249 = vld [vmem:[#allocation3 + $0x31] sm:$0xff]
    %v1250 = vld [vmem:[#allocation3 + $0x39] sm:$0xff]
    %v1251 = vld [vmem:[#allocation3 + $0x41] sm:$0xff]
    %v1252 = vpack.c.bf16 %v1245, %v1244
    %v1253 = vpack.c.bf16 %v1247, %v1246
    %v1254 = vpack.c.bf16 %v1249, %v1248
    %v1255 = vpack.c.bf16 %v1251, %v1250
    %s1256 = scalar_lea.vmem [#allocation8], 448
    %v1257 = vld [vmem:[%s1256] sm:$0xf]
    %v1258 = vld [vmem:[%s1256 + $0x4] sm:$0xf]
    %v1259 = vld [vmem:[%s1256 + $0x8] sm:$0xf]
    %v1260 = vld [vmem:[%s1256 + $0xc] sm:$0xf]
    %v1261 = vld [vmem:[%s1256 + $0x10] sm:$0xf]
    %v1262 = vld [vmem:[%s1256 + $0x14] sm:$0xf]
    %v1263 = vld [vmem:[%s1256 + $0x18] sm:$0xf]
    %v1264 = vld [vmem:[%s1256 + $0x1c] sm:$0xf]
    %v1265 = vld [vmem:[%s1256 + $0x20] sm:$0xf]
    %v1266 = vld [vmem:[%s1256 + $0x24] sm:$0xf]
    %v1267 = vld [vmem:[%s1256 + $0x28] sm:$0xf]
    %v1268 = vld [vmem:[%s1256 + $0x2c] sm:$0xf]
    %v1269 = vld [vmem:[%s1256 + $0x30] sm:$0xf]
    %v1270 = vld [vmem:[%s1256 + $0x34] sm:$0xf]
    %v1271 = vld [vmem:[%s1256 + $0x38] sm:$0xf]
    %v1272 = vld [vmem:[%s1256 + $0x3c] sm:$0xf]
    %v1289 = vunpack.c.l.b16 %v1257
    %v1290 = vunpack.c.l.b16 %v1258
    %v1291 = vunpack.c.l.b16 %v1259
    %v1292 = vunpack.c.l.b16 %v1260
    %v1293 = vunpack.c.l.b16 %v1261
    %v1294 = vunpack.c.l.b16 %v1262
    %v1295 = vunpack.c.l.b16 %v1263
    %v1296 = vunpack.c.l.b16 %v1264
    %v1297 = vunpack.c.l.b16 %v1265
    %v1298 = vunpack.c.l.b16 %v1266
    %v1299 = vunpack.c.l.b16 %v1267
    %v1300 = vunpack.c.l.b16 %v1268
    %v1301 = vunpack.c.l.b16 %v1269
    %v1302 = vunpack.c.l.b16 %v1270
    %v1303 = vunpack.c.l.b16 %v1271
    %v1304 = vunpack.c.l.b16 %v1272
    %v1305 = vpack.c.b16 %v1290, %v1289
    %v1306 = vpack.c.b16 %v1292, %v1291
    %v1307 = vpack.c.b16 %v1294, %v1293
    %v1308 = vpack.c.b16 %v1296, %v1295
    %v1309 = vpack.c.b16 %v1298, %v1297
    %v1310 = vpack.c.b16 %v1300, %v1299
    %v1311 = vpack.c.b16 %v1302, %v1301
    %v1312 = vpack.c.b16 %v1304, %v1303
    %1321 = vmatprep.subr.bf16.mxu0 0
    %1322 = vmatpush1.bf16.msra.mxu0 %v1305
    %1323 = vmatprep.subr.bf16.mxu0 0
    %1324 = vmatpush1.bf16.msra.mxu0 %v1306
    %1325 = vmatprep.subr.bf16.mxu0 0
    %1326 = vmatpush1.bf16.msra.mxu0 %v1307
    %1327 = vmatprep.subr.bf16.mxu0 0
    %1328 = vmatpush1.bf16.msra.mxu0 %v1308
    %1329 = vmatprep.subr.bf16.mxu0 0
    %1330 = vmatpush1.bf16.msra.mxu0 %v1309
    %1331 = vmatprep.subr.bf16.mxu0 0
    %1332 = vmatpush1.bf16.msra.mxu0 %v1310
    %1333 = vmatprep.subr.bf16.mxu0 0
    %1334 = vmatpush1.bf16.msra.mxu0 %v1311
    %1335 = vmatprep.subr.bf16.mxu0 0
    %1336 = vmatpush1.bf16.msra.mxu0 %v1312
    %1337 = vmatprep.subr.bf16.mxu0 0
    %1338 = vmatpush1.bf16.msra.mxu0 0
    %1339 = vmatprep.subr.bf16.mxu0 0
    %1340 = vmatpush1.bf16.msra.mxu0 0
    %1341 = vmatprep.subr.bf16.mxu0 0
    %1342 = vmatpush1.bf16.msra.mxu0 0
    %1343 = vmatprep.subr.bf16.mxu0 0
    %1344 = vmatpush1.bf16.msra.mxu0 0
    %1345 = vmatprep.subr.bf16.mxu0 0
    %1346 = vmatpush1.bf16.msra.mxu0 0
    %1347 = vmatprep.subr.bf16.mxu0 0
    %1348 = vmatpush1.bf16.msra.mxu0 0
    %1349 = vmatprep.subr.bf16.mxu0 0
    %1350 = vmatpush1.bf16.msra.mxu0 0
    %1351 = vmatprep.subr.bf16.mxu0 0
    %1352 = vmatpush1.bf16.msra.mxu0 0
    %1353 = vmatprep.mubr.bf16.mxu0 0
    %1354 = vmatmul.mubr.bf16.gmra.mrb[0].mxu0 %v1252
    %v1355 = vpop.f32.mrb[0].mxu0
    %v1356 = vadd.f32 0.0, %v1355
    %v1357 = vpop.f32.mrb[0].mxu0
    %v1358 = vpop.f32.mrb[0].mxu0
    %v1359 = vadd.f32 0.0, %v1358
    %v1360 = vpop.f32.mrb[0].mxu0
    %1361 = vmatprep.mubr.bf16.mxu0 0
    %1362 = vmatmul.mubr.bf16.gmra.mrb[0].mxu0 %v1253
    %v1363 = vpop.f32.mrb[0].mxu0
    %v1364 = vadd.f32 0.0, %v1363
    %v1365 = vpop.f32.mrb[0].mxu0
    %v1366 = vpop.f32.mrb[0].mxu0
    %v1367 = vadd.f32 0.0, %v1366
    %v1368 = vpop.f32.mrb[0].mxu0
    %1369 = vmatprep.mubr.bf16.mxu0 0
    %1370 = vmatmul.mubr.bf16.gmra.mrb[0].mxu0 %v1254
    %v1371 = vpop.f32.mrb[0].mxu0
    %v1372 = vadd.f32 0.0, %v1371
    %v1373 = vpop.f32.mrb[0].mxu0
    %v1374 = vpop.f32.mrb[0].mxu0
    %v1375 = vadd.f32 0.0, %v1374
    %v1376 = vpop.f32.mrb[0].mxu0
    %1377 = vmatprep.mubr.bf16.mxu0 0
    %1378 = vmatmul.mubr.bf16.gmra.mrb[0].mxu0 %v1255
    %v1379 = vpop.f32.mrb[0].mxu0
    %v1380 = vadd.f32 0.0, %v1379
    %v1381 = vpop.f32.mrb[0].mxu0
    %v1382 = vpop.f32.mrb[0].mxu0
    %v1383 = vadd.f32 0.0, %v1382
    %v1384 = vpop.f32.mrb[0].mxu0
    %1385 = vdwg.mxu0
    %v1402 = vunpack.c.l.b16 %v1228
    %v1403 = vunpack.c.l.b16 %v1229
    %v1404 = vunpack.c.l.b16 %v1230
    %v1405 = vunpack.c.l.b16 %v1231
    %v1406 = vunpack.c.l.b16 %v1232
    %v1407 = vunpack.c.l.b16 %v1233
    %v1408 = vunpack.c.l.b16 %v1234
    %v1409 = vunpack.c.l.b16 %v1235
    %v1410 = vunpack.c.l.b16 %v1236
    %v1411 = vunpack.c.l.b16 %v1237
    %v1412 = vunpack.c.l.b16 %v1238
    %v1413 = vunpack.c.l.b16 %v1239
    %v1414 = vunpack.c.l.b16 %v1240
    %v1415 = vunpack.c.l.b16 %v1241
    %v1416 = vunpack.c.l.b16 %v1242
    %v1417 = vunpack.c.l.b16 %v1243
    %v1418 = vpack.c.b16 %v1403, %v1402
    %v1419 = vpack.c.b16 %v1405, %v1404
    %v1420 = vpack.c.b16 %v1407, %v1406
    %v1421 = vpack.c.b16 %v1409, %v1408
    %v1422 = vpack.c.b16 %v1411, %v1410
    %v1423 = vpack.c.b16 %v1413, %v1412
    %v1424 = vpack.c.b16 %v1415, %v1414
    %v1425 = vpack.c.b16 %v1417, %v1416
    %1434 = vmatprep.subr.bf16.mxu0 0
    %1435 = vmatpush1.bf16.msra.mxu0 %v1418
    %1436 = vmatprep.subr.bf16.mxu0 0
    %1437 = vmatpush1.bf16.msra.mxu0 %v1419
    %1438 = vmatprep.subr.bf16.mxu0 0
    %1439 = vmatpush1.bf16.msra.mxu0 %v1420
    %1440 = vmatprep.subr.bf16.mxu0 0
    %1441 = vmatpush1.bf16.msra.mxu0 %v1421
    %1442 = vmatprep.subr.bf16.mxu0 0
    %1443 = vmatpush1.bf16.msra.mxu0 %v1422
    %1444 = vmatprep.subr.bf16.mxu0 0
    %1445 = vmatpush1.bf16.msra.mxu0 %v1423
    %1446 = vmatprep.subr.bf16.mxu0 0
    %1447 = vmatpush1.bf16.msra.mxu0 %v1424
    %1448 = vmatprep.subr.bf16.mxu0 0
    %1449 = vmatpush1.bf16.msra.mxu0 %v1425
    %1450 = vmatprep.subr.bf16.mxu0 0
    %1451 = vmatpush1.bf16.msra.mxu0 0
    %1452 = vmatprep.subr.bf16.mxu0 0
    %1453 = vmatpush1.bf16.msra.mxu0 0
    %1454 = vmatprep.subr.bf16.mxu0 0
    %1455 = vmatpush1.bf16.msra.mxu0 0
    %1456 = vmatprep.subr.bf16.mxu0 0
    %1457 = vmatpush1.bf16.msra.mxu0 0
    %1458 = vmatprep.subr.bf16.mxu0 0
    %1459 = vmatpush1.bf16.msra.mxu0 0
    %1460 = vmatprep.subr.bf16.mxu0 0
    %1461 = vmatpush1.bf16.msra.mxu0 0
    %1462 = vmatprep.subr.bf16.mxu0 0
    %1463 = vmatpush1.bf16.msra.mxu0 0
    %1464 = vmatprep.subr.bf16.mxu0 0
    %1465 = vmatpush1.bf16.msra.mxu0 0
    %1466 = vmatprep.mubr.bf16.mxu0 0
    %1467 = vmatmul.mubr.bf16.gmra.mrb[0].mxu0 %v1223
    %v1468 = vpop.f32.mrb[0].mxu0
    %v1469 = vadd.f32 %v1356, %v1468
    %v1470 = vpop.f32.mrb[0].mxu0
    %v1471 = vpop.f32.mrb[0].mxu0
    %v1472 = vadd.f32 %v1359, %v1471
    %v1473 = vpop.f32.mrb[0].mxu0
    %1474 = vmatprep.mubr.bf16.mxu0 0
    %1475 = vmatmul.mubr.bf16.gmra.mrb[0].mxu0 %v1224
    %v1476 = vpop.f32.mrb[0].mxu0
    %v1477 = vadd.f32 %v1364, %v1476
    %v1478 = vpop.f32.mrb[0].mxu0
    %v1479 = vpop.f32.mrb[0].mxu0
    %v1480 = vadd.f32 %v1367, %v1479
    %v1481 = vpop.f32.mrb[0].mxu0
    %1482 = vmatprep.mubr.bf16.mxu0 0
    %1483 = vmatmul.mubr.bf16.gmra.mrb[0].mxu0 %v1225
    %v1484 = vpop.f32.mrb[0].mxu0
    %v1485 = vadd.f32 %v1372, %v1484
    %v1486 = vpop.f32.mrb[0].mxu0
    %v1487 = vpop.f32.mrb[0].mxu0
    %v1488 = vadd.f32 %v1375, %v1487
    %v1489 = vpop.f32.mrb[0].mxu0
    %1490 = vmatprep.mubr.bf16.mxu0 0
    %1491 = vmatmul.mubr.bf16.gmra.mrb[0].mxu0 %v1226
    %v1492 = vpop.f32.mrb[0].mxu0
    %v1493 = vadd.f32 %v1380, %v1492
    %v1494 = vpop.f32.mrb[0].mxu0
    %v1495 = vpop.f32.mrb[0].mxu0
    %v1496 = vadd.f32 %v1383, %v1495
    %v1497 = vpop.f32.mrb[0].mxu0
    %1498 = vdwg.mxu0
    %v1499 = vld [vmem:[#allocation3 + $0x2] sm:$0xff]
    %v1500 = vld [vmem:[#allocation3 + $0xa] sm:$0xff]
    %v1501 = vld [vmem:[#allocation3 + $0x12] sm:$0xff]
    %v1502 = vld [vmem:[#allocation3 + $0x1a] sm:$0xff]
    %v1503 = vld [vmem:[#allocation3 + $0x2a] sm:$0xff]
    %v1504 = vld [vmem:[#allocation3 + $0x32] sm:$0xff]
    %v1505 = vld [vmem:[#allocation3 + $0x3a] sm:$0xff]
    %v1506 = vld [vmem:[#allocation3 + $0x42] sm:$0xff]
    %v1507 = vpack.c.bf16 %v1500, %v1499
    %v1508 = vpack.c.bf16 %v1502, %v1501
    %v1509 = vpack.c.bf16 %v1504, %v1503
    %v1510 = vpack.c.bf16 %v1506, %v1505
    %s1511 = scalar_lea.vmem [#allocation8], 512
    %v1512 = vld [vmem:[%s1511] sm:$0xf]
    %v1513 = vld [vmem:[%s1511 + $0x4] sm:$0xf]
    %v1514 = vld [vmem:[%s1511 + $0x8] sm:$0xf]
    %v1515 = vld [vmem:[%s1511 + $0xc] sm:$0xf]
    %v1516 = vld [vmem:[%s1511 + $0x10] sm:$0xf]
    %v1517 = vld [vmem:[%s1511 + $0x14] sm:$0xf]
    %v1518 = vld [vmem:[%s1511 + $0x18] sm:$0xf]
    %v1519 = vld [vmem:[%s1511 + $0x1c] sm:$0xf]
    %v1520 = vld [vmem:[%s1511 + $0x20] sm:$0xf]
    %v1521 = vld [vmem:[%s1511 + $0x24] sm:$0xf]
    %v1522 = vld [vmem:[%s1511 + $0x28] sm:$0xf]
    %v1523 = vld [vmem:[%s1511 + $0x2c] sm:$0xf]
    %v1524 = vld [vmem:[%s1511 + $0x30] sm:$0xf]
    %v1525 = vld [vmem:[%s1511 + $0x34] sm:$0xf]
    %v1526 = vld [vmem:[%s1511 + $0x38] sm:$0xf]
    %v1527 = vld [vmem:[%s1511 + $0x3c] sm:$0xf]
    %v1544 = vunpack.c.l.b16 %v1512
    %v1545 = vunpack.c.l.b16 %v1513
    %v1546 = vunpack.c.l.b16 %v1514
    %v1547 = vunpack.c.l.b16 %v1515
    %v1548 = vunpack.c.l.b16 %v1516
    %v1549 = vunpack.c.l.b16 %v1517
    %v1550 = vunpack.c.l.b16 %v1518
    %v1551 = vunpack.c.l.b16 %v1519
    %v1552 = vunpack.c.l.b16 %v1520
    %v1553 = vunpack.c.l.b16 %v1521
    %v1554 = vunpack.c.l.b16 %v1522
    %v1555 = vunpack.c.l.b16 %v1523
    %v1556 = vunpack.c.l.b16 %v1524
    %v1557 = vunpack.c.l.b16 %v1525
    %v1558 = vunpack.c.l.b16 %v1526
    %v1559 = vunpack.c.l.b16 %v1527
    %v1560 = vpack.c.b16 %v1545, %v1544
    %v1561 = vpack.c.b16 %v1547, %v1546
    %v1562 = vpack.c.b16 %v1549, %v1548
    %v1563 = vpack.c.b16 %v1551, %v1550
    %v1564 = vpack.c.b16 %v1553, %v1552
    %v1565 = vpack.c.b16 %v1555, %v1554
    %v1566 = vpack.c.b16 %v1557, %v1556
    %v1567 = vpack.c.b16 %v1559, %v1558
    %1576 = vmatprep.subr.bf16.mxu0 0
    %1577 = vmatpush1.bf16.msra.mxu0 %v1560
    %1578 = vmatprep.subr.bf16.mxu0 0
    %1579 = vmatpush1.bf16.msra.mxu0 %v1561
    %1580 = vmatprep.subr.bf16.mxu0 0
    %1581 = vmatpush1.bf16.msra.mxu0 %v1562
    %1582 = vmatprep.subr.bf16.mxu0 0
    %1583 = vmatpush1.bf16.msra.mxu0 %v1563
    %1584 = vmatprep.subr.bf16.mxu0 0
    %1585 = vmatpush1.bf16.msra.mxu0 %v1564
    %1586 = vmatprep.subr.bf16.mxu0 0
    %1587 = vmatpush1.bf16.msra.mxu0 %v1565
    %1588 = vmatprep.subr.bf16.mxu0 0
    %1589 = vmatpush1.bf16.msra.mxu0 %v1566
    %1590 = vmatprep.subr.bf16.mxu0 0
    %1591 = vmatpush1.bf16.msra.mxu0 %v1567
    %1592 = vmatprep.subr.bf16.mxu0 0
    %1593 = vmatpush1.bf16.msra.mxu0 0
    %1594 = vmatprep.subr.bf16.mxu0 0
    %1595 = vmatpush1.bf16.msra.mxu0 0
    %1596 = vmatprep.subr.bf16.mxu0 0
    %1597 = vmatpush1.bf16.msra.mxu0 0
    %1598 = vmatprep.subr.bf16.mxu0 0
    %1599 = vmatpush1.bf16.msra.mxu0 0
    %1600 = vmatprep.subr.bf16.mxu0 0
    %1601 = vmatpush1.bf16.msra.mxu0 0
    %1602 = vmatprep.subr.bf16.mxu0 0
    %1603 = vmatpush1.bf16.msra.mxu0 0
    %1604 = vmatprep.subr.bf16.mxu0 0
    %1605 = vmatpush1.bf16.msra.mxu0 0
    %1606 = vmatprep.subr.bf16.mxu0 0
    %1607 = vmatpush1.bf16.msra.mxu0 0
    %1608 = vmatprep.mubr.bf16.mxu0 0
    %1609 = vmatmul.mubr.bf16.gmra.mrb[0].mxu0 %v1507
    %v1610 = vpop.f32.mrb[0].mxu0
    %v1611 = vadd.f32 0.0, %v1610
    %v1612 = vpop.f32.mrb[0].mxu0
    %v1613 = vpop.f32.mrb[0].mxu0
    %v1614 = vadd.f32 0.0, %v1613
    %v1615 = vpop.f32.mrb[0].mxu0
    %1616 = vmatprep.mubr.bf16.mxu0 0
    %1617 = vmatmul.mubr.bf16.gmra.mrb[0].mxu0 %v1508
    %v1618 = vpop.f32.mrb[0].mxu0
    %v1619 = vadd.f32 0.0, %v1618
    %v1620 = vpop.f32.mrb[0].mxu0
    %v1621 = vpop.f32.mrb[0].mxu0
    %v1622 = vadd.f32 0.0, %v1621
    %v1623 = vpop.f32.mrb[0].mxu0
    %1624 = vmatprep.mubr.bf16.mxu0 0
    %1625 = vmatmul.mubr.bf16.gmra.mrb[0].mxu0 %v1509
    %v1626 = vpop.f32.mrb[0].mxu0
    %v1627 = vadd.f32 0.0, %v1626
    %v1628 = vpop.f32.mrb[0].mxu0
    %v1629 = vpop.f32.mrb[0].mxu0
    %v1630 = vadd.f32 0.0, %v1629
    %v1631 = vpop.f32.mrb[0].mxu0
    %1632 = vmatprep.mubr.bf16.mxu0 0
    %1633 = vmatmul.mubr.bf16.gmra.mrb[0].mxu0 %v1510
    %v1634 = vpop.f32.mrb[0].mxu0
    %v1635 = vadd.f32 0.0, %v1634
    %v1636 = vpop.f32.mrb[0].mxu0
    %v1637 = vpop.f32.mrb[0].mxu0
    %v1638 = vadd.f32 0.0, %v1637
    %v1639 = vpop.f32.mrb[0].mxu0
    %1640 = vdwg.mxu0
    %v1641 = vadd.f32 %v1469, %v1611
    %v1642 = vadd.f32 %v1472, %v1614
    %v1643 = vadd.f32 %v1477, %v1619
    %v1644 = vadd.f32 %v1480, %v1622
    %v1645 = vadd.f32 %v1485, %v1627
    %v1646 = vadd.f32 %v1488, %v1630
    %v1647 = vadd.f32 %v1493, %v1635
    %v1648 = vadd.f32 %v1496, %v1638
    %v1649 = vadd.f32 %v1641, %v1642
    %v1650 = vadd.f32 %v1649, %v1643
    %v1651 = vadd.f32 %v1650, %v1644
    %v1652 = vadd.f32 %v1651, %v1645
    %v1653 = vadd.f32 %v1652, %v1646
    %v1654 = vadd.f32 %v1653, %v1647
    %v1655 = vadd.f32 %v1654, %v1648
    %v1656 = vrot.slane %v1655, 4
    %v1657 = vadd.f32 %v1655, %v1656
    %v1658 = vrot.slane %v1657, 2
    %v1659 = vadd.f32 %v1657, %v1658
    %v1660 = vrot.slane %v1659, 1
    %v1661 = vadd.f32 %v1659, %v1660
    %1662 = vrot.lane.b32.xlu0 %v1661, 4
    %v1663 = vpop.permute.xlu0 %1662
    %v1664 = vadd.f32 %v1661, %v1663
    %1665 = vrot.lane.b32.xlu0 %v1664, 8
    %v1666 = vpop.permute.xlu0 %1665
    %v1667 = vadd.f32 %v1664, %v1666
    %1668 = vrot.lane.b32.xlu0 %v1667, 16
    %v1669 = vpop.permute.xlu0 %1668
    %v1670 = vadd.f32 %v1667, %v1669
    %1671 = vrot.lane.b32.xlu0 %v1670, 32
    %v1672 = vpop.permute.xlu0 %1671
    %v1673 = vadd.f32 %v1670, %v1672
    %1674 = vrot.lane.b32.xlu0 %v1673, 64
    %v1675 = vpop.permute.xlu0 %1674
    %v1676 = vadd.f32 %v1673, %v1675
    %v1677 = vmul.f32 %v1676, 0.00048828125
    %v1678 = vlaneseq
    %v1679 = vshrl.u32 %v1678, 7
    %v1680 = vsub.s32 0, %v1679
    %v1681 = vrot.slane %v1677, %v1680
    %v1682 = vsub.f32 %v1641, %v1681
    %v1683 = vsub.f32 %v1642, %v1681
    %v1684 = vsub.f32 %v1643, %v1681
    %v1685 = vsub.f32 %v1644, %v1681
    %v1686 = vsub.f32 %v1645, %v1681
    %v1687 = vsub.f32 %v1646, %v1681
    %v1688 = vsub.f32 %v1647, %v1681
    %v1689 = vsub.f32 %v1648, %v1681
    %v1690 = vmul.f32 %v1682, %v1682
    %v1691 = vmul.f32 %v1683, %v1683
    %v1692 = vmul.f32 %v1684, %v1684
    %v1693 = vmul.f32 %v1685, %v1685
    %v1694 = vmul.f32 %v1686, %v1686
    %v1695 = vmul.f32 %v1687, %v1687
    %v1696 = vmul.f32 %v1688, %v1688
    %v1697 = vmul.f32 %v1689, %v1689
    %v1698 = vadd.f32 %v1690, %v1691
    %v1699 = vadd.f32 %v1698, %v1692
    %v1700 = vadd.f32 %v1699, %v1693
    %v1701 = vadd.f32 %v1700, %v1694
    %v1702 = vadd.f32 %v1701, %v1695
    %v1703 = vadd.f32 %v1702, %v1696
    %v1704 = vadd.f32 %v1703, %v1697
    %v1705 = vrot.slane %v1704, 4
    %v1706 = vadd.f32 %v1704, %v1705
    %v1707 = vrot.slane %v1706, 2
    %v1708 = vadd.f32 %v1706, %v1707
    %v1709 = vrot.slane %v1708, 1
    %v1710 = vadd.f32 %v1708, %v1709
    %1711 = vrot.lane.b32.xlu0 %v1710, 4
    %v1712 = vpop.permute.xlu0 %1711
    %v1713 = vadd.f32 %v1710, %v1712
    %1714 = vrot.lane.b32.xlu0 %v1713, 8
    %v1715 = vpop.permute.xlu0 %1714
    %v1716 = vadd.f32 %v1713, %v1715
    %1717 = vrot.lane.b32.xlu0 %v1716, 16
    %v1718 = vpop.permute.xlu0 %1717
    %v1719 = vadd.f32 %v1716, %v1718
    %1720 = vrot.lane.b32.xlu0 %v1719, 32
    %v1721 = vpop.permute.xlu0 %1720
    %v1722 = vadd.f32 %v1719, %v1721
    %1723 = vrot.lane.b32.xlu0 %v1722, 64
    %v1724 = vpop.permute.xlu0 %1723
    %v1725 = vadd.f32 %v1722, %v1724
    %v1726 = vmul.f32 %v1725, 0.00048828125
    %v1727 = vadd.f32 %v1726, 1e-05
    %v1728 = vrsqrt.pop %v1727
    %v1729 = vmul.f32 %v1212, %v1728
    %v1731 = vlaneseq
    %v1732 = vshrl.u32 %v1731, 7
    %v1733 = vsub.s32 0, %v1732
    %v1734 = vrot.slane %v1729, %v1733
    %v1736 = vmul.f32 %v1682, %v1734
    %v1737 = vmul.f32 %v1683, %v1734
    %v1738 = vmul.f32 %v1684, %v1734
    %v1739 = vmul.f32 %v1685, %v1734
    %v1740 = vmul.f32 %v1686, %v1734
    %v1741 = vmul.f32 %v1687, %v1734
    %v1742 = vmul.f32 %v1688, %v1734
    %v1743 = vmul.f32 %v1689, %v1734
    %v1745 = vlaneseq
    %v1746 = vshrl.u32 %v1745, 7
    %v1747 = vsub.s32 0, %v1746
    %v1748 = vrot.slane %v1214, %v1747
    %v1750 = vadd.f32 %v1736, %v1748
    %v1751 = vadd.f32 %v1737, %v1748
    %v1752 = vadd.f32 %v1738, %v1748
    %v1753 = vadd.f32 %v1739, %v1748
    %v1754 = vadd.f32 %v1740, %v1748
    %v1755 = vadd.f32 %v1741, %v1748
    %v1756 = vadd.f32 %v1742, %v1748
    %v1757 = vadd.f32 %v1743, %v1748
    %v1758 = vadd.f32 %v1750, %v1203
    %v1759 = vadd.f32 %v1751, %v1204
    %v1760 = vadd.f32 %v1752, %v1205
    %v1761 = vadd.f32 %v1753, %v1206
    %v1762 = vadd.f32 %v1754, %v1207
    %v1763 = vadd.f32 %v1755, %v1208
    %v1764 = vadd.f32 %v1756, %v1209
    %v1765 = vadd.f32 %v1757, %v1210
    %v1766 = vmax.f32 %v1758, 0.0
    %v1767 = vmax.f32 %v1759, 0.0
    %v1768 = vmax.f32 %v1760, 0.0
    %v1769 = vmax.f32 %v1761, 0.0
    %v1770 = vmax.f32 %v1762, 0.0
    %v1771 = vmax.f32 %v1763, 0.0
    %v1772 = vmax.f32 %v1764, 0.0
    %v1773 = vmax.f32 %v1765, 0.0
    %1774 = vst [vmem:[#allocation4 + $0x1] sm:$0xff] %v1766
    %1775 = vst [vmem:[#allocation4 + $0x9] sm:$0xff] %v1767
    %1776 = vst [vmem:[#allocation4 + $0x11] sm:$0xff] %v1768
    %1777 = vst [vmem:[#allocation4 + $0x19] sm:$0xff] %v1769
    %1778 = vst [vmem:[#allocation4 + $0x29] sm:$0xff] %v1770
    %1779 = vst [vmem:[#allocation4 + $0x31] sm:$0xff] %v1771
    %1780 = vst [vmem:[#allocation4 + $0x39] sm:$0xff] %v1772
    %1781 = vst [vmem:[#allocation4 + $0x41] sm:$0xff] %v1773
    %s1782 = scalar_lea.vmem %s3, 3
    %v1783 = vld [vmem:[%s1782] sm:$0x1]
    %s1784 = scalar_lea.vmem %s4, 3
    %v1785 = vld [vmem:[%s1784] sm:$0x1]
    %v1786 = vld [vmem:[#allocation4] ss:$2 sm:$0xff]
    %s1787 = scalar_lea.vmem [#allocation4], 16
    %v1788 = vld [vmem:[%s1787] ss:$2 sm:$0xff]
    %s1789 = scalar_lea.vmem [#allocation4], 40
    %v1790 = vld [vmem:[%s1789] ss:$2 sm:$0xff]
    %s1791 = scalar_lea.vmem [#allocation4], 56
    %v1792 = vld [vmem:[%s1791] ss:$2 sm:$0xff]
    %v1793 = vpack.c.bf16 %v1788, %v1786
    %v1794 = vpack.c.bf16 %v1792, %v1790
    %s1795 = scalar_lea.vmem [#allocation8], 576
    %v1796 = vld [vmem:[%s1795] sm:$0xf]
    %v1797 = vld [vmem:[%s1795 + $0x4] sm:$0xf]
    %v1798 = vld [vmem:[%s1795 + $0x8] sm:$0xf]
    %v1799 = vld [vmem:[%s1795 + $0xc] sm:$0xf]
    %v1800 = vld [vmem:[%s1795 + $0x10] sm:$0xf]
    %v1801 = vld [vmem:[%s1795 + $0x14] sm:$0xf]
    %v1802 = vld [vmem:[%s1795 + $0x18] sm:$0xf]
    %v1803 = vld [vmem:[%s1795 + $0x1c] sm:$0xf]
    %v1804 = vld [vmem:[%s1795 + $0x20] sm:$0xf]
    %v1805 = vld [vmem:[%s1795 + $0x24] sm:$0xf]
    %v1806 = vld [vmem:[%s1795 + $0x28] sm:$0xf]
    %v1807 = vld [vmem:[%s1795 + $0x2c] sm:$0xf]
    %v1808 = vld [vmem:[%s1795 + $0x30] sm:$0xf]
    %v1809 = vld [vmem:[%s1795 + $0x34] sm:$0xf]
    %v1810 = vld [vmem:[%s1795 + $0x38] sm:$0xf]
    %v1811 = vld [vmem:[%s1795 + $0x3c] sm:$0xf]
    %s1812 = scalar_lea.vmem [#allocation4], 1
    %v1813 = vld [vmem:[%s1812] ss:$2 sm:$0xff]
    %s1814 = scalar_lea.vmem [#allocation4], 17
    %v1815 = vld [vmem:[%s1814] ss:$2 sm:$0xff]
    %s1816 = scalar_lea.vmem [#allocation4], 41
    %v1817 = vld [vmem:[%s1816] ss:$2 sm:$0xff]
    %s1818 = scalar_lea.vmem [#allocation4], 57
    %v1819 = vld [vmem:[%s1818] ss:$2 sm:$0xff]
    %v1820 = vpack.c.bf16 %v1815, %v1813
    %v1821 = vpack.c.bf16 %v1819, %v1817
    %s1822 = scalar_lea.vmem [#allocation8], 640
    %v1823 = vld [vmem:[%s1822] sm:$0xf]
    %v1824 = vld [vmem:[%s1822 + $0x4] sm:$0xf]
    %v1825 = vld [vmem:[%s1822 + $0x8] sm:$0xf]
    %v1826 = vld [vmem:[%s1822 + $0xc] sm:$0xf]
    %v1827 = vld [vmem:[%s1822 + $0x10] sm:$0xf]
    %v1828 = vld [vmem:[%s1822 + $0x14] sm:$0xf]
    %v1829 = vld [vmem:[%s1822 + $0x18] sm:$0xf]
    %v1830 = vld [vmem:[%s1822 + $0x1c] sm:$0xf]
    %v1831 = vld [vmem:[%s1822 + $0x20] sm:$0xf]
    %v1832 = vld [vmem:[%s1822 + $0x24] sm:$0xf]
    %v1833 = vld [vmem:[%s1822 + $0x28] sm:$0xf]
    %v1834 = vld [vmem:[%s1822 + $0x2c] sm:$0xf]
    %v1835 = vld [vmem:[%s1822 + $0x30] sm:$0xf]
    %v1836 = vld [vmem:[%s1822 + $0x34] sm:$0xf]
    %v1837 = vld [vmem:[%s1822 + $0x38] sm:$0xf]
    %v1838 = vld [vmem:[%s1822 + $0x3c] sm:$0xf]
    %v1855 = vunpack.c.l.b16 %v1823
    %v1856 = vunpack.c.l.b16 %v1824
    %v1857 = vunpack.c.l.b16 %v1825
    %v1858 = vunpack.c.l.b16 %v1826
    %v1859 = vunpack.c.l.b16 %v1827
    %v1860 = vunpack.c.l.b16 %v1828
    %v1861 = vunpack.c.l.b16 %v1829
    %v1862 = vunpack.c.l.b16 %v1830
    %v1863 = vunpack.c.l.b16 %v1831
    %v1864 = vunpack.c.l.b16 %v1832
    %v1865 = vunpack.c.l.b16 %v1833
    %v1866 = vunpack.c.l.b16 %v1834
    %v1867 = vunpack.c.l.b16 %v1835
    %v1868 = vunpack.c.l.b16 %v1836
    %v1869 = vunpack.c.l.b16 %v1837
    %v1870 = vunpack.c.l.b16 %v1838
    %v1871 = vpack.c.b16 %v1856, %v1855
    %v1872 = vpack.c.b16 %v1858, %v1857
    %v1873 = vpack.c.b16 %v1860, %v1859
    %v1874 = vpack.c.b16 %v1862, %v1861
    %v1875 = vpack.c.b16 %v1864, %v1863
    %v1876 = vpack.c.b16 %v1866, %v1865
    %v1877 = vpack.c.b16 %v1868, %v1867
    %v1878 = vpack.c.b16 %v1870, %v1869
    %1887 = vmatprep.subr.bf16.mxu0 0
    %1888 = vmatpush1.bf16.msra.mxu0 %v1871
    %1889 = vmatprep.subr.bf16.mxu0 0
    %1890 = vmatpush1.bf16.msra.mxu0 %v1872
    %1891 = vmatprep.subr.bf16.mxu0 0
    %1892 = vmatpush1.bf16.msra.mxu0 %v1873
    %1893 = vmatprep.subr.bf16.mxu0 0
    %1894 = vmatpush1.bf16.msra.mxu0 %v1874
    %1895 = vmatprep.subr.bf16.mxu0 0
    %1896 = vmatpush1.bf16.msra.mxu0 %v1875
    %1897 = vmatprep.subr.bf16.mxu0 0
    %1898 = vmatpush1.bf16.msra.mxu0 %v1876
    %1899 = vmatprep.subr.bf16.mxu0 0
    %1900 = vmatpush1.bf16.msra.mxu0 %v1877
    %1901 = vmatprep.subr.bf16.mxu0 0
    %1902 = vmatpush1.bf16.msra.mxu0 %v1878
    %1903 = vmatprep.subr.bf16.mxu0 0
    %1904 = vmatpush1.bf16.msra.mxu0 0
    %1905 = vmatprep.subr.bf16.mxu0 0
    %1906 = vmatpush1.bf16.msra.mxu0 0
    %1907 = vmatprep.subr.bf16.mxu0 0
    %1908 = vmatpush1.bf16.msra.mxu0 0
    %1909 = vmatprep.subr.bf16.mxu0 0
    %1910 = vmatpush1.bf16.msra.mxu0 0
    %1911 = vmatprep.subr.bf16.mxu0 0
    %1912 = vmatpush1.bf16.msra.mxu0 0
    %1913 = vmatprep.subr.bf16.mxu0 0
    %1914 = vmatpush1.bf16.msra.mxu0 0
    %1915 = vmatprep.subr.bf16.mxu0 0
    %1916 = vmatpush1.bf16.msra.mxu0 0
    %1917 = vmatprep.subr.bf16.mxu0 0
    %1918 = vmatpush1.bf16.msra.mxu0 0
    %1919 = vmatprep.mubr.bf16.mxu0 0
    %1920 = vmatmul.mubr.bf16.gmra.mrb[0].mxu0 %v1820
    %v1921 = vpop.f32.mrb[0].mxu0
    %v1922 = vadd.f32 0.0, %v1921
    %v1923 = vpop.f32.mrb[0].mxu0
    %v1924 = vpop.f32.mrb[0].mxu0
    %v1925 = vadd.f32 0.0, %v1924
    %v1926 = vpop.f32.mrb[0].mxu0
    %1927 = vmatprep.mubr.bf16.mxu0 0
    %1928 = vmatmul.mubr.bf16.gmra.mrb[0].mxu0 %v1821
    %v1929 = vpop.f32.mrb[0].mxu0
    %v1930 = vadd.f32 0.0, %v1929
    %v1931 = vpop.f32.mrb[0].mxu0
    %v1932 = vpop.f32.mrb[0].mxu0
    %v1933 = vadd.f32 0.0, %v1932
    %v1934 = vpop.f32.mrb[0].mxu0
    %1935 = vdwg.mxu0
    %v1952 = vunpack.c.l.b16 %v1796
    %v1953 = vunpack.c.l.b16 %v1797
    %v1954 = vunpack.c.l.b16 %v1798
    %v1955 = vunpack.c.l.b16 %v1799
    %v1956 = vunpack.c.l.b16 %v1800
    %v1957 = vunpack.c.l.b16 %v1801
    %v1958 = vunpack.c.l.b16 %v1802
    %v1959 = vunpack.c.l.b16 %v1803
    %v1960 = vunpack.c.l.b16 %v1804
    %v1961 = vunpack.c.l.b16 %v1805
    %v1962 = vunpack.c.l.b16 %v1806
    %v1963 = vunpack.c.l.b16 %v1807
    %v1964 = vunpack.c.l.b16 %v1808
    %v1965 = vunpack.c.l.b16 %v1809
    %v1966 = vunpack.c.l.b16 %v1810
    %v1967 = vunpack.c.l.b16 %v1811
    %v1968 = vpack.c.b16 %v1953, %v1952
    %v1969 = vpack.c.b16 %v1955, %v1954
    %v1970 = vpack.c.b16 %v1957, %v1956
    %v1971 = vpack.c.b16 %v1959, %v1958
    %v1972 = vpack.c.b16 %v1961, %v1960
    %v1973 = vpack.c.b16 %v1963, %v1962
    %v1974 = vpack.c.b16 %v1965, %v1964
    %v1975 = vpack.c.b16 %v1967, %v1966
    %1984 = vmatprep.subr.bf16.mxu0 0
    %1985 = vmatpush1.bf16.msra.mxu0 %v1968
    %1986 = vmatprep.subr.bf16.mxu0 0
    %1987 = vmatpush1.bf16.msra.mxu0 %v1969
    %1988 = vmatprep.subr.bf16.mxu0 0
    %1989 = vmatpush1.bf16.msra.mxu0 %v1970
    %1990 = vmatprep.subr.bf16.mxu0 0
    %1991 = vmatpush1.bf16.msra.mxu0 %v1971
    %1992 = vmatprep.subr.bf16.mxu0 0
    %1993 = vmatpush1.bf16.msra.mxu0 %v1972
    %1994 = vmatprep.subr.bf16.mxu0 0
    %1995 = vmatpush1.bf16.msra.mxu0 %v1973
    %1996 = vmatprep.subr.bf16.mxu0 0
    %1997 = vmatpush1.bf16.msra.mxu0 %v1974
    %1998 = vmatprep.subr.bf16.mxu0 0
    %1999 = vmatpush1.bf16.msra.mxu0 %v1975
    %2000 = vmatprep.subr.bf16.mxu0 0
    %2001 = vmatpush1.bf16.msra.mxu0 0
    %2002 = vmatprep.subr.bf16.mxu0 0
    %2003 = vmatpush1.bf16.msra.mxu0 0
    %2004 = vmatprep.subr.bf16.mxu0 0
    %2005 = vmatpush1.bf16.msra.mxu0 0
    %2006 = vmatprep.subr.bf16.mxu0 0
    %2007 = vmatpush1.bf16.msra.mxu0 0
    %2008 = vmatprep.subr.bf16.mxu0 0
    %2009 = vmatpush1.bf16.msra.mxu0 0
    %2010 = vmatprep.subr.bf16.mxu0 0
    %2011 = vmatpush1.bf16.msra.mxu0 0
    %2012 = vmatprep.subr.bf16.mxu0 0
    %2013 = vmatpush1.bf16.msra.mxu0 0
    %2014 = vmatprep.subr.bf16.mxu0 0
    %2015 = vmatpush1.bf16.msra.mxu0 0
    %2016 = vmatprep.mubr.bf16.mxu0 0
    %2017 = vmatmul.mubr.bf16.gmra.mrb[0].mxu0 %v1793
    %v2018 = vpop.f32.mrb[0].mxu0
    %v2019 = vadd.f32 %v1922, %v2018
    %v2020 = vpop.f32.mrb[0].mxu0
    %v2021 = vpop.f32.mrb[0].mxu0
    %v2022 = vadd.f32 %v1925, %v2021
    %v2023 = vpop.f32.mrb[0].mxu0
    %2024 = vmatprep.mubr.bf16.mxu0 0
    %2025 = vmatmul.mubr.bf16.gmra.mrb[0].mxu0 %v1794
    %v2026 = vpop.f32.mrb[0].mxu0
    %v2027 = vadd.f32 %v1930, %v2026
    %v2028 = vpop.f32.mrb[0].mxu0
    %v2029 = vpop.f32.mrb[0].mxu0
    %v2030 = vadd.f32 %v1933, %v2029
    %v2031 = vpop.f32.mrb[0].mxu0
    %2032 = vdwg.mxu0
    %s2033 = scalar_lea.vmem [#allocation4], 2
    %v2034 = vld [vmem:[%s2033] ss:$2 sm:$0xff]
    %s2035 = scalar_lea.vmem [#allocation4], 18
    %v2036 = vld [vmem:[%s2035] ss:$2 sm:$0xff]
    %s2037 = scalar_lea.vmem [#allocation4], 42
    %v2038 = vld [vmem:[%s2037] ss:$2 sm:$0xff]
    %s2039 = scalar_lea.vmem [#allocation4], 58
    %v2040 = vld [vmem:[%s2039] ss:$2 sm:$0xff]
    %v2041 = vpack.c.bf16 %v2036, %v2034
    %v2042 = vpack.c.bf16 %v2040, %v2038
    %s2043 = scalar_lea.vmem [#allocation8], 704
    %v2044 = vld [vmem:[%s2043] sm:$0xf]
    %v2045 = vld [vmem:[%s2043 + $0x4] sm:$0xf]
    %v2046 = vld [vmem:[%s2043 + $0x8] sm:$0xf]
    %v2047 = vld [vmem:[%s2043 + $0xc] sm:$0xf]
    %v2048 = vld [vmem:[%s2043 + $0x10] sm:$0xf]
    %v2049 = vld [vmem:[%s2043 + $0x14] sm:$0xf]
    %v2050 = vld [vmem:[%s2043 + $0x18] sm:$0xf]
    %v2051 = vld [vmem:[%s2043 + $0x1c] sm:$0xf]
    %v2052 = vld [vmem:[%s2043 + $0x20] sm:$0xf]
    %v2053 = vld [vmem:[%s2043 + $0x24] sm:$0xf]
    %v2054 = vld [vmem:[%s2043 + $0x28] sm:$0xf]
    %v2055 = vld [vmem:[%s2043 + $0x2c] sm:$0xf]
    %v2056 = vld [vmem:[%s2043 + $0x30] sm:$0xf]
    %v2057 = vld [vmem:[%s2043 + $0x34] sm:$0xf]
    %v2058 = vld [vmem:[%s2043 + $0x38] sm:$0xf]
    %v2059 = vld [vmem:[%s2043 + $0x3c] sm:$0xf]
    %v2076 = vunpack.c.l.b16 %v2044
    %v2077 = vunpack.c.l.b16 %v2045
    %v2078 = vunpack.c.l.b16 %v2046
    %v2079 = vunpack.c.l.b16 %v2047
    %v2080 = vunpack.c.l.b16 %v2048
    %v2081 = vunpack.c.l.b16 %v2049
    %v2082 = vunpack.c.l.b16 %v2050
    %v2083 = vunpack.c.l.b16 %v2051
    %v2084 = vunpack.c.l.b16 %v2052
    %v2085 = vunpack.c.l.b16 %v2053
    %v2086 = vunpack.c.l.b16 %v2054
    %v2087 = vunpack.c.l.b16 %v2055
    %v2088 = vunpack.c.l.b16 %v2056
    %v2089 = vunpack.c.l.b16 %v2057
    %v2090 = vunpack.c.l.b16 %v2058
    %v2091 = vunpack.c.l.b16 %v2059
    %v2092 = vpack.c.b16 %v2077, %v2076
    %v2093 = vpack.c.b16 %v2079, %v2078
    %v2094 = vpack.c.b16 %v2081, %v2080
    %v2095 = vpack.c.b16 %v2083, %v2082
    %v2096 = vpack.c.b16 %v2085, %v2084
    %v2097 = vpack.c.b16 %v2087, %v2086
    %v2098 = vpack.c.b16 %v2089, %v2088
    %v2099 = vpack.c.b16 %v2091, %v2090
    %2108 = vmatprep.subr.bf16.mxu0 0
    %2109 = vmatpush1.bf16.msra.mxu0 %v2092
    %2110 = vmatprep.subr.bf16.mxu0 0
    %2111 = vmatpush1.bf16.msra.mxu0 %v2093
    %2112 = vmatprep.subr.bf16.mxu0 0
    %2113 = vmatpush1.bf16.msra.mxu0 %v2094
    %2114 = vmatprep.subr.bf16.mxu0 0
    %2115 = vmatpush1.bf16.msra.mxu0 %v2095
    %2116 = vmatprep.subr.bf16.mxu0 0
    %2117 = vmatpush1.bf16.msra.mxu0 %v2096
    %2118 = vmatprep.subr.bf16.mxu0 0
    %2119 = vmatpush1.bf16.msra.mxu0 %v2097
    %2120 = vmatprep.subr.bf16.mxu0 0
    %2121 = vmatpush1.bf16.msra.mxu0 %v2098
    %2122 = vmatprep.subr.bf16.mxu0 0
    %2123 = vmatpush1.bf16.msra.mxu0 %v2099
    %2124 = vmatprep.subr.bf16.mxu0 0
    %2125 = vmatpush1.bf16.msra.mxu0 0
    %2126 = vmatprep.subr.bf16.mxu0 0
    %2127 = vmatpush1.bf16.msra.mxu0 0
    %2128 = vmatprep.subr.bf16.mxu0 0
    %2129 = vmatpush1.bf16.msra.mxu0 0
    %2130 = vmatprep.subr.bf16.mxu0 0
    %2131 = vmatpush1.bf16.msra.mxu0 0
    %2132 = vmatprep.subr.bf16.mxu0 0
    %2133 = vmatpush1.bf16.msra.mxu0 0
    %2134 = vmatprep.subr.bf16.mxu0 0
    %2135 = vmatpush1.bf16.msra.mxu0 0
    %2136 = vmatprep.subr.bf16.mxu0 0
    %2137 = vmatpush1.bf16.msra.mxu0 0
    %2138 = vmatprep.subr.bf16.mxu0 0
    %2139 = vmatpush1.bf16.msra.mxu0 0
    %2140 = vmatprep.mubr.bf16.mxu0 0
    %2141 = vmatmul.mubr.bf16.gmra.mrb[0].mxu0 %v2041
    %v2142 = vpop.f32.mrb[0].mxu0
    %v2143 = vadd.f32 0.0, %v2142
    %v2144 = vpop.f32.mrb[0].mxu0
    %v2145 = vpop.f32.mrb[0].mxu0
    %v2146 = vadd.f32 0.0, %v2145
    %v2147 = vpop.f32.mrb[0].mxu0
    %2148 = vmatprep.mubr.bf16.mxu0 0
    %2149 = vmatmul.mubr.bf16.gmra.mrb[0].mxu0 %v2042
    %v2150 = vpop.f32.mrb[0].mxu0
    %v2151 = vadd.f32 0.0, %v2150
    %v2152 = vpop.f32.mrb[0].mxu0
    %v2153 = vpop.f32.mrb[0].mxu0
    %v2154 = vadd.f32 0.0, %v2153
    %v2155 = vpop.f32.mrb[0].mxu0
    %2156 = vdwg.mxu0
    %v2157 = vadd.f32 %v2019, %v2143
    %v2158 = vadd.f32 %v2022, %v2146
    %v2159 = vadd.f32 %v2027, %v2151
    %v2160 = vadd.f32 %v2030, %v2154
    %v2161 = vadd.f32 %v2157, %v2158
    %v2162 = vadd.f32 %v2161, %v2159
    %v2163 = vadd.f32 %v2162, %v2160
    %v2164 = vrot.slane %v2163, 4
    %v2165 = vadd.f32 %v2163, %v2164
    %v2166 = vrot.slane %v2165, 2
    %v2167 = vadd.f32 %v2165, %v2166
    %v2168 = vrot.slane %v2167, 1
    %v2169 = vadd.f32 %v2167, %v2168
    %2170 = vrot.lane.b32.xlu0 %v2169, 8
    %v2171 = vpop.permute.xlu0 %2170
    %v2172 = vadd.f32 %v2169, %v2171
    %2173 = vrot.lane.b32.xlu0 %v2172, 16
    %v2174 = vpop.permute.xlu0 %2173
    %v2175 = vadd.f32 %v2172, %v2174
    %2176 = vrot.lane.b32.xlu0 %v2175, 32
    %v2177 = vpop.permute.xlu0 %2176
    %v2178 = vadd.f32 %v2175, %v2177
    %2179 = vrot.lane.b32.xlu0 %v2178, 64
    %v2180 = vpop.permute.xlu0 %2179
    %v2181 = vadd.f32 %v2178, %v2180
    %v2182 = vmul.f32 %v2181, 0.001953125
    %v2183 = vlaneseq
    %v2184 = vshrl.u32 %v2183, 7
    %v2185 = vsub.s32 0, %v2184
    %v2186 = vrot.slane %v2182, %v2185
    %v2187 = vsub.f32 %v2157, %v2186
    %v2188 = vsub.f32 %v2158, %v2186
    %v2189 = vsub.f32 %v2159, %v2186
    %v2190 = vsub.f32 %v2160, %v2186
    %v2191 = vmul.f32 %v2187, %v2187
    %v2192 = vmul.f32 %v2188, %v2188
    %v2193 = vmul.f32 %v2189, %v2189
    %v2194 = vmul.f32 %v2190, %v2190
    %v2195 = vadd.f32 %v2191, %v2192
    %v2196 = vadd.f32 %v2195, %v2193
    %v2197 = vadd.f32 %v2196, %v2194
    %v2198 = vrot.slane %v2197, 4
    %v2199 = vadd.f32 %v2197, %v2198
    %v2200 = vrot.slane %v2199, 2
    %v2201 = vadd.f32 %v2199, %v2200
    %v2202 = vrot.slane %v2201, 1
    %v2203 = vadd.f32 %v2201, %v2202
    %2204 = vrot.lane.b32.xlu0 %v2203, 8
    %v2205 = vpop.permute.xlu0 %2204
    %v2206 = vadd.f32 %v2203, %v2205
    %2207 = vrot.lane.b32.xlu0 %v2206, 16
    %v2208 = vpop.permute.xlu0 %2207
    %v2209 = vadd.f32 %v2206, %v2208
    %2210 = vrot.lane.b32.xlu0 %v2209, 32
    %v2211 = vpop.permute.xlu0 %2210
    %v2212 = vadd.f32 %v2209, %v2211
    %2213 = vrot.lane.b32.xlu0 %v2212, 64
    %v2214 = vpop.permute.xlu0 %2213
    %v2215 = vadd.f32 %v2212, %v2214
    %v2216 = vmul.f32 %v2215, 0.001953125
    %v2217 = vadd.f32 %v2216, 1e-05
    %v2218 = vrsqrt.pop %v2217
    %v2219 = vmul.f32 %v1783, %v2218
    %v2221 = vlaneseq
    %v2222 = vshrl.u32 %v2221, 7
    %v2223 = vsub.s32 0, %v2222
    %v2224 = vrot.slane %v2219, %v2223
    %v2226 = vmul.f32 %v2187, %v2224
    %v2227 = vmul.f32 %v2188, %v2224
    %v2228 = vmul.f32 %v2189, %v2224
    %v2229 = vmul.f32 %v2190, %v2224
    %v2231 = vlaneseq
    %v2232 = vshrl.u32 %v2231, 7
    %v2233 = vsub.s32 0, %v2232
    %v2234 = vrot.slane %v1785, %v2233
    %v2236 = vadd.f32 %v2226, %v2234
    %v2237 = vadd.f32 %v2227, %v2234
    %v2238 = vadd.f32 %v2228, %v2234
    %v2239 = vadd.f32 %v2229, %v2234
    %v2240 = vmax.f32 %v2236, 0.0
    %v2241 = vmax.f32 %v2237, 0.0
    %v2242 = vmax.f32 %v2238, 0.0
    %v2243 = vmax.f32 %v2239, 0.0
    %2244 = vst [vmem:[#allocation5 + $0x1] sm:$0xff] %v2240
    %2245 = vst [vmem:[#allocation5 + $0x9] sm:$0xff] %v2241
    %2246 = vst [vmem:[#allocation5 + $0x19] sm:$0xff] %v2242
    %2247 = vst [vmem:[#allocation5 + $0x21] sm:$0xff] %v2243
    %v2248 = vld [vmem:[%s2] sm:$0xf]
    %v2249 = vld [vmem:[%s2 + $0x4] sm:$0xf]
    %v2250 = vld [vmem:[%s2 + $0x8] sm:$0xf]
    %v2251 = vld [vmem:[%s2 + $0xc] sm:$0xf]
    %v2252 = vld [vmem:[%s2 + $0x10] sm:$0xf]
    %v2253 = vld [vmem:[%s2 + $0x14] sm:$0xf]
    %v2254 = vld [vmem:[%s2 + $0x18] sm:$0xf]
    %v2255 = vld [vmem:[%s2 + $0x1c] sm:$0xf]
    %v2256 = vld [vmem:[%s2 + $0x20] sm:$0xf]
    %v2257 = vld [vmem:[%s2 + $0x24] sm:$0xf]
    %v2258 = vld [vmem:[%s2 + $0x28] sm:$0xf]
    %v2259 = vld [vmem:[%s2 + $0x2c] sm:$0xf]
    %v2260 = vld [vmem:[%s2 + $0x30] sm:$0xf]
    %v2261 = vld [vmem:[%s2 + $0x34] sm:$0xf]
    %v2262 = vld [vmem:[%s2 + $0x38] sm:$0xf]
    %v2263 = vld [vmem:[%s2 + $0x3c] sm:$0xf]
    %s2264 = scalar_lea.vmem %s3, 5
    %v2265 = vld [vmem:[%s2264] sm:$0x1]
    %s2266 = scalar_lea.vmem %s4, 5
    %v2267 = vld [vmem:[%s2266] sm:$0x1]
    %v2268 = vld [vmem:[%s1812] ss:$2 sm:$0xff]
    %v2269 = vld [vmem:[%s1814] ss:$2 sm:$0xff]
    %v2270 = vld [vmem:[%s1816] ss:$2 sm:$0xff]
    %v2271 = vld [vmem:[%s1818] ss:$2 sm:$0xff]
    %v2272 = vpack.c.bf16 %v2269, %v2268
    %v2273 = vpack.c.bf16 %v2271, %v2270
    %v2290 = vunpack.c.l.b16 %v2248
    %v2291 = vunpack.c.l.b16 %v2249
    %v2292 = vunpack.c.l.b16 %v2250
    %v2293 = vunpack.c.l.b16 %v2251
    %v2294 = vunpack.c.l.b16 %v2252
    %v2295 = vunpack.c.l.b16 %v2253
    %v2296 = vunpack.c.l.b16 %v2254
    %v2297 = vunpack.c.l.b16 %v2255
    %v2298 = vunpack.c.l.b16 %v2256
    %v2299 = vunpack.c.l.b16 %v2257
    %v2300 = vunpack.c.l.b16 %v2258
    %v2301 = vunpack.c.l.b16 %v2259
    %v2302 = vunpack.c.l.b16 %v2260
    %v2303 = vunpack.c.l.b16 %v2261
    %v2304 = vunpack.c.l.b16 %v2262
    %v2305 = vunpack.c.l.b16 %v2263
    %v2306 = vpack.c.b16 %v2291, %v2290
    %v2307 = vpack.c.b16 %v2293, %v2292
    %v2308 = vpack.c.b16 %v2295, %v2294
    %v2309 = vpack.c.b16 %v2297, %v2296
    %v2310 = vpack.c.b16 %v2299, %v2298
    %v2311 = vpack.c.b16 %v2301, %v2300
    %v2312 = vpack.c.b16 %v2303, %v2302
    %v2313 = vpack.c.b16 %v2305, %v2304
    %2322 = vmatprep.subr.bf16.mxu0 0
    %2323 = vmatpush1.bf16.msra.mxu0 %v2306
    %2324 = vmatprep.subr.bf16.mxu0 0
    %2325 = vmatpush1.bf16.msra.mxu0 %v2307
    %2326 = vmatprep.subr.bf16.mxu0 0
    %2327 = vmatpush1.bf16.msra.mxu0 %v2308
    %2328 = vmatprep.subr.bf16.mxu0 0
    %2329 = vmatpush1.bf16.msra.mxu0 %v2309
    %2330 = vmatprep.subr.bf16.mxu0 0
    %2331 = vmatpush1.bf16.msra.mxu0 %v2310
    %2332 = vmatprep.subr.bf16.mxu0 0
    %2333 = vmatpush1.bf16.msra.mxu0 %v2311
    %2334 = vmatprep.subr.bf16.mxu0 0
    %2335 = vmatpush1.bf16.msra.mxu0 %v2312
    %2336 = vmatprep.subr.bf16.mxu0 0
    %2337 = vmatpush1.bf16.msra.mxu0 %v2313
    %2338 = vmatprep.subr.bf16.mxu0 0
    %2339 = vmatpush1.bf16.msra.mxu0 0
    %2340 = vmatprep.subr.bf16.mxu0 0
    %2341 = vmatpush1.bf16.msra.mxu0 0
    %2342 = vmatprep.subr.bf16.mxu0 0
    %2343 = vmatpush1.bf16.msra.mxu0 0
    %2344 = vmatprep.subr.bf16.mxu0 0
    %2345 = vmatpush1.bf16.msra.mxu0 0
    %2346 = vmatprep.subr.bf16.mxu0 0
    %2347 = vmatpush1.bf16.msra.mxu0 0
    %2348 = vmatprep.subr.bf16.mxu0 0
    %2349 = vmatpush1.bf16.msra.mxu0 0
    %2350 = vmatprep.subr.bf16.mxu0 0
    %2351 = vmatpush1.bf16.msra.mxu0 0
    %2352 = vmatprep.subr.bf16.mxu0 0
    %2353 = vmatpush1.bf16.msra.mxu0 0
    %2354 = vmatprep.mubr.bf16.mxu0 0
    %2355 = vmatmul.mubr.bf16.gmra.mrb[0].mxu0 %v2272
    %v2356 = vpop.f32.mrb[0].mxu0
    %v2357 = vadd.f32 0.0, %v2356
    %v2358 = vpop.f32.mrb[0].mxu0
    %v2359 = vpop.f32.mrb[0].mxu0
    %v2360 = vadd.f32 0.0, %v2359
    %v2361 = vpop.f32.mrb[0].mxu0
    %2362 = vmatprep.mubr.bf16.mxu0 0
    %2363 = vmatmul.mubr.bf16.gmra.mrb[0].mxu0 %v2273
    %v2364 = vpop.f32.mrb[0].mxu0
    %v2365 = vadd.f32 0.0, %v2364
    %v2366 = vpop.f32.mrb[0].mxu0
    %v2367 = vpop.f32.mrb[0].mxu0
    %v2368 = vadd.f32 0.0, %v2367
    %v2369 = vpop.f32.mrb[0].mxu0
    %2370 = vdwg.mxu0
    %v2371 = vadd.f32 %v2357, %v2360
    %v2372 = vadd.f32 %v2371, %v2365
    %v2373 = vadd.f32 %v2372, %v2368
    %v2374 = vrot.slane %v2373, 4
    %v2375 = vadd.f32 %v2373, %v2374
    %v2376 = vrot.slane %v2375, 2
    %v2377 = vadd.f32 %v2375, %v2376
    %v2378 = vrot.slane %v2377, 1
    %v2379 = vadd.f32 %v2377, %v2378
    %2380 = vrot.lane.b32.xlu0 %v2379, 8
    %v2381 = vpop.permute.xlu0 %2380
    %v2382 = vadd.f32 %v2379, %v2381
    %2383 = vrot.lane.b32.xlu0 %v2382, 16
    %v2384 = vpop.permute.xlu0 %2383
    %v2385 = vadd.f32 %v2382, %v2384
    %2386 = vrot.lane.b32.xlu0 %v2385, 32
    %v2387 = vpop.permute.xlu0 %2386
    %v2388 = vadd.f32 %v2385, %v2387
    %2389 = vrot.lane.b32.xlu0 %v2388, 64
    %v2390 = vpop.permute.xlu0 %2389
    %v2391 = vadd.f32 %v2388, %v2390
    %v2392 = vmul.f32 %v2391, 0.001953125
    %v2393 = vlaneseq
    %v2394 = vshrl.u32 %v2393, 7
    %v2395 = vsub.s32 0, %v2394
    %v2396 = vrot.slane %v2392, %v2395
    %v2397 = vsub.f32 %v2357, %v2396
    %v2398 = vsub.f32 %v2360, %v2396
    %v2399 = vsub.f32 %v2365, %v2396
    %v2400 = vsub.f32 %v2368, %v2396
    %v2401 = vmul.f32 %v2397, %v2397
    %v2402 = vmul.f32 %v2398, %v2398
    %v2403 = vmul.f32 %v2399, %v2399
    %v2404 = vmul.f32 %v2400, %v2400
    %v2405 = vadd.f32 %v2401, %v2402
    %v2406 = vadd.f32 %v2405, %v2403
    %v2407 = vadd.f32 %v2406, %v2404
    %v2408 = vrot.slane %v2407, 4
    %v2409 = vadd.f32 %v2407, %v2408
    %v2410 = vrot.slane %v2409, 2
    %v2411 = vadd.f32 %v2409, %v2410
    %v2412 = vrot.slane %v2411, 1
    %v2413 = vadd.f32 %v2411, %v2412
    %2414 = vrot.lane.b32.xlu0 %v2413, 8
    %v2415 = vpop.permute.xlu0 %2414
    %v2416 = vadd.f32 %v2413, %v2415
    %2417 = vrot.lane.b32.xlu0 %v2416, 16
    %v2418 = vpop.permute.xlu0 %2417
    %v2419 = vadd.f32 %v2416, %v2418
    %2420 = vrot.lane.b32.xlu0 %v2419, 32
    %v2421 = vpop.permute.xlu0 %2420
    %v2422 = vadd.f32 %v2419, %v2421
    %2423 = vrot.lane.b32.xlu0 %v2422, 64
    %v2424 = vpop.permute.xlu0 %2423
    %v2425 = vadd.f32 %v2422, %v2424
    %v2426 = vmul.f32 %v2425, 0.001953125
    %v2427 = vadd.f32 %v2426, 1e-05
    %v2428 = vrsqrt.pop %v2427
    %v2429 = vmul.f32 %v2265, %v2428
    %v2431 = vlaneseq
    %v2432 = vshrl.u32 %v2431, 7
    %v2433 = vsub.s32 0, %v2432
    %v2434 = vrot.slane %v2429, %v2433
    %v2436 = vmul.f32 %v2397, %v2434
    %v2437 = vmul.f32 %v2398, %v2434
    %v2438 = vmul.f32 %v2399, %v2434
    %v2439 = vmul.f32 %v2400, %v2434
    %v2441 = vlaneseq
    %v2442 = vshrl.u32 %v2441, 7
    %v2443 = vsub.s32 0, %v2442
    %v2444 = vrot.slane %v2267, %v2443
    %v2446 = vadd.f32 %v2436, %v2444
    %v2447 = vadd.f32 %v2437, %v2444
    %v2448 = vadd.f32 %v2438, %v2444
    %v2449 = vadd.f32 %v2439, %v2444
    %s2450 = scalar_lea.vmem %s3, 4
    %v2451 = vld [vmem:[%s2450] sm:$0x1]
    %s2452 = scalar_lea.vmem %s4, 4
    %v2453 = vld [vmem:[%s2452] sm:$0x1]
    %v2454 = vld [vmem:[#allocation5] sm:$0xff]
    %v2455 = vld [vmem:[#allocation5 + $0x8] sm:$0xff]
    %v2456 = vld [vmem:[#allocation5 + $0x18] sm:$0xff]
    %v2457 = vld [vmem:[#allocation5 + $0x20] sm:$0xff]
    %v2458 = vpack.c.bf16 %v2455, %v2454
    %v2459 = vpack.c.bf16 %v2457, %v2456
    %s2460 = scalar_lea.vmem [#allocation8], 768
    %v2461 = vld [vmem:[%s2460] sm:$0xf]
    %v2462 = vld [vmem:[%s2460 + $0x4] sm:$0xf]
    %v2463 = vld [vmem:[%s2460 + $0x8] sm:$0xf]
    %v2464 = vld [vmem:[%s2460 + $0xc] sm:$0xf]
    %v2465 = vld [vmem:[%s2460 + $0x10] sm:$0xf]
    %v2466 = vld [vmem:[%s2460 + $0x14] sm:$0xf]
    %v2467 = vld [vmem:[%s2460 + $0x18] sm:$0xf]
    %v2468 = vld [vmem:[%s2460 + $0x1c] sm:$0xf]
    %v2469 = vld [vmem:[%s2460 + $0x20] sm:$0xf]
    %v2470 = vld [vmem:[%s2460 + $0x24] sm:$0xf]
    %v2471 = vld [vmem:[%s2460 + $0x28] sm:$0xf]
    %v2472 = vld [vmem:[%s2460 + $0x2c] sm:$0xf]
    %v2473 = vld [vmem:[%s2460 + $0x30] sm:$0xf]
    %v2474 = vld [vmem:[%s2460 + $0x34] sm:$0xf]
    %v2475 = vld [vmem:[%s2460 + $0x38] sm:$0xf]
    %v2476 = vld [vmem:[%s2460 + $0x3c] sm:$0xf]
    %v2477 = vld [vmem:[#allocation5 + $0x1] sm:$0xff]
    %v2478 = vld [vmem:[#allocation5 + $0x9] sm:$0xff]
    %v2479 = vld [vmem:[#allocation5 + $0x19] sm:$0xff]
    %v2480 = vld [vmem:[#allocation5 + $0x21] sm:$0xff]
    %v2481 = vpack.c.bf16 %v2478, %v2477
    %v2482 = vpack.c.bf16 %v2480, %v2479
    %s2483 = scalar_lea.vmem [#allocation8], 832
    %v2484 = vld [vmem:[%s2483] sm:$0xf]
    %v2485 = vld [vmem:[%s2483 + $0x4] sm:$0xf]
    %v2486 = vld [vmem:[%s2483 + $0x8] sm:$0xf]
    %v2487 = vld [vmem:[%s2483 + $0xc] sm:$0xf]
    %v2488 = vld [vmem:[%s2483 + $0x10] sm:$0xf]
    %v2489 = vld [vmem:[%s2483 + $0x14] sm:$0xf]
    %v2490 = vld [vmem:[%s2483 + $0x18] sm:$0xf]
    %v2491 = vld [vmem:[%s2483 + $0x1c] sm:$0xf]
    %v2492 = vld [vmem:[%s2483 + $0x20] sm:$0xf]
    %v2493 = vld [vmem:[%s2483 + $0x24] sm:$0xf]
    %v2494 = vld [vmem:[%s2483 + $0x28] sm:$0xf]
    %v2495 = vld [vmem:[%s2483 + $0x2c] sm:$0xf]
    %v2496 = vld [vmem:[%s2483 + $0x30] sm:$0xf]
    %v2497 = vld [vmem:[%s2483 + $0x34] sm:$0xf]
    %v2498 = vld [vmem:[%s2483 + $0x38] sm:$0xf]
    %v2499 = vld [vmem:[%s2483 + $0x3c] sm:$0xf]
    %v2516 = vunpack.c.l.b16 %v2484
    %v2517 = vunpack.c.l.b16 %v2485
    %v2518 = vunpack.c.l.b16 %v2486
    %v2519 = vunpack.c.l.b16 %v2487
    %v2520 = vunpack.c.l.b16 %v2488
    %v2521 = vunpack.c.l.b16 %v2489
    %v2522 = vunpack.c.l.b16 %v2490
    %v2523 = vunpack.c.l.b16 %v2491
    %v2524 = vunpack.c.l.b16 %v2492
    %v2525 = vunpack.c.l.b16 %v2493
    %v2526 = vunpack.c.l.b16 %v2494
    %v2527 = vunpack.c.l.b16 %v2495
    %v2528 = vunpack.c.l.b16 %v2496
    %v2529 = vunpack.c.l.b16 %v2497
    %v2530 = vunpack.c.l.b16 %v2498
    %v2531 = vunpack.c.l.b16 %v2499
    %v2532 = vpack.c.b16 %v2517, %v2516
    %v2533 = vpack.c.b16 %v2519, %v2518
    %v2534 = vpack.c.b16 %v2521, %v2520
    %v2535 = vpack.c.b16 %v2523, %v2522
    %v2536 = vpack.c.b16 %v2525, %v2524
    %v2537 = vpack.c.b16 %v2527, %v2526
    %v2538 = vpack.c.b16 %v2529, %v2528
    %v2539 = vpack.c.b16 %v2531, %v2530
    %2548 = vmatprep.subr.bf16.mxu0 0
    %2549 = vmatpush1.bf16.msra.mxu0 %v2532
    %2550 = vmatprep.subr.bf16.mxu0 0
    %2551 = vmatpush1.bf16.msra.mxu0 %v2533
    %2552 = vmatprep.subr.bf16.mxu0 0
    %2553 = vmatpush1.bf16.msra.mxu0 %v2534
    %2554 = vmatprep.subr.bf16.mxu0 0
    %2555 = vmatpush1.bf16.msra.mxu0 %v2535
    %2556 = vmatprep.subr.bf16.mxu0 0
    %2557 = vmatpush1.bf16.msra.mxu0 %v2536
    %2558 = vmatprep.subr.bf16.mxu0 0
    %2559 = vmatpush1.bf16.msra.mxu0 %v2537
    %2560 = vmatprep.subr.bf16.mxu0 0
    %2561 = vmatpush1.bf16.msra.mxu0 %v2538
    %2562 = vmatprep.subr.bf16.mxu0 0
    %2563 = vmatpush1.bf16.msra.mxu0 %v2539
    %2564 = vmatprep.subr.bf16.mxu0 0
    %2565 = vmatpush1.bf16.msra.mxu0 0
    %2566 = vmatprep.subr.bf16.mxu0 0
    %2567 = vmatpush1.bf16.msra.mxu0 0
    %2568 = vmatprep.subr.bf16.mxu0 0
    %2569 = vmatpush1.bf16.msra.mxu0 0
    %2570 = vmatprep.subr.bf16.mxu0 0
    %2571 = vmatpush1.bf16.msra.mxu0 0
    %2572 = vmatprep.subr.bf16.mxu0 0
    %2573 = vmatpush1.bf16.msra.mxu0 0
    %2574 = vmatprep.subr.bf16.mxu0 0
    %2575 = vmatpush1.bf16.msra.mxu0 0
    %2576 = vmatprep.subr.bf16.mxu0 0
    %2577 = vmatpush1.bf16.msra.mxu0 0
    %2578 = vmatprep.subr.bf16.mxu0 0
    %2579 = vmatpush1.bf16.msra.mxu0 0
    %2580 = vmatprep.mubr.bf16.mxu0 0
    %2581 = vmatmul.mubr.bf16.gmra.mrb[0].mxu0 %v2481
    %v2582 = vpop.f32.mrb[0].mxu0
    %v2583 = vadd.f32 0.0, %v2582
    %v2584 = vpop.f32.mrb[0].mxu0
    %v2585 = vpop.f32.mrb[0].mxu0
    %v2586 = vadd.f32 0.0, %v2585
    %v2587 = vpop.f32.mrb[0].mxu0
    %2588 = vmatprep.mubr.bf16.mxu0 0
    %2589 = vmatmul.mubr.bf16.gmra.mrb[0].mxu0 %v2482
    %v2590 = vpop.f32.mrb[0].mxu0
    %v2591 = vadd.f32 0.0, %v2590
    %v2592 = vpop.f32.mrb[0].mxu0
    %v2593 = vpop.f32.mrb[0].mxu0
    %v2594 = vadd.f32 0.0, %v2593
    %v2595 = vpop.f32.mrb[0].mxu0
    %2596 = vdwg.mxu0
    %v2613 = vunpack.c.l.b16 %v2461
    %v2614 = vunpack.c.l.b16 %v2462
    %v2615 = vunpack.c.l.b16 %v2463
    %v2616 = vunpack.c.l.b16 %v2464
    %v2617 = vunpack.c.l.b16 %v2465
    %v2618 = vunpack.c.l.b16 %v2466
    %v2619 = vunpack.c.l.b16 %v2467
    %v2620 = vunpack.c.l.b16 %v2468
    %v2621 = vunpack.c.l.b16 %v2469
    %v2622 = vunpack.c.l.b16 %v2470
    %v2623 = vunpack.c.l.b16 %v2471
    %v2624 = vunpack.c.l.b16 %v2472
    %v2625 = vunpack.c.l.b16 %v2473
    %v2626 = vunpack.c.l.b16 %v2474
    %v2627 = vunpack.c.l.b16 %v2475
    %v2628 = vunpack.c.l.b16 %v2476
    %v2629 = vpack.c.b16 %v2614, %v2613
    %v2630 = vpack.c.b16 %v2616, %v2615
    %v2631 = vpack.c.b16 %v2618, %v2617
    %v2632 = vpack.c.b16 %v2620, %v2619
    %v2633 = vpack.c.b16 %v2622, %v2621
    %v2634 = vpack.c.b16 %v2624, %v2623
    %v2635 = vpack.c.b16 %v2626, %v2625
    %v2636 = vpack.c.b16 %v2628, %v2627
    %2645 = vmatprep.subr.bf16.mxu0 0
    %2646 = vmatpush1.bf16.msra.mxu0 %v2629
    %2647 = vmatprep.subr.bf16.mxu0 0
    %2648 = vmatpush1.bf16.msra.mxu0 %v2630
    %2649 = vmatprep.subr.bf16.mxu0 0
    %2650 = vmatpush1.bf16.msra.mxu0 %v2631
    %2651 = vmatprep.subr.bf16.mxu0 0
    %2652 = vmatpush1.bf16.msra.mxu0 %v2632
    %2653 = vmatprep.subr.bf16.mxu0 0
    %2654 = vmatpush1.bf16.msra.mxu0 %v2633
    %2655 = vmatprep.subr.bf16.mxu0 0
    %2656 = vmatpush1.bf16.msra.mxu0 %v2634
    %2657 = vmatprep.subr.bf16.mxu0 0
    %2658 = vmatpush1.bf16.msra.mxu0 %v2635
    %2659 = vmatprep.subr.bf16.mxu0 0
    %2660 = vmatpush1.bf16.msra.mxu0 %v2636
    %2661 = vmatprep.subr.bf16.mxu0 0
    %2662 = vmatpush1.bf16.msra.mxu0 0
    %2663 = vmatprep.subr.bf16.mxu0 0
    %2664 = vmatpush1.bf16.msra.mxu0 0
    %2665 = vmatprep.subr.bf16.mxu0 0
    %2666 = vmatpush1.bf16.msra.mxu0 0
    %2667 = vmatprep.subr.bf16.mxu0 0
    %2668 = vmatpush1.bf16.msra.mxu0 0
    %2669 = vmatprep.subr.bf16.mxu0 0
    %2670 = vmatpush1.bf16.msra.mxu0 0
    %2671 = vmatprep.subr.bf16.mxu0 0
    %2672 = vmatpush1.bf16.msra.mxu0 0
    %2673 = vmatprep.subr.bf16.mxu0 0
    %2674 = vmatpush1.bf16.msra.mxu0 0
    %2675 = vmatprep.subr.bf16.mxu0 0
    %2676 = vmatpush1.bf16.msra.mxu0 0
    %2677 = vmatprep.mubr.bf16.mxu0 0
    %2678 = vmatmul.mubr.bf16.gmra.mrb[0].mxu0 %v2458
    %v2679 = vpop.f32.mrb[0].mxu0
    %v2680 = vadd.f32 %v2583, %v2679
    %v2681 = vpop.f32.mrb[0].mxu0
    %v2682 = vpop.f32.mrb[0].mxu0
    %v2683 = vadd.f32 %v2586, %v2682
    %v2684 = vpop.f32.mrb[0].mxu0
    %2685 = vmatprep.mubr.bf16.mxu0 0
    %2686 = vmatmul.mubr.bf16.gmra.mrb[0].mxu0 %v2459
    %v2687 = vpop.f32.mrb[0].mxu0
    %v2688 = vadd.f32 %v2591, %v2687
    %v2689 = vpop.f32.mrb[0].mxu0
    %v2690 = vpop.f32.mrb[0].mxu0
    %v2691 = vadd.f32 %v2594, %v2690
    %v2692 = vpop.f32.mrb[0].mxu0
    %2693 = vdwg.mxu0
    %v2694 = vld [vmem:[#allocation5 + $0x2] sm:$0xff]
    %v2695 = vld [vmem:[#allocation5 + $0xa] sm:$0xff]
    %v2696 = vld [vmem:[#allocation5 + $0x1a] sm:$0xff]
    %v2697 = vld [vmem:[#allocation5 + $0x22] sm:$0xff]
    %v2698 = vpack.c.bf16 %v2695, %v2694
    %v2699 = vpack.c.bf16 %v2697, %v2696
    %s2700 = scalar_lea.vmem [#allocation8], 896
    %v2701 = vld [vmem:[%s2700] sm:$0xf]
    %v2702 = vld [vmem:[%s2700 + $0x4] sm:$0xf]
    %v2703 = vld [vmem:[%s2700 + $0x8] sm:$0xf]
    %v2704 = vld [vmem:[%s2700 + $0xc] sm:$0xf]
    %v2705 = vld [vmem:[%s2700 + $0x10] sm:$0xf]
    %v2706 = vld [vmem:[%s2700 + $0x14] sm:$0xf]
    %v2707 = vld [vmem:[%s2700 + $0x18] sm:$0xf]
    %v2708 = vld [vmem:[%s2700 + $0x1c] sm:$0xf]
    %v2709 = vld [vmem:[%s2700 + $0x20] sm:$0xf]
    %v2710 = vld [vmem:[%s2700 + $0x24] sm:$0xf]
    %v2711 = vld [vmem:[%s2700 + $0x28] sm:$0xf]
    %v2712 = vld [vmem:[%s2700 + $0x2c] sm:$0xf]
    %v2713 = vld [vmem:[%s2700 + $0x30] sm:$0xf]
    %v2714 = vld [vmem:[%s2700 + $0x34] sm:$0xf]
    %v2715 = vld [vmem:[%s2700 + $0x38] sm:$0xf]
    %v2716 = vld [vmem:[%s2700 + $0x3c] sm:$0xf]
    %v2733 = vunpack.c.l.b16 %v2701
    %v2734 = vunpack.c.l.b16 %v2702
    %v2735 = vunpack.c.l.b16 %v2703
    %v2736 = vunpack.c.l.b16 %v2704
    %v2737 = vunpack.c.l.b16 %v2705
    %v2738 = vunpack.c.l.b16 %v2706
    %v2739 = vunpack.c.l.b16 %v2707
    %v2740 = vunpack.c.l.b16 %v2708
    %v2741 = vunpack.c.l.b16 %v2709
    %v2742 = vunpack.c.l.b16 %v2710
    %v2743 = vunpack.c.l.b16 %v2711
    %v2744 = vunpack.c.l.b16 %v2712
    %v2745 = vunpack.c.l.b16 %v2713
    %v2746 = vunpack.c.l.b16 %v2714
    %v2747 = vunpack.c.l.b16 %v2715
    %v2748 = vunpack.c.l.b16 %v2716
    %v2749 = vpack.c.b16 %v2734, %v2733
    %v2750 = vpack.c.b16 %v2736, %v2735
    %v2751 = vpack.c.b16 %v2738, %v2737
    %v2752 = vpack.c.b16 %v2740, %v2739
    %v2753 = vpack.c.b16 %v2742, %v2741
    %v2754 = vpack.c.b16 %v2744, %v2743
    %v2755 = vpack.c.b16 %v2746, %v2745
    %v2756 = vpack.c.b16 %v2748, %v2747
    %2765 = vmatprep.subr.bf16.mxu0 0
    %2766 = vmatpush1.bf16.msra.mxu0 %v2749
    %2767 = vmatprep.subr.bf16.mxu0 0
    %2768 = vmatpush1.bf16.msra.mxu0 %v2750
    %2769 = vmatprep.subr.bf16.mxu0 0
    %2770 = vmatpush1.bf16.msra.mxu0 %v2751
    %2771 = vmatprep.subr.bf16.mxu0 0
    %2772 = vmatpush1.bf16.msra.mxu0 %v2752
    %2773 = vmatprep.subr.bf16.mxu0 0
    %2774 = vmatpush1.bf16.msra.mxu0 %v2753
    %2775 = vmatprep.subr.bf16.mxu0 0
    %2776 = vmatpush1.bf16.msra.mxu0 %v2754
    %2777 = vmatprep.subr.bf16.mxu0 0
    %2778 = vmatpush1.bf16.msra.mxu0 %v2755
    %2779 = vmatprep.subr.bf16.mxu0 0
    %2780 = vmatpush1.bf16.msra.mxu0 %v2756
    %2781 = vmatprep.subr.bf16.mxu0 0
    %2782 = vmatpush1.bf16.msra.mxu0 0
    %2783 = vmatprep.subr.bf16.mxu0 0
    %2784 = vmatpush1.bf16.msra.mxu0 0
    %2785 = vmatprep.subr.bf16.mxu0 0
    %2786 = vmatpush1.bf16.msra.mxu0 0
    %2787 = vmatprep.subr.bf16.mxu0 0
    %2788 = vmatpush1.bf16.msra.mxu0 0
    %2789 = vmatprep.subr.bf16.mxu0 0
    %2790 = vmatpush1.bf16.msra.mxu0 0
    %2791 = vmatprep.subr.bf16.mxu0 0
    %2792 = vmatpush1.bf16.msra.mxu0 0
    %2793 = vmatprep.subr.bf16.mxu0 0
    %2794 = vmatpush1.bf16.msra.mxu0 0
    %2795 = vmatprep.subr.bf16.mxu0 0
    %2796 = vmatpush1.bf16.msra.mxu0 0
    %2797 = vmatprep.mubr.bf16.mxu0 0
    %2798 = vmatmul.mubr.bf16.gmra.mrb[0].mxu0 %v2698
    %v2799 = vpop.f32.mrb[0].mxu0
    %v2800 = vadd.f32 0.0, %v2799
    %v2801 = vpop.f32.mrb[0].mxu0
    %v2802 = vpop.f32.mrb[0].mxu0
    %v2803 = vadd.f32 0.0, %v2802
    %v2804 = vpop.f32.mrb[0].mxu0
    %2805 = vmatprep.mubr.bf16.mxu0 0
    %2806 = vmatmul.mubr.bf16.gmra.mrb[0].mxu0 %v2699
    %v2807 = vpop.f32.mrb[0].mxu0
    %v2808 = vadd.f32 0.0, %v2807
    %v2809 = vpop.f32.mrb[0].mxu0
    %v2810 = vpop.f32.mrb[0].mxu0
    %v2811 = vadd.f32 0.0, %v2810
    %v2812 = vpop.f32.mrb[0].mxu0
    %2813 = vdwg.mxu0
    %v2814 = vadd.f32 %v2680, %v2800
    %v2815 = vadd.f32 %v2683, %v2803
    %v2816 = vadd.f32 %v2688, %v2808
    %v2817 = vadd.f32 %v2691, %v2811
    %v2818 = vadd.f32 %v2814, %v2815
    %v2819 = vadd.f32 %v2818, %v2816
    %v2820 = vadd.f32 %v2819, %v2817
    %v2821 = vrot.slane %v2820, 4
    %v2822 = vadd.f32 %v2820, %v2821
    %v2823 = vrot.slane %v2822, 2
    %v2824 = vadd.f32 %v2822, %v2823
    %v2825 = vrot.slane %v2824, 1
    %v2826 = vadd.f32 %v2824, %v2825
    %2827 = vrot.lane.b32.xlu0 %v2826, 8
    %v2828 = vpop.permute.xlu0 %2827
    %v2829 = vadd.f32 %v2826, %v2828
    %2830 = vrot.lane.b32.xlu0 %v2829, 16
    %v2831 = vpop.permute.xlu0 %2830
    %v2832 = vadd.f32 %v2829, %v2831
    %2833 = vrot.lane.b32.xlu0 %v2832, 32
    %v2834 = vpop.permute.xlu0 %2833
    %v2835 = vadd.f32 %v2832, %v2834
    %2836 = vrot.lane.b32.xlu0 %v2835, 64
    %v2837 = vpop.permute.xlu0 %2836
    %v2838 = vadd.f32 %v2835, %v2837
    %v2839 = vmul.f32 %v2838, 0.001953125
    %v2840 = vlaneseq
    %v2841 = vshrl.u32 %v2840, 7
    %v2842 = vsub.s32 0, %v2841
    %v2843 = vrot.slane %v2839, %v2842
    %v2844 = vsub.f32 %v2814, %v2843
    %v2845 = vsub.f32 %v2815, %v2843
    %v2846 = vsub.f32 %v2816, %v2843
    %v2847 = vsub.f32 %v2817, %v2843
    %v2848 = vmul.f32 %v2844, %v2844
    %v2849 = vmul.f32 %v2845, %v2845
    %v2850 = vmul.f32 %v2846, %v2846
    %v2851 = vmul.f32 %v2847, %v2847
    %v2852 = vadd.f32 %v2848, %v2849
    %v2853 = vadd.f32 %v2852, %v2850
    %v2854 = vadd.f32 %v2853, %v2851
    %v2855 = vrot.slane %v2854, 4
    %v2856 = vadd.f32 %v2854, %v2855
    %v2857 = vrot.slane %v2856, 2
    %v2858 = vadd.f32 %v2856, %v2857
    %v2859 = vrot.slane %v2858, 1
    %v2860 = vadd.f32 %v2858, %v2859
    %2861 = vrot.lane.b32.xlu0 %v2860, 8
    %v2862 = vpop.permute.xlu0 %2861
    %v2863 = vadd.f32 %v2860, %v2862
    %2864 = vrot.lane.b32.xlu0 %v2863, 16
    %v2865 = vpop.permute.xlu0 %2864
    %v2866 = vadd.f32 %v2863, %v2865
    %2867 = vrot.lane.b32.xlu0 %v2866, 32
    %v2868 = vpop.permute.xlu0 %2867
    %v2869 = vadd.f32 %v2866, %v2868
    %2870 = vrot.lane.b32.xlu0 %v2869, 64
    %v2871 = vpop.permute.xlu0 %2870
    %v2872 = vadd.f32 %v2869, %v2871
    %v2873 = vmul.f32 %v2872, 0.001953125
    %v2874 = vadd.f32 %v2873, 1e-05
    %v2875 = vrsqrt.pop %v2874
    %v2876 = vmul.f32 %v2451, %v2875
    %v2878 = vlaneseq
    %v2879 = vshrl.u32 %v2878, 7
    %v2880 = vsub.s32 0, %v2879
    %v2881 = vrot.slane %v2876, %v2880
    %v2883 = vmul.f32 %v2844, %v2881
    %v2884 = vmul.f32 %v2845, %v2881
    %v2885 = vmul.f32 %v2846, %v2881
    %v2886 = vmul.f32 %v2847, %v2881
    %v2888 = vlaneseq
    %v2889 = vshrl.u32 %v2888, 7
    %v2890 = vsub.s32 0, %v2889
    %v2891 = vrot.slane %v2453, %v2890
    %v2893 = vadd.f32 %v2883, %v2891
    %v2894 = vadd.f32 %v2884, %v2891
    %v2895 = vadd.f32 %v2885, %v2891
    %v2896 = vadd.f32 %v2886, %v2891
    %v2897 = vadd.f32 %v2893, %v2446
    %v2898 = vadd.f32 %v2894, %v2447
    %v2899 = vadd.f32 %v2895, %v2448
    %v2900 = vadd.f32 %v2896, %v2449
    %v2901 = vmax.f32 %v2897, 0.0
    %v2902 = vmax.f32 %v2898, 0.0
    %v2903 = vmax.f32 %v2899, 0.0
    %v2904 = vmax.f32 %v2900, 0.0
    %2905 = vst [vmem:[#allocation6 + $0x1] sm:$0xff] %v2901
    %2906 = vst [vmem:[#allocation6 + $0x9] sm:$0xff] %v2902
    %2907 = vst [vmem:[#allocation6 + $0x19] sm:$0xff] %v2903
    %2908 = vst [vmem:[#allocation6 + $0x21] sm:$0xff] %v2904
    %s2909 = scalar_lea.vmem %s3, 6
    %v2910 = vld [vmem:[%s2909] sm:$0x1]
    %s2911 = scalar_lea.vmem %s4, 6
    %v2912 = vld [vmem:[%s2911] sm:$0x1]
    %v2913 = vld [vmem:[#allocation6] ss:$2 sm:$0xff]
    %s2914 = scalar_lea.vmem [#allocation6], 24
    %v2915 = vld [vmem:[%s2914] ss:$2 sm:$0xff]
    %v2916 = vpack.c.bf16 %v2915, %v2913
    %s2917 = scalar_lea.vmem [#allocation8], 960
    %v2918 = vld [vmem:[%s2917] sm:$0xf]
    %v2919 = vld [vmem:[%s2917 + $0x4] sm:$0xf]
    %v2920 = vld [vmem:[%s2917 + $0x8] sm:$0xf]
    %v2921 = vld [vmem:[%s2917 + $0xc] sm:$0xf]
    %v2922 = vld [vmem:[%s2917 + $0x10] sm:$0xf]
    %v2923 = vld [vmem:[%s2917 + $0x14] sm:$0xf]
    %v2924 = vld [vmem:[%s2917 + $0x18] sm:$0xf]
    %v2925 = vld [vmem:[%s2917 + $0x1c] sm:$0xf]
    %v2926 = vld [vmem:[%s2917 + $0x20] sm:$0xf]
    %v2927 = vld [vmem:[%s2917 + $0x24] sm:$0xf]
    %v2928 = vld [vmem:[%s2917 + $0x28] sm:$0xf]
    %v2929 = vld [vmem:[%s2917 + $0x2c] sm:$0xf]
    %v2930 = vld [vmem:[%s2917 + $0x30] sm:$0xf]
    %v2931 = vld [vmem:[%s2917 + $0x34] sm:$0xf]
    %v2932 = vld [vmem:[%s2917 + $0x38] sm:$0xf]
    %v2933 = vld [vmem:[%s2917 + $0x3c] sm:$0xf]
    %s2934 = scalar_lea.vmem [#allocation6], 1
    %v2935 = vld [vmem:[%s2934] ss:$2 sm:$0xff]
    %s2936 = scalar_lea.vmem [#allocation6], 25
    %v2937 = vld [vmem:[%s2936] ss:$2 sm:$0xff]
    %v2938 = vpack.c.bf16 %v2937, %v2935
    %s2939 = scalar_lea.vmem [#allocation8], 1024
    %v2940 = vld [vmem:[%s2939] sm:$0xf]
    %v2941 = vld [vmem:[%s2939 + $0x4] sm:$0xf]
    %v2942 = vld [vmem:[%s2939 + $0x8] sm:$0xf]
    %v2943 = vld [vmem:[%s2939 + $0xc] sm:$0xf]
    %v2944 = vld [vmem:[%s2939 + $0x10] sm:$0xf]
    %v2945 = vld [vmem:[%s2939 + $0x14] sm:$0xf]
    %v2946 = vld [vmem:[%s2939 + $0x18] sm:$0xf]
    %v2947 = vld [vmem:[%s2939 + $0x1c] sm:$0xf]
    %v2948 = vld [vmem:[%s2939 + $0x20] sm:$0xf]
    %v2949 = vld [vmem:[%s2939 + $0x24] sm:$0xf]
    %v2950 = vld [vmem:[%s2939 + $0x28] sm:$0xf]
    %v2951 = vld [vmem:[%s2939 + $0x2c] sm:$0xf]
    %v2952 = vld [vmem:[%s2939 + $0x30] sm:$0xf]
    %v2953 = vld [vmem:[%s2939 + $0x34] sm:$0xf]
    %v2954 = vld [vmem:[%s2939 + $0x38] sm:$0xf]
    %v2955 = vld [vmem:[%s2939 + $0x3c] sm:$0xf]
    %v2972 = vunpack.c.l.b16 %v2940
    %v2973 = vunpack.c.l.b16 %v2941
    %v2974 = vunpack.c.l.b16 %v2942
    %v2975 = vunpack.c.l.b16 %v2943
    %v2976 = vunpack.c.l.b16 %v2944
    %v2977 = vunpack.c.l.b16 %v2945
    %v2978 = vunpack.c.l.b16 %v2946
    %v2979 = vunpack.c.l.b16 %v2947
    %v2980 = vunpack.c.l.b16 %v2948
    %v2981 = vunpack.c.l.b16 %v2949
    %v2982 = vunpack.c.l.b16 %v2950
    %v2983 = vunpack.c.l.b16 %v2951
    %v2984 = vunpack.c.l.b16 %v2952
    %v2985 = vunpack.c.l.b16 %v2953
    %v2986 = vunpack.c.l.b16 %v2954
    %v2987 = vunpack.c.l.b16 %v2955
    %v2988 = vpack.c.b16 %v2973, %v2972
    %v2989 = vpack.c.b16 %v2975, %v2974
    %v2990 = vpack.c.b16 %v2977, %v2976
    %v2991 = vpack.c.b16 %v2979, %v2978
    %v2992 = vpack.c.b16 %v2981, %v2980
    %v2993 = vpack.c.b16 %v2983, %v2982
    %v2994 = vpack.c.b16 %v2985, %v2984
    %v2995 = vpack.c.b16 %v2987, %v2986
    %3004 = vmatprep.subr.bf16.mxu0 0
    %3005 = vmatpush1.bf16.msra.mxu0 %v2988
    %3006 = vmatprep.subr.bf16.mxu0 0
    %3007 = vmatpush1.bf16.msra.mxu0 %v2989
    %3008 = vmatprep.subr.bf16.mxu0 0
    %3009 = vmatpush1.bf16.msra.mxu0 %v2990
    %3010 = vmatprep.subr.bf16.mxu0 0
    %3011 = vmatpush1.bf16.msra.mxu0 %v2991
    %3012 = vmatprep.subr.bf16.mxu0 0
    %3013 = vmatpush1.bf16.msra.mxu0 %v2992
    %3014 = vmatprep.subr.bf16.mxu0 0
    %3015 = vmatpush1.bf16.msra.mxu0 %v2993
    %3016 = vmatprep.subr.bf16.mxu0 0
    %3017 = vmatpush1.bf16.msra.mxu0 %v2994
    %3018 = vmatprep.subr.bf16.mxu0 0
    %3019 = vmatpush1.bf16.msra.mxu0 %v2995
    %3020 = vmatprep.subr.bf16.mxu0 0
    %3021 = vmatpush1.bf16.msra.mxu0 0
    %3022 = vmatprep.subr.bf16.mxu0 0
    %3023 = vmatpush1.bf16.msra.mxu0 0
    %3024 = vmatprep.subr.bf16.mxu0 0
    %3025 = vmatpush1.bf16.msra.mxu0 0
    %3026 = vmatprep.subr.bf16.mxu0 0
    %3027 = vmatpush1.bf16.msra.mxu0 0
    %3028 = vmatprep.subr.bf16.mxu0 0
    %3029 = vmatpush1.bf16.msra.mxu0 0
    %3030 = vmatprep.subr.bf16.mxu0 0
    %3031 = vmatpush1.bf16.msra.mxu0 0
    %3032 = vmatprep.subr.bf16.mxu0 0
    %3033 = vmatpush1.bf16.msra.mxu0 0
    %3034 = vmatprep.subr.bf16.mxu0 0
    %3035 = vmatpush1.bf16.msra.mxu0 0
    %3036 = vmatprep.mubr.bf16.mxu0 0
    %3037 = vmatmul.mubr.bf16.gmra.mrb[0].mxu0 %v2938
    %v3038 = vpop.f32.mrb[0].mxu0
    %v3039 = vadd.f32 0.0, %v3038
    %v3040 = vpop.f32.mrb[0].mxu0
    %v3041 = vpop.f32.mrb[0].mxu0
    %v3042 = vadd.f32 0.0, %v3041
    %v3043 = vpop.f32.mrb[0].mxu0
    %3044 = vdwg.mxu0
    %v3061 = vunpack.c.l.b16 %v2918
    %v3062 = vunpack.c.l.b16 %v2919
    %v3063 = vunpack.c.l.b16 %v2920
    %v3064 = vunpack.c.l.b16 %v2921
    %v3065 = vunpack.c.l.b16 %v2922
    %v3066 = vunpack.c.l.b16 %v2923
    %v3067 = vunpack.c.l.b16 %v2924
    %v3068 = vunpack.c.l.b16 %v2925
    %v3069 = vunpack.c.l.b16 %v2926
    %v3070 = vunpack.c.l.b16 %v2927
    %v3071 = vunpack.c.l.b16 %v2928
    %v3072 = vunpack.c.l.b16 %v2929
    %v3073 = vunpack.c.l.b16 %v2930
    %v3074 = vunpack.c.l.b16 %v2931
    %v3075 = vunpack.c.l.b16 %v2932
    %v3076 = vunpack.c.l.b16 %v2933
    %v3077 = vpack.c.b16 %v3062, %v3061
    %v3078 = vpack.c.b16 %v3064, %v3063
    %v3079 = vpack.c.b16 %v3066, %v3065
    %v3080 = vpack.c.b16 %v3068, %v3067
    %v3081 = vpack.c.b16 %v3070, %v3069
    %v3082 = vpack.c.b16 %v3072, %v3071
    %v3083 = vpack.c.b16 %v3074, %v3073
    %v3084 = vpack.c.b16 %v3076, %v3075
    %3093 = vmatprep.subr.bf16.mxu0 0
    %3094 = vmatpush1.bf16.msra.mxu0 %v3077
    %3095 = vmatprep.subr.bf16.mxu0 0
    %3096 = vmatpush1.bf16.msra.mxu0 %v3078
    %3097 = vmatprep.subr.bf16.mxu0 0
    %3098 = vmatpush1.bf16.msra.mxu0 %v3079
    %3099 = vmatprep.subr.bf16.mxu0 0
    %3100 = vmatpush1.bf16.msra.mxu0 %v3080
    %3101 = vmatprep.subr.bf16.mxu0 0
    %3102 = vmatpush1.bf16.msra.mxu0 %v3081
    %3103 = vmatprep.subr.bf16.mxu0 0
    %3104 = vmatpush1.bf16.msra.mxu0 %v3082
    %3105 = vmatprep.subr.bf16.mxu0 0
    %3106 = vmatpush1.bf16.msra.mxu0 %v3083
    %3107 = vmatprep.subr.bf16.mxu0 0
    %3108 = vmatpush1.bf16.msra.mxu0 %v3084
    %3109 = vmatprep.subr.bf16.mxu0 0
    %3110 = vmatpush1.bf16.msra.mxu0 0
    %3111 = vmatprep.subr.bf16.mxu0 0
    %3112 = vmatpush1.bf16.msra.mxu0 0
    %3113 = vmatprep.subr.bf16.mxu0 0
    %3114 = vmatpush1.bf16.msra.mxu0 0
    %3115 = vmatprep.subr.bf16.mxu0 0
    %3116 = vmatpush1.bf16.msra.mxu0 0
    %3117 = vmatprep.subr.bf16.mxu0 0
    %3118 = vmatpush1.bf16.msra.mxu0 0
    %3119 = vmatprep.subr.bf16.mxu0 0
    %3120 = vmatpush1.bf16.msra.mxu0 0
    %3121 = vmatprep.subr.bf16.mxu0 0
    %3122 = vmatpush1.bf16.msra.mxu0 0
    %3123 = vmatprep.subr.bf16.mxu0 0
    %3124 = vmatpush1.bf16.msra.mxu0 0
    %3125 = vmatprep.mubr.bf16.mxu0 0
    %3126 = vmatmul.mubr.bf16.gmra.mrb[0].mxu0 %v2916
    %v3127 = vpop.f32.mrb[0].mxu0
    %v3128 = vadd.f32 %v3039, %v3127
    %v3129 = vpop.f32.mrb[0].mxu0
    %v3130 = vpop.f32.mrb[0].mxu0
    %v3131 = vadd.f32 %v3042, %v3130
    %v3132 = vpop.f32.mrb[0].mxu0
    %3133 = vdwg.mxu0
    %s3134 = scalar_lea.vmem [#allocation6], 2
    %v3135 = vld [vmem:[%s3134] ss:$2 sm:$0xff]
    %s3136 = scalar_lea.vmem [#allocation6], 26
    %v3137 = vld [vmem:[%s3136] ss:$2 sm:$0xff]
    %v3138 = vpack.c.bf16 %v3137, %v3135
    %s3139 = scalar_lea.vmem [#allocation8], 1088
    %v3140 = vld [vmem:[%s3139] sm:$0xf]
    %v3141 = vld [vmem:[%s3139 + $0x4] sm:$0xf]
    %v3142 = vld [vmem:[%s3139 + $0x8] sm:$0xf]
    %v3143 = vld [vmem:[%s3139 + $0xc] sm:$0xf]
    %v3144 = vld [vmem:[%s3139 + $0x10] sm:$0xf]
    %v3145 = vld [vmem:[%s3139 + $0x14] sm:$0xf]
    %v3146 = vld [vmem:[%s3139 + $0x18] sm:$0xf]
    %v3147 = vld [vmem:[%s3139 + $0x1c] sm:$0xf]
    %v3148 = vld [vmem:[%s3139 + $0x20] sm:$0xf]
    %v3149 = vld [vmem:[%s3139 + $0x24] sm:$0xf]
    %v3150 = vld [vmem:[%s3139 + $0x28] sm:$0xf]
    %v3151 = vld [vmem:[%s3139 + $0x2c] sm:$0xf]
    %v3152 = vld [vmem:[%s3139 + $0x30] sm:$0xf]
    %v3153 = vld [vmem:[%s3139 + $0x34] sm:$0xf]
    %v3154 = vld [vmem:[%s3139 + $0x38] sm:$0xf]
    %v3155 = vld [vmem:[%s3139 + $0x3c] sm:$0xf]
    %v3172 = vunpack.c.l.b16 %v3140
    %v3173 = vunpack.c.l.b16 %v3141
    %v3174 = vunpack.c.l.b16 %v3142
    %v3175 = vunpack.c.l.b16 %v3143
    %v3176 = vunpack.c.l.b16 %v3144
    %v3177 = vunpack.c.l.b16 %v3145
    %v3178 = vunpack.c.l.b16 %v3146
    %v3179 = vunpack.c.l.b16 %v3147
    %v3180 = vunpack.c.l.b16 %v3148
    %v3181 = vunpack.c.l.b16 %v3149
    %v3182 = vunpack.c.l.b16 %v3150
    %v3183 = vunpack.c.l.b16 %v3151
    %v3184 = vunpack.c.l.b16 %v3152
    %v3185 = vunpack.c.l.b16 %v3153
    %v3186 = vunpack.c.l.b16 %v3154
    %v3187 = vunpack.c.l.b16 %v3155
    %v3188 = vpack.c.b16 %v3173, %v3172
    %v3189 = vpack.c.b16 %v3175, %v3174
    %v3190 = vpack.c.b16 %v3177, %v3176
    %v3191 = vpack.c.b16 %v3179, %v3178
    %v3192 = vpack.c.b16 %v3181, %v3180
    %v3193 = vpack.c.b16 %v3183, %v3182
    %v3194 = vpack.c.b16 %v3185, %v3184
    %v3195 = vpack.c.b16 %v3187, %v3186
    %3204 = vmatprep.subr.bf16.mxu0 0
    %3205 = vmatpush1.bf16.msra.mxu0 %v3188
    %3206 = vmatprep.subr.bf16.mxu0 0
    %3207 = vmatpush1.bf16.msra.mxu0 %v3189
    %3208 = vmatprep.subr.bf16.mxu0 0
    %3209 = vmatpush1.bf16.msra.mxu0 %v3190
    %3210 = vmatprep.subr.bf16.mxu0 0
    %3211 = vmatpush1.bf16.msra.mxu0 %v3191
    %3212 = vmatprep.subr.bf16.mxu0 0
    %3213 = vmatpush1.bf16.msra.mxu0 %v3192
    %3214 = vmatprep.subr.bf16.mxu0 0
    %3215 = vmatpush1.bf16.msra.mxu0 %v3193
    %3216 = vmatprep.subr.bf16.mxu0 0
    %3217 = vmatpush1.bf16.msra.mxu0 %v3194
    %3218 = vmatprep.subr.bf16.mxu0 0
    %3219 = vmatpush1.bf16.msra.mxu0 %v3195
    %3220 = vmatprep.subr.bf16.mxu0 0
    %3221 = vmatpush1.bf16.msra.mxu0 0
    %3222 = vmatprep.subr.bf16.mxu0 0
    %3223 = vmatpush1.bf16.msra.mxu0 0
    %3224 = vmatprep.subr.bf16.mxu0 0
    %3225 = vmatpush1.bf16.msra.mxu0 0
    %3226 = vmatprep.subr.bf16.mxu0 0
    %3227 = vmatpush1.bf16.msra.mxu0 0
    %3228 = vmatprep.subr.bf16.mxu0 0
    %3229 = vmatpush1.bf16.msra.mxu0 0
    %3230 = vmatprep.subr.bf16.mxu0 0
    %3231 = vmatpush1.bf16.msra.mxu0 0
    %3232 = vmatprep.subr.bf16.mxu0 0
    %3233 = vmatpush1.bf16.msra.mxu0 0
    %3234 = vmatprep.subr.bf16.mxu0 0
    %3235 = vmatpush1.bf16.msra.mxu0 0
    %3236 = vmatprep.mubr.bf16.mxu0 0
    %3237 = vmatmul.mubr.bf16.gmra.mrb[0].mxu0 %v3138
    %v3238 = vpop.f32.mrb[0].mxu0
    %v3239 = vadd.f32 0.0, %v3238
    %v3240 = vpop.f32.mrb[0].mxu0
    %v3241 = vpop.f32.mrb[0].mxu0
    %v3242 = vadd.f32 0.0, %v3241
    %v3243 = vpop.f32.mrb[0].mxu0
    %3244 = vdwg.mxu0
    %v3245 = vadd.f32 %v3128, %v3239
    %v3246 = vadd.f32 %v3131, %v3242
    %v3247 = vadd.f32 %v3245, %v3246
    %v3248 = vrot.slane %v3247, 4
    %v3249 = vadd.f32 %v3247, %v3248
    %v3250 = vrot.slane %v3249, 2
    %v3251 = vadd.f32 %v3249, %v3250
    %v3252 = vrot.slane %v3251, 1
    %v3253 = vadd.f32 %v3251, %v3252
    %3254 = vrot.lane.b32.xlu0 %v3253, 16
    %v3255 = vpop.permute.xlu0 %3254
    %v3256 = vadd.f32 %v3253, %v3255
    %3257 = vrot.lane.b32.xlu0 %v3256, 32
    %v3258 = vpop.permute.xlu0 %3257
    %v3259 = vadd.f32 %v3256, %v3258
    %3260 = vrot.lane.b32.xlu0 %v3259, 64
    %v3261 = vpop.permute.xlu0 %3260
    %v3262 = vadd.f32 %v3259, %v3261
    %v3263 = vmul.f32 %v3262, 0.0078125
    %v3264 = vlaneseq
    %v3265 = vshrl.u32 %v3264, 7
    %v3266 = vsub.s32 0, %v3265
    %v3267 = vrot.slane %v3263, %v3266
    %v3268 = vsub.f32 %v3245, %v3267
    %v3269 = vsub.f32 %v3246, %v3267
    %v3270 = vmul.f32 %v3268, %v3268
    %v3271 = vmul.f32 %v3269, %v3269
    %v3272 = vadd.f32 %v3270, %v3271
    %v3273 = vrot.slane %v3272, 4
    %v3274 = vadd.f32 %v3272, %v3273
    %v3275 = vrot.slane %v3274, 2
    %v3276 = vadd.f32 %v3274, %v3275
    %v3277 = vrot.slane %v3276, 1
    %v3278 = vadd.f32 %v3276, %v3277
    %3279 = vrot.lane.b32.xlu0 %v3278, 16
    %v3280 = vpop.permute.xlu0 %3279
    %v3281 = vadd.f32 %v3278, %v3280
    %3282 = vrot.lane.b32.xlu0 %v3281, 32
    %v3283 = vpop.permute.xlu0 %3282
    %v3284 = vadd.f32 %v3281, %v3283
    %3285 = vrot.lane.b32.xlu0 %v3284, 64
    %v3286 = vpop.permute.xlu0 %3285
    %v3287 = vadd.f32 %v3284, %v3286
    %v3288 = vmul.f32 %v3287, 0.0078125
    %v3289 = vadd.f32 %v3288, 1e-05
    %v3290 = vrsqrt.pop %v3289
    %v3291 = vmul.f32 %v2910, %v3290
    %v3293 = vlaneseq
    %v3294 = vshrl.u32 %v3293, 7
    %v3295 = vsub.s32 0, %v3294
    %v3296 = vrot.slane %v3291, %v3295
    %v3298 = vmul.f32 %v3268, %v3296
    %v3299 = vmul.f32 %v3269, %v3296
    %v3301 = vlaneseq
    %v3302 = vshrl.u32 %v3301, 7
    %v3303 = vsub.s32 0, %v3302
    %v3304 = vrot.slane %v2912, %v3303
    %v3306 = vadd.f32 %v3298, %v3304
    %v3307 = vadd.f32 %v3299, %v3304
    %v3308 = vmax.f32 %v3306, 0.0
    %v3309 = vmax.f32 %v3307, 0.0
    %3310 = vst [vmem:[#allocation7 + $0x1] sm:$0xff] %v3308
    %3311 = vst [vmem:[#allocation7 + $0x11] sm:$0xff] %v3309
    %s3312 = scalar_lea.vmem %s2, 64
    %v3313 = vld [vmem:[%s3312] sm:$0xf]
    %v3314 = vld [vmem:[%s3312 + $0x4] sm:$0xf]
    %v3315 = vld [vmem:[%s3312 + $0x8] sm:$0xf]
    %v3316 = vld [vmem:[%s3312 + $0xc] sm:$0xf]
    %v3317 = vld [vmem:[%s3312 + $0x10] sm:$0xf]
    %v3318 = vld [vmem:[%s3312 + $0x14] sm:$0xf]
    %v3319 = vld [vmem:[%s3312 + $0x18] sm:$0xf]
    %v3320 = vld [vmem:[%s3312 + $0x1c] sm:$0xf]
    %v3321 = vld [vmem:[%s3312 + $0x20] sm:$0xf]
    %v3322 = vld [vmem:[%s3312 + $0x24] sm:$0xf]
    %v3323 = vld [vmem:[%s3312 + $0x28] sm:$0xf]
    %v3324 = vld [vmem:[%s3312 + $0x2c] sm:$0xf]
    %v3325 = vld [vmem:[%s3312 + $0x30] sm:$0xf]
    %v3326 = vld [vmem:[%s3312 + $0x34] sm:$0xf]
    %v3327 = vld [vmem:[%s3312 + $0x38] sm:$0xf]
    %v3328 = vld [vmem:[%s3312 + $0x3c] sm:$0xf]
    %s3329 = scalar_lea.vmem %s3, 8
    %v3330 = vld [vmem:[%s3329] sm:$0x1]
    %s3331 = scalar_lea.vmem %s4, 8
    %v3332 = vld [vmem:[%s3331] sm:$0x1]
    %v3333 = vld [vmem:[%s2934] ss:$2 sm:$0xff]
    %v3334 = vld [vmem:[%s2936] ss:$2 sm:$0xff]
    %v3335 = vpack.c.bf16 %v3334, %v3333
    %v3352 = vunpack.c.l.b16 %v3313
    %v3353 = vunpack.c.l.b16 %v3314
    %v3354 = vunpack.c.l.b16 %v3315
    %v3355 = vunpack.c.l.b16 %v3316
    %v3356 = vunpack.c.l.b16 %v3317
    %v3357 = vunpack.c.l.b16 %v3318
    %v3358 = vunpack.c.l.b16 %v3319
    %v3359 = vunpack.c.l.b16 %v3320
    %v3360 = vunpack.c.l.b16 %v3321
    %v3361 = vunpack.c.l.b16 %v3322
    %v3362 = vunpack.c.l.b16 %v3323
    %v3363 = vunpack.c.l.b16 %v3324
    %v3364 = vunpack.c.l.b16 %v3325
    %v3365 = vunpack.c.l.b16 %v3326
    %v3366 = vunpack.c.l.b16 %v3327
    %v3367 = vunpack.c.l.b16 %v3328
    %v3368 = vpack.c.b16 %v3353, %v3352
    %v3369 = vpack.c.b16 %v3355, %v3354
    %v3370 = vpack.c.b16 %v3357, %v3356
    %v3371 = vpack.c.b16 %v3359, %v3358
    %v3372 = vpack.c.b16 %v3361, %v3360
    %v3373 = vpack.c.b16 %v3363, %v3362
    %v3374 = vpack.c.b16 %v3365, %v3364
    %v3375 = vpack.c.b16 %v3367, %v3366
    %3384 = vmatprep.subr.bf16.mxu0 0
    %3385 = vmatpush1.bf16.msra.mxu0 %v3368
    %3386 = vmatprep.subr.bf16.mxu0 0
    %3387 = vmatpush1.bf16.msra.mxu0 %v3369
    %3388 = vmatprep.subr.bf16.mxu0 0
    %3389 = vmatpush1.bf16.msra.mxu0 %v3370
    %3390 = vmatprep.subr.bf16.mxu0 0
    %3391 = vmatpush1.bf16.msra.mxu0 %v3371
    %3392 = vmatprep.subr.bf16.mxu0 0
    %3393 = vmatpush1.bf16.msra.mxu0 %v3372
    %3394 = vmatprep.subr.bf16.mxu0 0
    %3395 = vmatpush1.bf16.msra.mxu0 %v3373
    %3396 = vmatprep.subr.bf16.mxu0 0
    %3397 = vmatpush1.bf16.msra.mxu0 %v3374
    %3398 = vmatprep.subr.bf16.mxu0 0
    %3399 = vmatpush1.bf16.msra.mxu0 %v3375
    %3400 = vmatprep.subr.bf16.mxu0 0
    %3401 = vmatpush1.bf16.msra.mxu0 0
    %3402 = vmatprep.subr.bf16.mxu0 0
    %3403 = vmatpush1.bf16.msra.mxu0 0
    %3404 = vmatprep.subr.bf16.mxu0 0
    %3405 = vmatpush1.bf16.msra.mxu0 0
    %3406 = vmatprep.subr.bf16.mxu0 0
    %3407 = vmatpush1.bf16.msra.mxu0 0
    %3408 = vmatprep.subr.bf16.mxu0 0
    %3409 = vmatpush1.bf16.msra.mxu0 0
    %3410 = vmatprep.subr.bf16.mxu0 0
    %3411 = vmatpush1.bf16.msra.mxu0 0
    %3412 = vmatprep.subr.bf16.mxu0 0
    %3413 = vmatpush1.bf16.msra.mxu0 0
    %3414 = vmatprep.subr.bf16.mxu0 0
    %3415 = vmatpush1.bf16.msra.mxu0 0
    %3416 = vmatprep.mubr.bf16.mxu0 0
    %3417 = vmatmul.mubr.bf16.gmra.mrb[0].mxu0 %v3335
    %v3418 = vpop.f32.mrb[0].mxu0
    %v3419 = vadd.f32 0.0, %v3418
    %v3420 = vpop.f32.mrb[0].mxu0
    %v3421 = vpop.f32.mrb[0].mxu0
    %v3422 = vadd.f32 0.0, %v3421
    %v3423 = vpop.f32.mrb[0].mxu0
    %3424 = vdwg.mxu0
    %v3425 = vadd.f32 %v3419, %v3422
    %v3426 = vrot.slane %v3425, 4
    %v3427 = vadd.f32 %v3425, %v3426
    %v3428 = vrot.slane %v3427, 2
    %v3429 = vadd.f32 %v3427, %v3428
    %v3430 = vrot.slane %v3429, 1
    %v3431 = vadd.f32 %v3429, %v3430
    %3432 = vrot.lane.b32.xlu0 %v3431, 16
    %v3433 = vpop.permute.xlu0 %3432
    %v3434 = vadd.f32 %v3431, %v3433
    %3435 = vrot.lane.b32.xlu0 %v3434, 32
    %v3436 = vpop.permute.xlu0 %3435
    %v3437 = vadd.f32 %v3434, %v3436
    %3438 = vrot.lane.b32.xlu0 %v3437, 64
    %v3439 = vpop.permute.xlu0 %3438
    %v3440 = vadd.f32 %v3437, %v3439
    %v3441 = vmul.f32 %v3440, 0.0078125
    %v3442 = vlaneseq
    %v3443 = vshrl.u32 %v3442, 7
    %v3444 = vsub.s32 0, %v3443
    %v3445 = vrot.slane %v3441, %v3444
    %v3446 = vsub.f32 %v3419, %v3445
    %v3447 = vsub.f32 %v3422, %v3445
    %v3448 = vmul.f32 %v3446, %v3446
    %v3449 = vmul.f32 %v3447, %v3447
    %v3450 = vadd.f32 %v3448, %v3449
    %v3451 = vrot.slane %v3450, 4
    %v3452 = vadd.f32 %v3450, %v3451
    %v3453 = vrot.slane %v3452, 2
    %v3454 = vadd.f32 %v3452, %v3453
    %v3455 = vrot.slane %v3454, 1
    %v3456 = vadd.f32 %v3454, %v3455
    %3457 = vrot.lane.b32.xlu0 %v3456, 16
    %v3458 = vpop.permute.xlu0 %3457
    %v3459 = vadd.f32 %v3456, %v3458
    %3460 = vrot.lane.b32.xlu0 %v3459, 32
    %v3461 = vpop.permute.xlu0 %3460
    %v3462 = vadd.f32 %v3459, %v3461
    %3463 = vrot.lane.b32.xlu0 %v3462, 64
    %v3464 = vpop.permute.xlu0 %3463
    %v3465 = vadd.f32 %v3462, %v3464
    %v3466 = vmul.f32 %v3465, 0.0078125
    %v3467 = vadd.f32 %v3466, 1e-05
    %v3468 = vrsqrt.pop %v3467
    %v3469 = vmul.f32 %v3330, %v3468
    %v3471 = vlaneseq
    %v3472 = vshrl.u32 %v3471, 7
    %v3473 = vsub.s32 0, %v3472
    %v3474 = vrot.slane %v3469, %v3473
    %v3476 = vmul.f32 %v3446, %v3474
    %v3477 = vmul.f32 %v3447, %v3474
    %v3479 = vlaneseq
    %v3480 = vshrl.u32 %v3479, 7
    %v3481 = vsub.s32 0, %v3480
    %v3482 = vrot.slane %v3332, %v3481
    %v3484 = vadd.f32 %v3476, %v3482
    %v3485 = vadd.f32 %v3477, %v3482
    %s3486 = scalar_lea.vmem %s3, 7
    %v3487 = vld [vmem:[%s3486] sm:$0x1]
    %s3488 = scalar_lea.vmem %s4, 7
    %v3489 = vld [vmem:[%s3488] sm:$0x1]
    %v3490 = vld [vmem:[#allocation7] sm:$0xff]
    %v3491 = vld [vmem:[#allocation7 + $0x10] sm:$0xff]
    %v3492 = vpack.c.bf16 %v3491, %v3490
    %s3493 = scalar_lea.vmem [#allocation8], 1152
    %v3494 = vld [vmem:[%s3493] sm:$0xf]
    %v3495 = vld [vmem:[%s3493 + $0x4] sm:$0xf]
    %v3496 = vld [vmem:[%s3493 + $0x8] sm:$0xf]
    %v3497 = vld [vmem:[%s3493 + $0xc] sm:$0xf]
    %v3498 = vld [vmem:[%s3493 + $0x10] sm:$0xf]
    %v3499 = vld [vmem:[%s3493 + $0x14] sm:$0xf]
    %v3500 = vld [vmem:[%s3493 + $0x18] sm:$0xf]
    %v3501 = vld [vmem:[%s3493 + $0x1c] sm:$0xf]
    %v3502 = vld [vmem:[%s3493 + $0x20] sm:$0xf]
    %v3503 = vld [vmem:[%s3493 + $0x24] sm:$0xf]
    %v3504 = vld [vmem:[%s3493 + $0x28] sm:$0xf]
    %v3505 = vld [vmem:[%s3493 + $0x2c] sm:$0xf]
    %v3506 = vld [vmem:[%s3493 + $0x30] sm:$0xf]
    %v3507 = vld [vmem:[%s3493 + $0x34] sm:$0xf]
    %v3508 = vld [vmem:[%s3493 + $0x38] sm:$0xf]
    %v3509 = vld [vmem:[%s3493 + $0x3c] sm:$0xf]
    %v3510 = vld [vmem:[#allocation7 + $0x1] sm:$0xff]
    %v3511 = vld [vmem:[#allocation7 + $0x11] sm:$0xff]
    %v3512 = vpack.c.bf16 %v3511, %v3510
    %s3513 = scalar_lea.vmem [#allocation8], 1216
    %v3514 = vld [vmem:[%s3513] sm:$0xf]
    %v3515 = vld [vmem:[%s3513 + $0x4] sm:$0xf]
    %v3516 = vld [vmem:[%s3513 + $0x8] sm:$0xf]
    %v3517 = vld [vmem:[%s3513 + $0xc] sm:$0xf]
    %v3518 = vld [vmem:[%s3513 + $0x10] sm:$0xf]
    %v3519 = vld [vmem:[%s3513 + $0x14] sm:$0xf]
    %v3520 = vld [vmem:[%s3513 + $0x18] sm:$0xf]
    %v3521 = vld [vmem:[%s3513 + $0x1c] sm:$0xf]
    %v3522 = vld [vmem:[%s3513 + $0x20] sm:$0xf]
    %v3523 = vld [vmem:[%s3513 + $0x24] sm:$0xf]
    %v3524 = vld [vmem:[%s3513 + $0x28] sm:$0xf]
    %v3525 = vld [vmem:[%s3513 + $0x2c] sm:$0xf]
    %v3526 = vld [vmem:[%s3513 + $0x30] sm:$0xf]
    %v3527 = vld [vmem:[%s3513 + $0x34] sm:$0xf]
    %v3528 = vld [vmem:[%s3513 + $0x38] sm:$0xf]
    %v3529 = vld [vmem:[%s3513 + $0x3c] sm:$0xf]
    %v3546 = vunpack.c.l.b16 %v3514
    %v3547 = vunpack.c.l.b16 %v3515
    %v3548 = vunpack.c.l.b16 %v3516
    %v3549 = vunpack.c.l.b16 %v3517
    %v3550 = vunpack.c.l.b16 %v3518
    %v3551 = vunpack.c.l.b16 %v3519
    %v3552 = vunpack.c.l.b16 %v3520
    %v3553 = vunpack.c.l.b16 %v3521
    %v3554 = vunpack.c.l.b16 %v3522
    %v3555 = vunpack.c.l.b16 %v3523
    %v3556 = vunpack.c.l.b16 %v3524
    %v3557 = vunpack.c.l.b16 %v3525
    %v3558 = vunpack.c.l.b16 %v3526
    %v3559 = vunpack.c.l.b16 %v3527
    %v3560 = vunpack.c.l.b16 %v3528
    %v3561 = vunpack.c.l.b16 %v3529
    %v3562 = vpack.c.b16 %v3547, %v3546
    %v3563 = vpack.c.b16 %v3549, %v3548
    %v3564 = vpack.c.b16 %v3551, %v3550
    %v3565 = vpack.c.b16 %v3553, %v3552
    %v3566 = vpack.c.b16 %v3555, %v3554
    %v3567 = vpack.c.b16 %v3557, %v3556
    %v3568 = vpack.c.b16 %v3559, %v3558
    %v3569 = vpack.c.b16 %v3561, %v3560
    %3578 = vmatprep.subr.bf16.mxu0 0
    %3579 = vmatpush1.bf16.msra.mxu0 %v3562
    %3580 = vmatprep.subr.bf16.mxu0 0
    %3581 = vmatpush1.bf16.msra.mxu0 %v3563
    %3582 = vmatprep.subr.bf16.mxu0 0
    %3583 = vmatpush1.bf16.msra.mxu0 %v3564
    %3584 = vmatprep.subr.bf16.mxu0 0
    %3585 = vmatpush1.bf16.msra.mxu0 %v3565
    %3586 = vmatprep.subr.bf16.mxu0 0
    %3587 = vmatpush1.bf16.msra.mxu0 %v3566
    %3588 = vmatprep.subr.bf16.mxu0 0
    %3589 = vmatpush1.bf16.msra.mxu0 %v3567
    %3590 = vmatprep.subr.bf16.mxu0 0
    %3591 = vmatpush1.bf16.msra.mxu0 %v3568
    %3592 = vmatprep.subr.bf16.mxu0 0
    %3593 = vmatpush1.bf16.msra.mxu0 %v3569
    %3594 = vmatprep.subr.bf16.mxu0 0
    %3595 = vmatpush1.bf16.msra.mxu0 0
    %3596 = vmatprep.subr.bf16.mxu0 0
    %3597 = vmatpush1.bf16.msra.mxu0 0
    %3598 = vmatprep.subr.bf16.mxu0 0
    %3599 = vmatpush1.bf16.msra.mxu0 0
    %3600 = vmatprep.subr.bf16.mxu0 0
    %3601 = vmatpush1.bf16.msra.mxu0 0
    %3602 = vmatprep.subr.bf16.mxu0 0
    %3603 = vmatpush1.bf16.msra.mxu0 0
    %3604 = vmatprep.subr.bf16.mxu0 0
    %3605 = vmatpush1.bf16.msra.mxu0 0
    %3606 = vmatprep.subr.bf16.mxu0 0
    %3607 = vmatpush1.bf16.msra.mxu0 0
    %3608 = vmatprep.subr.bf16.mxu0 0
    %3609 = vmatpush1.bf16.msra.mxu0 0
    %3610 = vmatprep.mubr.bf16.mxu0 0
    %3611 = vmatmul.mubr.bf16.gmra.mrb[0].mxu0 %v3512
    %v3612 = vpop.f32.mrb[0].mxu0
    %v3613 = vadd.f32 0.0, %v3612
    %v3614 = vpop.f32.mrb[0].mxu0
    %v3615 = vpop.f32.mrb[0].mxu0
    %v3616 = vadd.f32 0.0, %v3615
    %v3617 = vpop.f32.mrb[0].mxu0
    %3618 = vdwg.mxu0
    %v3635 = vunpack.c.l.b16 %v3494
    %v3636 = vunpack.c.l.b16 %v3495
    %v3637 = vunpack.c.l.b16 %v3496
    %v3638 = vunpack.c.l.b16 %v3497
    %v3639 = vunpack.c.l.b16 %v3498
    %v3640 = vunpack.c.l.b16 %v3499
    %v3641 = vunpack.c.l.b16 %v3500
    %v3642 = vunpack.c.l.b16 %v3501
    %v3643 = vunpack.c.l.b16 %v3502
    %v3644 = vunpack.c.l.b16 %v3503
    %v3645 = vunpack.c.l.b16 %v3504
    %v3646 = vunpack.c.l.b16 %v3505
    %v3647 = vunpack.c.l.b16 %v3506
    %v3648 = vunpack.c.l.b16 %v3507
    %v3649 = vunpack.c.l.b16 %v3508
    %v3650 = vunpack.c.l.b16 %v3509
    %v3651 = vpack.c.b16 %v3636, %v3635
    %v3652 = vpack.c.b16 %v3638, %v3637
    %v3653 = vpack.c.b16 %v3640, %v3639
    %v3654 = vpack.c.b16 %v3642, %v3641
    %v3655 = vpack.c.b16 %v3644, %v3643
    %v3656 = vpack.c.b16 %v3646, %v3645
    %v3657 = vpack.c.b16 %v3648, %v3647
    %v3658 = vpack.c.b16 %v3650, %v3649
    %3667 = vmatprep.subr.bf16.mxu0 0
    %3668 = vmatpush1.bf16.msra.mxu0 %v3651
    %3669 = vmatprep.subr.bf16.mxu0 0
    %3670 = vmatpush1.bf16.msra.mxu0 %v3652
    %3671 = vmatprep.subr.bf16.mxu0 0
    %3672 = vmatpush1.bf16.msra.mxu0 %v3653
    %3673 = vmatprep.subr.bf16.mxu0 0
    %3674 = vmatpush1.bf16.msra.mxu0 %v3654
    %3675 = vmatprep.subr.bf16.mxu0 0
    %3676 = vmatpush1.bf16.msra.mxu0 %v3655
    %3677 = vmatprep.subr.bf16.mxu0 0
    %3678 = vmatpush1.bf16.msra.mxu0 %v3656
    %3679 = vmatprep.subr.bf16.mxu0 0
    %3680 = vmatpush1.bf16.msra.mxu0 %v3657
    %3681 = vmatprep.subr.bf16.mxu0 0
    %3682 = vmatpush1.bf16.msra.mxu0 %v3658
    %3683 = vmatprep.subr.bf16.mxu0 0
    %3684 = vmatpush1.bf16.msra.mxu0 0
    %3685 = vmatprep.subr.bf16.mxu0 0
    %3686 = vmatpush1.bf16.msra.mxu0 0
    %3687 = vmatprep.subr.bf16.mxu0 0
    %3688 = vmatpush1.bf16.msra.mxu0 0
    %3689 = vmatprep.subr.bf16.mxu0 0
    %3690 = vmatpush1.bf16.msra.mxu0 0
    %3691 = vmatprep.subr.bf16.mxu0 0
    %3692 = vmatpush1.bf16.msra.mxu0 0
    %3693 = vmatprep.subr.bf16.mxu0 0
    %3694 = vmatpush1.bf16.msra.mxu0 0
    %3695 = vmatprep.subr.bf16.mxu0 0
    %3696 = vmatpush1.bf16.msra.mxu0 0
    %3697 = vmatprep.subr.bf16.mxu0 0
    %3698 = vmatpush1.bf16.msra.mxu0 0
    %3699 = vmatprep.mubr.bf16.mxu0 0
    %3700 = vmatmul.mubr.bf16.gmra.mrb[0].mxu0 %v3492
    %v3701 = vpop.f32.mrb[0].mxu0
    %v3702 = vadd.f32 %v3613, %v3701
    %v3703 = vpop.f32.mrb[0].mxu0
    %v3704 = vpop.f32.mrb[0].mxu0
    %v3705 = vadd.f32 %v3616, %v3704
    %v3706 = vpop.f32.mrb[0].mxu0
    %3707 = vdwg.mxu0
    %v3708 = vld [vmem:[#allocation7 + $0x2] sm:$0xff]
    %v3709 = vld [vmem:[#allocation7 + $0x12] sm:$0xff]
    %v3710 = vpack.c.bf16 %v3709, %v3708
    %s3711 = scalar_lea.vmem [#allocation8], 1280
    %v3712 = vld [vmem:[%s3711] sm:$0xf]
    %v3713 = vld [vmem:[%s3711 + $0x4] sm:$0xf]
    %v3714 = vld [vmem:[%s3711 + $0x8] sm:$0xf]
    %v3715 = vld [vmem:[%s3711 + $0xc] sm:$0xf]
    %v3716 = vld [vmem:[%s3711 + $0x10] sm:$0xf]
    %v3717 = vld [vmem:[%s3711 + $0x14] sm:$0xf]
    %v3718 = vld [vmem:[%s3711 + $0x18] sm:$0xf]
    %v3719 = vld [vmem:[%s3711 + $0x1c] sm:$0xf]
    %v3720 = vld [vmem:[%s3711 + $0x20] sm:$0xf]
    %v3721 = vld [vmem:[%s3711 + $0x24] sm:$0xf]
    %v3722 = vld [vmem:[%s3711 + $0x28] sm:$0xf]
    %v3723 = vld [vmem:[%s3711 + $0x2c] sm:$0xf]
    %v3724 = vld [vmem:[%s3711 + $0x30] sm:$0xf]
    %v3725 = vld [vmem:[%s3711 + $0x34] sm:$0xf]
    %v3726 = vld [vmem:[%s3711 + $0x38] sm:$0xf]
    %v3727 = vld [vmem:[%s3711 + $0x3c] sm:$0xf]
    %v3744 = vunpack.c.l.b16 %v3712
    %v3745 = vunpack.c.l.b16 %v3713
    %v3746 = vunpack.c.l.b16 %v3714
    %v3747 = vunpack.c.l.b16 %v3715
    %v3748 = vunpack.c.l.b16 %v3716
    %v3749 = vunpack.c.l.b16 %v3717
    %v3750 = vunpack.c.l.b16 %v3718
    %v3751 = vunpack.c.l.b16 %v3719
    %v3752 = vunpack.c.l.b16 %v3720
    %v3753 = vunpack.c.l.b16 %v3721
    %v3754 = vunpack.c.l.b16 %v3722
    %v3755 = vunpack.c.l.b16 %v3723
    %v3756 = vunpack.c.l.b16 %v3724
    %v3757 = vunpack.c.l.b16 %v3725
    %v3758 = vunpack.c.l.b16 %v3726
    %v3759 = vunpack.c.l.b16 %v3727
    %v3760 = vpack.c.b16 %v3745, %v3744
    %v3761 = vpack.c.b16 %v3747, %v3746
    %v3762 = vpack.c.b16 %v3749, %v3748
    %v3763 = vpack.c.b16 %v3751, %v3750
    %v3764 = vpack.c.b16 %v3753, %v3752
    %v3765 = vpack.c.b16 %v3755, %v3754
    %v3766 = vpack.c.b16 %v3757, %v3756
    %v3767 = vpack.c.b16 %v3759, %v3758
    %3776 = vmatprep.subr.bf16.mxu0 0
    %3777 = vmatpush1.bf16.msra.mxu0 %v3760
    %3778 = vmatprep.subr.bf16.mxu0 0
    %3779 = vmatpush1.bf16.msra.mxu0 %v3761
    %3780 = vmatprep.subr.bf16.mxu0 0
    %3781 = vmatpush1.bf16.msra.mxu0 %v3762
    %3782 = vmatprep.subr.bf16.mxu0 0
    %3783 = vmatpush1.bf16.msra.mxu0 %v3763
    %3784 = vmatprep.subr.bf16.mxu0 0
    %3785 = vmatpush1.bf16.msra.mxu0 %v3764
    %3786 = vmatprep.subr.bf16.mxu0 0
    %3787 = vmatpush1.bf16.msra.mxu0 %v3765
    %3788 = vmatprep.subr.bf16.mxu0 0
    %3789 = vmatpush1.bf16.msra.mxu0 %v3766
    %3790 = vmatprep.subr.bf16.mxu0 0
    %3791 = vmatpush1.bf16.msra.mxu0 %v3767
    %3792 = vmatprep.subr.bf16.mxu0 0
    %3793 = vmatpush1.bf16.msra.mxu0 0
    %3794 = vmatprep.subr.bf16.mxu0 0
    %3795 = vmatpush1.bf16.msra.mxu0 0
    %3796 = vmatprep.subr.bf16.mxu0 0
    %3797 = vmatpush1.bf16.msra.mxu0 0
    %3798 = vmatprep.subr.bf16.mxu0 0
    %3799 = vmatpush1.bf16.msra.mxu0 0
    %3800 = vmatprep.subr.bf16.mxu0 0
    %3801 = vmatpush1.bf16.msra.mxu0 0
    %3802 = vmatprep.subr.bf16.mxu0 0
    %3803 = vmatpush1.bf16.msra.mxu0 0
    %3804 = vmatprep.subr.bf16.mxu0 0
    %3805 = vmatpush1.bf16.msra.mxu0 0
    %3806 = vmatprep.subr.bf16.mxu0 0
    %3807 = vmatpush1.bf16.msra.mxu0 0
    %3808 = vmatprep.mubr.bf16.mxu0 0
    %3809 = vmatmul.mubr.bf16.gmra.mrb[0].mxu0 %v3710
    %v3810 = vpop.f32.mrb[0].mxu0
    %v3811 = vadd.f32 0.0, %v3810
    %v3812 = vpop.f32.mrb[0].mxu0
    %v3813 = vpop.f32.mrb[0].mxu0
    %v3814 = vadd.f32 0.0, %v3813
    %v3815 = vpop.f32.mrb[0].mxu0
    %3816 = vdwg.mxu0
    %v3817 = vadd.f32 %v3702, %v3811
    %v3818 = vadd.f32 %v3705, %v3814
    %v3819 = vadd.f32 %v3817, %v3818
    %v3820 = vrot.slane %v3819, 4
    %v3821 = vadd.f32 %v3819, %v3820
    %v3822 = vrot.slane %v3821, 2
    %v3823 = vadd.f32 %v3821, %v3822
    %v3824 = vrot.slane %v3823, 1
    %v3825 = vadd.f32 %v3823, %v3824
    %3826 = vrot.lane.b32.xlu0 %v3825, 16
    %v3827 = vpop.permute.xlu0 %3826
    %v3828 = vadd.f32 %v3825, %v3827
    %3829 = vrot.lane.b32.xlu0 %v3828, 32
    %v3830 = vpop.permute.xlu0 %3829
    %v3831 = vadd.f32 %v3828, %v3830
    %3832 = vrot.lane.b32.xlu0 %v3831, 64
    %v3833 = vpop.permute.xlu0 %3832
    %v3834 = vadd.f32 %v3831, %v3833
    %v3835 = vmul.f32 %v3834, 0.0078125
    %v3836 = vlaneseq
    %v3837 = vshrl.u32 %v3836, 7
    %v3838 = vsub.s32 0, %v3837
    %v3839 = vrot.slane %v3835, %v3838
    %v3840 = vsub.f32 %v3817, %v3839
    %v3841 = vsub.f32 %v3818, %v3839
    %v3842 = vmul.f32 %v3840, %v3840
    %v3843 = vmul.f32 %v3841, %v3841
    %v3844 = vadd.f32 %v3842, %v3843
    %v3845 = vrot.slane %v3844, 4
    %v3846 = vadd.f32 %v3844, %v3845
    %v3847 = vrot.slane %v3846, 2
    %v3848 = vadd.f32 %v3846, %v3847
    %v3849 = vrot.slane %v3848, 1
    %v3850 = vadd.f32 %v3848, %v3849
    %3851 = vrot.lane.b32.xlu0 %v3850, 16
    %v3852 = vpop.permute.xlu0 %3851
    %v3853 = vadd.f32 %v3850, %v3852
    %3854 = vrot.lane.b32.xlu0 %v3853, 32
    %v3855 = vpop.permute.xlu0 %3854
    %v3856 = vadd.f32 %v3853, %v3855
    %3857 = vrot.lane.b32.xlu0 %v3856, 64
    %v3858 = vpop.permute.xlu0 %3857
    %v3859 = vadd.f32 %v3856, %v3858
    %v3860 = vmul.f32 %v3859, 0.0078125
    %v3861 = vadd.f32 %v3860, 1e-05
    %v3862 = vrsqrt.pop %v3861
    %v3863 = vmul.f32 %v3487, %v3862
    %v3865 = vlaneseq
    %v3866 = vshrl.u32 %v3865, 7
    %v3867 = vsub.s32 0, %v3866
    %v3868 = vrot.slane %v3863, %v3867
    %v3870 = vmul.f32 %v3840, %v3868
    %v3871 = vmul.f32 %v3841, %v3868
    %v3873 = vlaneseq
    %v3874 = vshrl.u32 %v3873, 7
    %v3875 = vsub.s32 0, %v3874
    %v3876 = vrot.slane %v3489, %v3875
    %v3878 = vadd.f32 %v3870, %v3876
    %v3879 = vadd.f32 %v3871, %v3876
    %v3880 = vadd.f32 %v3878, %v3484
    %v3881 = vadd.f32 %v3879, %v3485
    %v3882 = vmax.f32 %v3880, 0.0
    %v3883 = vmax.f32 %v3881, 0.0
    %v3884 = vrot.slane %v3882, 4
    %v3885 = vadd.f32 %v3882, %v3884
    %v3886 = vrot.slane %v3885, 2
    %v3887 = vadd.f32 %v3885, %v3886
    %v3888 = vrot.slane %v3887, 1
    %v3889 = vadd.f32 %v3887, %v3888
    %v3890 = vrot.slane %v3883, 4
    %v3891 = vadd.f32 %v3883, %v3890
    %v3892 = vrot.slane %v3891, 2
    %v3893 = vadd.f32 %v3891, %v3892
    %v3894 = vrot.slane %v3893, 1
    %v3895 = vadd.f32 %v3893, %v3894
    %v3896 = vpack.c.bf16 %v3889, %v3889
    %v3897 = vpack.c.bf16 %v3895, %v3895
    %v3898 = vld [vmem:[#allocation11] sm:$0xf]
    %v3899 = vld [vmem:[#allocation11 + $0x4] sm:$0xf]
    %v3900 = vld [vmem:[#allocation11 + $0x8] sm:$0xf]
    %v3901 = vld [vmem:[#allocation11 + $0xc] sm:$0xf]
    %v3902 = vld [vmem:[#allocation11 + $0x10] sm:$0xf]
    %v3903 = vld [vmem:[#allocation11 + $0x14] sm:$0xf]
    %v3904 = vld [vmem:[#allocation11 + $0x18] sm:$0xf]
    %v3905 = vld [vmem:[#allocation11 + $0x1c] sm:$0xf]
    %v3906 = vld [vmem:[#allocation11 + $0x20] sm:$0xf]
    %v3907 = vld [vmem:[#allocation11 + $0x24] sm:$0xf]
    %v3908 = vld [vmem:[#allocation11 + $0x28] sm:$0xf]
    %v3909 = vld [vmem:[#allocation11 + $0x2c] sm:$0xf]
    %v3910 = vld [vmem:[#allocation11 + $0x30] sm:$0xf]
    %v3911 = vld [vmem:[#allocation11 + $0x34] sm:$0xf]
    %v3912 = vld [vmem:[#allocation11 + $0x38] sm:$0xf]
    %v3913 = vld [vmem:[#allocation11 + $0x3c] sm:$0xf]
    %v3914 = vld [vmem:[%s6] sm:$0x1]
    %v3916 = vlaneseq
    %v3917 = vshrl.u32 %v3916, 7
    %v3918 = vsub.s32 0, %v3917
    %v3919 = vrot.slane %v3914, %v3918
    %v3923 = vunpack.c.l.b16 %v3896
    %v3924 = vunpack.c.l.b16 %v3897
    %vm3925 = vcmask 1041409
    %v3926 = vsel %vm3925, %v3924, %v3923
    %v3927 = vpack.c.b16 %v3926, %v3926
    %v3945 = vunpack.c.l.b16 %v3898
    %v3946 = vunpack.c.l.b16 %v3899
    %v3947 = vunpack.c.l.b16 %v3900
    %v3948 = vunpack.c.l.b16 %v3901
    %v3949 = vunpack.c.l.b16 %v3902
    %v3950 = vunpack.c.l.b16 %v3903
    %v3951 = vunpack.c.l.b16 %v3904
    %v3952 = vunpack.c.l.b16 %v3905
    %v3953 = vunpack.c.l.b16 %v3906
    %v3954 = vunpack.c.l.b16 %v3907
    %v3955 = vunpack.c.l.b16 %v3908
    %v3956 = vunpack.c.l.b16 %v3909
    %v3957 = vunpack.c.l.b16 %v3910
    %v3958 = vunpack.c.l.b16 %v3911
    %v3959 = vunpack.c.l.b16 %v3912
    %v3960 = vunpack.c.l.b16 %v3913
    %v3961 = vpack.c.b16 %v3946, %v3945
    %v3962 = vpack.c.b16 %v3948, %v3947
    %v3963 = vpack.c.b16 %v3950, %v3949
    %v3964 = vpack.c.b16 %v3952, %v3951
    %v3965 = vpack.c.b16 %v3954, %v3953
    %v3966 = vpack.c.b16 %v3956, %v3955
    %v3967 = vpack.c.b16 %v3958, %v3957
    %v3968 = vpack.c.b16 %v3960, %v3959
    %3977 = vmatprep.subr.bf16.mxu0 0
    %3978 = vmatpush1.bf16.msra.mxu0 %v3961
    %3979 = vmatprep.subr.bf16.mxu0 0
    %3980 = vmatpush1.bf16.msra.mxu0 %v3962
    %3981 = vmatprep.subr.bf16.mxu0 0
    %3982 = vmatpush1.bf16.msra.mxu0 %v3963
    %3983 = vmatprep.subr.bf16.mxu0 0
    %3984 = vmatpush1.bf16.msra.mxu0 %v3964
    %3985 = vmatprep.subr.bf16.mxu0 0
    %3986 = vmatpush1.bf16.msra.mxu0 %v3965
    %3987 = vmatprep.subr.bf16.mxu0 0
    %3988 = vmatpush1.bf16.msra.mxu0 %v3966
    %3989 = vmatprep.subr.bf16.mxu0 0
    %3990 = vmatpush1.bf16.msra.mxu0 %v3967
    %3991 = vmatprep.subr.bf16.mxu0 0
    %3992 = vmatpush1.bf16.msra.mxu0 %v3968
    %3993 = vmatprep.subr.bf16.mxu0 0
    %3994 = vmatpush1.bf16.msra.mxu0 0
    %3995 = vmatprep.subr.bf16.mxu0 0
    %3996 = vmatpush1.bf16.msra.mxu0 0
    %3997 = vmatprep.subr.bf16.mxu0 0
    %3998 = vmatpush1.bf16.msra.mxu0 0
    %3999 = vmatprep.subr.bf16.mxu0 0
    %4000 = vmatpush1.bf16.msra.mxu0 0
    %4001 = vmatprep.subr.bf16.mxu0 0
    %4002 = vmatpush1.bf16.msra.mxu0 0
    %4003 = vmatprep.subr.bf16.mxu0 0
    %4004 = vmatpush1.bf16.msra.mxu0 0
    %4005 = vmatprep.subr.bf16.mxu0 0
    %4006 = vmatpush1.bf16.msra.mxu0 0
    %4007 = vmatprep.subr.bf16.mxu0 0
    %4008 = vmatpush1.bf16.msra.mxu0 0
    %4009 = vmatprep.mubr.bf16.mxu0 0
    %4010 = vmatmul.mubr.bf16.gmra.mrb[0].mxu0 %v3927
    %v4011 = vpop.f32.mrb[0].mxu0
    %v4012 = vadd.f32 %v3919, %v4011
    %v4013 = vpop.f32.mrb[0].mxu0
    %v4014 = vpop.f32.mrb[0].mxu0
    %v4015 = vpop.f32.mrb[0].mxu0
    %4016 = vdwg.mxu0
    %4017 = vst [vmem:[#allocation13] sm:$0x3] %v4012
    // Predicated region
    $region38: #{tpu_custom_call.1} parent=1 // pred_check
      _
    $region39: #{tpu_custom_call.1} parent=1 // pred_check_branch
      %4019 = sbr.rel (0) target = $region41
    $region40: #{tpu_custom_call.1} parent=1 // pred_region
      %s4021 = ssub.s32 32, 32
      %4022 = vsyncadd [#allocation10], %s4021
      %s4024 = sshll.u32 [#allocation13], 4
      %s4025 = int_to_ptr.vmem [resolvable:$true] %s4024
      %4027 = dma.vmem_to_hbm [thread:$0]  %s4025, 32, %s7, [#allocation10]
    $region41: #{tpu_custom_call.1} parent=1 // pred_fallthru
      _
    // Predicated region
    $region42: #{tpu_custom_call.1} parent=1 // pred_check
      _
    $region43: #{tpu_custom_call.1} parent=1 // pred_check_branch
      %4029 = sbr.rel (0) target = $region45
    $region44: #{tpu_custom_call.1} parent=1 // pred_region
      %4030 = dma.done [#allocation10], 32
    $region45: #{tpu_custom_call.1} parent=1 // pred_fallthru
      _
    %4031 = vsyncpa [#allocation9], 1
    %4032 = vsyncpa [#allocation12], 1
    %4033 = vsyncpa [#allocation10], 1

</llo_original>
